<compile_context>
chip_gen: v6e
topology: v6e:2x2x1
jax: 0.10.0
libtpu: 0.0.40
codegen_flags: <defaults>
</compile_context>

<pallas_src>
import jax
import jax.numpy as jnp
from jax import lax
from jax.experimental import pallas as pl
from jax.experimental.pallas import tpu as pltpu


IN_CHANNELS = 3
OUT_CHANNELS = 1
HIDDEN = 40
NUM_LAYERS = 7

CHUNK = 256                        # points per inner compute chunk (multiple of 128)
CHUNKS_PER_TILE = 4                # unrolled inner loop trip count per grid step
N_TILE = CHUNK * CHUNKS_PER_TILE   # points moved per grid step (DMA tile)


def _mlp_kernel(x_ref, w_ref, b_ref, o_ref):
    """Whole 7-layer MLP for one batch tile.

    x_ref: (CHUNKS_PER_TILE, IN_CHANNELS, CHUNK)  -- points on lanes
    w_ref: (NUM_LAYERS, HIDDEN, HIDDEN)           -- (fan_out, fan_in), zero-padded
    b_ref: (NUM_LAYERS, HIDDEN, 1)                -- zero-padded
    o_ref: (CHUNKS_PER_TILE, OUT_CHANNELS, CHUNK)
    """

    def chunk_body(c, carry):
        x = x_ref[c]                                   # (IN_CHANNELS, CHUNK)

        # layer 1: (HIDDEN, IN) @ (IN, CHUNK) -> (HIDDEN, CHUNK), then tanh
        w1 = w_ref[0][:, :IN_CHANNELS]
        h = jnp.tanh(
            jnp.dot(w1, x, preferred_element_type=jnp.float32) + b_ref[0])

        # layers 2..6: (HIDDEN, HIDDEN) @ (HIDDEN, CHUNK), tanh
        for k in range(1, NUM_LAYERS - 1):
            h = jnp.tanh(
                jnp.dot(w_ref[k], h, preferred_element_type=jnp.float32)
                + b_ref[k])

        # layer 7: (OUT, HIDDEN) @ (HIDDEN, CHUNK), no activation
        w7 = w_ref[NUM_LAYERS - 1][:OUT_CHANNELS, :]
        b7 = b_ref[NUM_LAYERS - 1][:OUT_CHANNELS, :]
        y = jnp.dot(w7, h, preferred_element_type=jnp.float32) + b7

        o_ref[c] = y.astype(o_ref.dtype)               # lane-dense (1, CHUNK) store
        return carry

    lax.fori_loop(0, CHUNKS_PER_TILE, chunk_body, 0, unroll=True)


def _pack_params(params):
    """Stack 7 (W, b) pairs (torch orientation: W=(fan_out,fan_in), b=(fan_out,))
    into zero-padded (7, HIDDEN, HIDDEN) and (7, HIDDEN, 1) arrays."""
    w_all = jnp.zeros((NUM_LAYERS, HIDDEN, HIDDEN), jnp.float32)
    b_all = jnp.zeros((NUM_LAYERS, HIDDEN, 1), jnp.float32)
    for k, (w, b) in enumerate(params):
        fo, fi = w.shape
        w_all = w_all.at[k, :fo, :fi].set(w.astype(jnp.float32))
        b_all = b_all.at[k, :fo, 0].set(b.astype(jnp.float32))
    return w_all, b_all


@jax.jit
def mlp_forward(x, params):
    """x: (N, IN_CHANNELS). params: list of 7 (W, b), W=(fan_out, fan_in), b=(fan_out,)."""
    n = x.shape[0]
    x = x.astype(jnp.float32)                          # matches x.to(torch.float32)

    n_pad = ((n + N_TILE - 1) // N_TILE) * N_TILE
    if n_pad != n:
        x = jnp.pad(x, ((0, n_pad - n), (0, 0)))       # pad only when ragged

    n_chunks = n_pad // CHUNK
    # (n_pad, IN) -> (n_chunks, IN, CHUNK): batch-on-lanes layout
    x_t = x.reshape(n_chunks, CHUNK, IN_CHANNELS).transpose(0, 2, 1)

    w_all, b_all = _pack_params(params)

    out = pl.pallas_call(
        _mlp_kernel,
        out_shape=jax.ShapeDtypeStruct((n_chunks, OUT_CHANNELS, CHUNK),
                                       jnp.float32),
        grid_spec=pltpu.PrefetchScalarGridSpec(
            num_scalar_prefetch=0,
            grid=(n_pad // N_TILE,),
            in_specs=[
                pl.BlockSpec((CHUNKS_PER_TILE, IN_CHANNELS, CHUNK),
                             lambda i: (i, 0, 0)),
                pl.BlockSpec((NUM_LAYERS, HIDDEN, HIDDEN),
                             lambda i: (0, 0, 0)),
                pl.BlockSpec((NUM_LAYERS, HIDDEN, 1),
                             lambda i: (0, 0, 0)),
            ],
            out_specs=pl.BlockSpec((CHUNKS_PER_TILE, OUT_CHANNELS, CHUNK),
                                   lambda i: (i, 0, 0)),
        ),
        compiler_params=pltpu.CompilerParams(
            dimension_semantics=("parallel",)),
    )(x_t, w_all, b_all)

    # (n_chunks, 1, CHUNK) -> (n_pad, 1); relies on OUT_CHANNELS == 1.
    y = out.reshape(n_pad, OUT_CHANNELS)
    if n_pad != n:
        y = y[:n]
    return y


def init_params(key):
    """Xavier-normal weights, zero biases (matches the torch init).
    Stored in torch orientation: W=(fan_out, fan_in), b=(fan_out,)."""
    dims = [IN_CHANNELS] + [HIDDEN] * 6 + [OUT_CHANNELS]
    params = []
    for i in range(NUM_LAYERS):
        fan_in, fan_out = dims[i], dims[i + 1]
        key, sub = jax.random.split(key)
        std = (2.0 / (fan_in + fan_out)) ** 0.5
        w = std * jax.random.normal(sub, (fan_out, fan_in), jnp.float32)
        b = jnp.zeros((fan_out,), jnp.float32)
        params.append((w, b))
    return params


def mlp_reference(x, params):
    h = x.astype(jnp.float32)
    for i, (w, b) in enumerate(params):
        h = h @ w.T + b
        if i < len(params) - 1:
            h = jnp.tanh(h)
    return h


if __name__ == "__main__":
    key = jax.random.PRNGKey(0)
    kp, kx = jax.random.split(key)
    params = init_params(kp)

    # DFVM-style collocation points: (N, 3) -> (N, 1).  N chosen so the kernel
    # exercises >1 grid step plus a ragged tail.
    n = 1234
    x = jax.random.normal(kx, (n, IN_CHANNELS), jnp.float32)

    out = jax.block_until_ready(mlp_forward(x, params))
    ref = mlp_reference(x, params)

    assert out.shape == (n, OUT_CHANNELS), out.shape
    err = float(jnp.max(jnp.abs(out - ref)))
    assert jnp.allclose(out, ref, atol=1e-4, rtol=1e-4), err

    print("KERNEL_OK")
</pallas_src>

<mosaic_0001>
module attributes {stable_mosaic.version = 11 : i64} {
  func.func @_mlp_kernel(%arg0: i32, %arg1: memref<4x3x256xf32, #tpu.memory_space<vmem>>, %arg2: memref<7x40x40xf32, #tpu.memory_space<vmem>>, %arg3: memref<7x40x1xf32, #tpu.memory_space<vmem>>, %arg4: memref<4x1x256xf32, #tpu.memory_space<vmem>>) attributes {dimension_semantics = [#tpu.dimension_semantics<parallel>], iteration_bounds = array<i64: 2>, scalar_prefetch = 0 : i64, scratch_operands = 0 : i64, tpu.core_type = #tpu.core_type<tc>, window_params = [{transform_indices = @transform_0, window_bounds = array<i64: 4, 3, 256>}, {pipeline_mode = #tpu.pipeline_mode<synchronous>, transform_indices = @transform_1, window_bounds = array<i64: 7, 40, 40>}, {pipeline_mode = #tpu.pipeline_mode<synchronous>, transform_indices = @transform_2, window_bounds = array<i64: 7, 40, 1>}, {transform_indices = @transform_3, window_bounds = array<i64: 4, 1, 256>}]} {
    %c0_i32 = arith.constant 0 : i32
    %0 = arith.index_cast %c0_i32 : i32 to index
    %c0 = arith.constant 0 : index
    %c0_0 = arith.constant 0 : index
    %1 = vector.load %arg1[%0, %c0, %c0_0] : memref<4x3x256xf32, #tpu.memory_space<vmem>>, vector<1x3x256xf32>
    %2 = vector.shape_cast %1 : vector<1x3x256xf32> to vector<3x256xf32>
    %c0_1 = arith.constant 0 : index
    %c0_2 = arith.constant 0 : index
    %c0_3 = arith.constant 0 : index
    %3 = vector.load %arg2[%c0_1, %c0_2, %c0_3] : memref<7x40x40xf32, #tpu.memory_space<vmem>>, vector<1x40x40xf32>
    %4 = vector.shape_cast %3 : vector<1x40x40xf32> to vector<40x40xf32>
    %5 = vector.extract_strided_slice %4 {offsets = [0, 0], sizes = [40, 3], strides = [1, 1]} : vector<40x40xf32> to vector<40x3xf32>
    %cst = arith.constant dense<0.000000e+00> : vector<40x256xf32>
    %6 = tpu.matmul %5, %2, %cst {dimension_numbers = #tpu.dot_dimension_numbers<[1], [0], [0], [1], [0, 0, 1, 1], [], []>} : vector<40x3xf32>, vector<3x256xf32>, vector<40x256xf32> -> vector<40x256xf32>
    %c0_4 = arith.constant 0 : index
    %c0_5 = arith.constant 0 : index
    %c0_6 = arith.constant 0 : index
    %7 = vector.load %arg3[%c0_4, %c0_5, %c0_6] : memref<7x40x1xf32, #tpu.memory_space<vmem>>, vector<1x40x1xf32>
    %8 = vector.shape_cast %7 : vector<1x40x1xf32> to vector<40x1xf32>
    %9 = vector.broadcast %8 : vector<40x1xf32> to vector<40x256xf32>
    %10 = arith.addf %6, %9 : vector<40x256xf32>
    %11 = math.tanh %10 : vector<40x256xf32>
    %c1 = arith.constant 1 : index
    %c0_7 = arith.constant 0 : index
    %c0_8 = arith.constant 0 : index
    %12 = vector.load %arg2[%c1, %c0_7, %c0_8] : memref<7x40x40xf32, #tpu.memory_space<vmem>>, vector<1x40x40xf32>
    %13 = vector.shape_cast %12 : vector<1x40x40xf32> to vector<40x40xf32>
    %cst_9 = arith.constant dense<0.000000e+00> : vector<40x256xf32>
    %14 = tpu.matmul %13, %11, %cst_9 {dimension_numbers = #tpu.dot_dimension_numbers<[1], [0], [0], [1], [0, 0, 1, 1], [], []>} : vector<40x40xf32>, vector<40x256xf32>, vector<40x256xf32> -> vector<40x256xf32>
    %c1_10 = arith.constant 1 : index
    %c0_11 = arith.constant 0 : index
    %c0_12 = arith.constant 0 : index
    %15 = vector.load %arg3[%c1_10, %c0_11, %c0_12] : memref<7x40x1xf32, #tpu.memory_space<vmem>>, vector<1x40x1xf32>
    %16 = vector.shape_cast %15 : vector<1x40x1xf32> to vector<40x1xf32>
    %17 = vector.broadcast %16 : vector<40x1xf32> to vector<40x256xf32>
    %18 = arith.addf %14, %17 : vector<40x256xf32>
    %19 = math.tanh %18 : vector<40x256xf32>
    %c2 = arith.constant 2 : index
    %c0_13 = arith.constant 0 : index
    %c0_14 = arith.constant 0 : index
    %20 = vector.load %arg2[%c2, %c0_13, %c0_14] : memref<7x40x40xf32, #tpu.memory_space<vmem>>, vector<1x40x40xf32>
    %21 = vector.shape_cast %20 : vector<1x40x40xf32> to vector<40x40xf32>
    %cst_15 = arith.constant dense<0.000000e+00> : vector<40x256xf32>
    %22 = tpu.matmul %21, %19, %cst_15 {dimension_numbers = #tpu.dot_dimension_numbers<[1], [0], [0], [1], [0, 0, 1, 1], [], []>} : vector<40x40xf32>, vector<40x256xf32>, vector<40x256xf32> -> vector<40x256xf32>
    %c2_16 = arith.constant 2 : index
    %c0_17 = arith.constant 0 : index
    %c0_18 = arith.constant 0 : index
    %23 = vector.load %arg3[%c2_16, %c0_17, %c0_18] : memref<7x40x1xf32, #tpu.memory_space<vmem>>, vector<1x40x1xf32>
    %24 = vector.shape_cast %23 : vector<1x40x1xf32> to vector<40x1xf32>
    %25 = vector.broadcast %24 : vector<40x1xf32> to vector<40x256xf32>
    %26 = arith.addf %22, %25 : vector<40x256xf32>
    %27 = math.tanh %26 : vector<40x256xf32>
    %c3 = arith.constant 3 : index
    %c0_19 = arith.constant 0 : index
    %c0_20 = arith.constant 0 : index
    %28 = vector.load %arg2[%c3, %c0_19, %c0_20] : memref<7x40x40xf32, #tpu.memory_space<vmem>>, vector<1x40x40xf32>
    %29 = vector.shape_cast %28 : vector<1x40x40xf32> to vector<40x40xf32>
    %cst_21 = arith.constant dense<0.000000e+00> : vector<40x256xf32>
    %30 = tpu.matmul %29, %27, %cst_21 {dimension_numbers = #tpu.dot_dimension_numbers<[1], [0], [0], [1], [0, 0, 1, 1], [], []>} : vector<40x40xf32>, vector<40x256xf32>, vector<40x256xf32> -> vector<40x256xf32>
    %c3_22 = arith.constant 3 : index
    %c0_23 = arith.constant 0 : index
    %c0_24 = arith.constant 0 : index
    %31 = vector.load %arg3[%c3_22, %c0_23, %c0_24] : memref<7x40x1xf32, #tpu.memory_space<vmem>>, vector<1x40x1xf32>
    %32 = vector.shape_cast %31 : vector<1x40x1xf32> to vector<40x1xf32>
    %33 = vector.broadcast %32 : vector<40x1xf32> to vector<40x256xf32>
    %34 = arith.addf %30, %33 : vector<40x256xf32>
    %35 = math.tanh %34 : vector<40x256xf32>
    %c4 = arith.constant 4 : index
    %c0_25 = arith.constant 0 : index
    %c0_26 = arith.constant 0 : index
    %36 = vector.load %arg2[%c4, %c0_25, %c0_26] : memref<7x40x40xf32, #tpu.memory_space<vmem>>, vector<1x40x40xf32>
    %37 = vector.shape_cast %36 : vector<1x40x40xf32> to vector<40x40xf32>
    %cst_27 = arith.constant dense<0.000000e+00> : vector<40x256xf32>
    %38 = tpu.matmul %37, %35, %cst_27 {dimension_numbers = #tpu.dot_dimension_numbers<[1], [0], [0], [1], [0, 0, 1, 1], [], []>} : vector<40x40xf32>, vector<40x256xf32>, vector<40x256xf32> -> vector<40x256xf32>
    %c4_28 = arith.constant 4 : index
    %c0_29 = arith.constant 0 : index
    %c0_30 = arith.constant 0 : index
    %39 = vector.load %arg3[%c4_28, %c0_29, %c0_30] : memref<7x40x1xf32, #tpu.memory_space<vmem>>, vector<1x40x1xf32>
    %40 = vector.shape_cast %39 : vector<1x40x1xf32> to vector<40x1xf32>
    %41 = vector.broadcast %40 : vector<40x1xf32> to vector<40x256xf32>
    %42 = arith.addf %38, %41 : vector<40x256xf32>
    %43 = math.tanh %42 : vector<40x256xf32>
    %c5 = arith.constant 5 : index
    %c0_31 = arith.constant 0 : index
    %c0_32 = arith.constant 0 : index
    %44 = vector.load %arg2[%c5, %c0_31, %c0_32] : memref<7x40x40xf32, #tpu.memory_space<vmem>>, vector<1x40x40xf32>
    %45 = vector.shape_cast %44 : vector<1x40x40xf32> to vector<40x40xf32>
    %cst_33 = arith.constant dense<0.000000e+00> : vector<40x256xf32>
    %46 = tpu.matmul %45, %43, %cst_33 {dimension_numbers = #tpu.dot_dimension_numbers<[1], [0], [0], [1], [0, 0, 1, 1], [], []>} : vector<40x40xf32>, vector<40x256xf32>, vector<40x256xf32> -> vector<40x256xf32>
    %c5_34 = arith.constant 5 : index
    %c0_35 = arith.constant 0 : index
    %c0_36 = arith.constant 0 : index
    %47 = vector.load %arg3[%c5_34, %c0_35, %c0_36] : memref<7x40x1xf32, #tpu.memory_space<vmem>>, vector<1x40x1xf32>
    %48 = vector.shape_cast %47 : vector<1x40x1xf32> to vector<40x1xf32>
    %49 = vector.broadcast %48 : vector<40x1xf32> to vector<40x256xf32>
    %50 = arith.addf %46, %49 : vector<40x256xf32>
    %51 = math.tanh %50 : vector<40x256xf32>
    %c6 = arith.constant 6 : index
    %c0_37 = arith.constant 0 : index
    %c0_38 = arith.constant 0 : index
    %52 = vector.load %arg2[%c6, %c0_37, %c0_38] : memref<7x40x40xf32, #tpu.memory_space<vmem>>, vector<1x40x40xf32>
    %53 = vector.shape_cast %52 : vector<1x40x40xf32> to vector<40x40xf32>
    %54 = vector.extract_strided_slice %53 {offsets = [0, 0], sizes = [1, 40], strides = [1, 1]} : vector<40x40xf32> to vector<1x40xf32>
    %c6_39 = arith.constant 6 : index
    %c0_40 = arith.constant 0 : index
    %c0_41 = arith.constant 0 : index
    %55 = vector.load %arg3[%c6_39, %c0_40, %c0_41] : memref<7x40x1xf32, #tpu.memory_space<vmem>>, vector<1x40x1xf32>
    %56 = vector.shape_cast %55 : vector<1x40x1xf32> to vector<40x1xf32>
    %57 = vector.extract_strided_slice %56 {offsets = [0, 0], sizes = [1, 1], strides = [1, 1]} : vector<40x1xf32> to vector<1x1xf32>
    %cst_42 = arith.constant dense<0.000000e+00> : vector<1x256xf32>
    %58 = tpu.matmul %54, %51, %cst_42 {dimension_numbers = #tpu.dot_dimension_numbers<[1], [0], [0], [1], [0, 0, 1, 1], [], []>} : vector<1x40xf32>, vector<40x256xf32>, vector<1x256xf32> -> vector<1x256xf32>
    %59 = vector.broadcast %57 : vector<1x1xf32> to vector<1x256xf32>
    %60 = arith.addf %58, %59 : vector<1x256xf32>
    %61 = arith.index_cast %c0_i32 : i32 to index
    %c0_43 = arith.constant 0 : index
    %c0_44 = arith.constant 0 : index
    %62 = vector.load %arg4[%61, %c0_43, %c0_44] : memref<4x1x256xf32, #tpu.memory_space<vmem>>, vector<1x1x256xf32>
    %63 = vector.shape_cast %62 : vector<1x1x256xf32> to vector<1x256xf32>
    %64 = vector.shape_cast %60 : vector<1x256xf32> to vector<1x1x256xf32>
    tpu.vector_store %arg4[%61, %c0_43, %c0_44], %64 {strides = array<i32>} : memref<4x1x256xf32, #tpu.memory_space<vmem>>, vector<1x1x256xf32>,
    %c1_i32 = arith.constant 1 : i32
    %65 = arith.index_cast %c1_i32 : i32 to index
    %c0_45 = arith.constant 0 : index
    %c0_46 = arith.constant 0 : index
    %66 = vector.load %arg1[%65, %c0_45, %c0_46] : memref<4x3x256xf32, #tpu.memory_space<vmem>>, vector<1x3x256xf32>
    %67 = vector.shape_cast %66 : vector<1x3x256xf32> to vector<3x256xf32>
    %c0_47 = arith.constant 0 : index
    %c0_48 = arith.constant 0 : index
    %c0_49 = arith.constant 0 : index
    %68 = vector.load %arg2[%c0_47, %c0_48, %c0_49] : memref<7x40x40xf32, #tpu.memory_space<vmem>>, vector<1x40x40xf32>
    %69 = vector.shape_cast %68 : vector<1x40x40xf32> to vector<40x40xf32>
    %70 = vector.extract_strided_slice %69 {offsets = [0, 0], sizes = [40, 3], strides = [1, 1]} : vector<40x40xf32> to vector<40x3xf32>
    %cst_50 = arith.constant dense<0.000000e+00> : vector<40x256xf32>
    %71 = tpu.matmul %70, %67, %cst_50 {dimension_numbers = #tpu.dot_dimension_numbers<[1], [0], [0], [1], [0, 0, 1, 1], [], []>} : vector<40x3xf32>, vector<3x256xf32>, vector<40x256xf32> -> vector<40x256xf32>
    %c0_51 = arith.constant 0 : index
    %c0_52 = arith.constant 0 : index
    %c0_53 = arith.constant 0 : index
    %72 = vector.load %arg3[%c0_51, %c0_52, %c0_53] : memref<7x40x1xf32, #tpu.memory_space<vmem>>, vector<1x40x1xf32>
    %73 = vector.shape_cast %72 : vector<1x40x1xf32> to vector<40x1xf32>
    %74 = vector.broadcast %73 : vector<40x1xf32> to vector<40x256xf32>
    %75 = arith.addf %71, %74 : vector<40x256xf32>
    %76 = math.tanh %75 : vector<40x256xf32>
    %c1_54 = arith.constant 1 : index
    %c0_55 = arith.constant 0 : index
    %c0_56 = arith.constant 0 : index
    %77 = vector.load %arg2[%c1_54, %c0_55, %c0_56] : memref<7x40x40xf32, #tpu.memory_space<vmem>>, vector<1x40x40xf32>
    %78 = vector.shape_cast %77 : vector<1x40x40xf32> to vector<40x40xf32>
    %cst_57 = arith.constant dense<0.000000e+00> : vector<40x256xf32>
    %79 = tpu.matmul %78, %76, %cst_57 {dimension_numbers = #tpu.dot_dimension_numbers<[1], [0], [0], [1], [0, 0, 1, 1], [], []>} : vector<40x40xf32>, vector<40x256xf32>, vector<40x256xf32> -> vector<40x256xf32>
    %c1_58 = arith.constant 1 : index
    %c0_59 = arith.constant 0 : index
    %c0_60 = arith.constant 0 : index
    %80 = vector.load %arg3[%c1_58, %c0_59, %c0_60] : memref<7x40x1xf32, #tpu.memory_space<vmem>>, vector<1x40x1xf32>
    %81 = vector.shape_cast %80 : vector<1x40x1xf32> to vector<40x1xf32>
    %82 = vector.broadcast %81 : vector<40x1xf32> to vector<40x256xf32>
    %83 = arith.addf %79, %82 : vector<40x256xf32>
    %84 = math.tanh %83 : vector<40x256xf32>
    %c2_61 = arith.constant 2 : index
    %c0_62 = arith.constant 0 : index
    %c0_63 = arith.constant 0 : index
    %85 = vector.load %arg2[%c2_61, %c0_62, %c0_63] : memref<7x40x40xf32, #tpu.memory_space<vmem>>, vector<1x40x40xf32>
    %86 = vector.shape_cast %85 : vector<1x40x40xf32> to vector<40x40xf32>
    %cst_64 = arith.constant dense<0.000000e+00> : vector<40x256xf32>
    %87 = tpu.matmul %86, %84, %cst_64 {dimension_numbers = #tpu.dot_dimension_numbers<[1], [0], [0], [1], [0, 0, 1, 1], [], []>} : vector<40x40xf32>, vector<40x256xf32>, vector<40x256xf32> -> vector<40x256xf32>
    %c2_65 = arith.constant 2 : index
    %c0_66 = arith.constant 0 : index
    %c0_67 = arith.constant 0 : index
    %88 = vector.load %arg3[%c2_65, %c0_66, %c0_67] : memref<7x40x1xf32, #tpu.memory_space<vmem>>, vector<1x40x1xf32>
    %89 = vector.shape_cast %88 : vector<1x40x1xf32> to vector<40x1xf32>
    %90 = vector.broadcast %89 : vector<40x1xf32> to vector<40x256xf32>
    %91 = arith.addf %87, %90 : vector<40x256xf32>
    %92 = math.tanh %91 : vector<40x256xf32>
    %c3_68 = arith.constant 3 : index
    %c0_69 = arith.constant 0 : index
    %c0_70 = arith.constant 0 : index
    %93 = vector.load %arg2[%c3_68, %c0_69, %c0_70] : memref<7x40x40xf32, #tpu.memory_space<vmem>>, vector<1x40x40xf32>
    %94 = vector.shape_cast %93 : vector<1x40x40xf32> to vector<40x40xf32>
    %cst_71 = arith.constant dense<0.000000e+00> : vector<40x256xf32>
    %95 = tpu.matmul %94, %92, %cst_71 {dimension_numbers = #tpu.dot_dimension_numbers<[1], [0], [0], [1], [0, 0, 1, 1], [], []>} : vector<40x40xf32>, vector<40x256xf32>, vector<40x256xf32> -> vector<40x256xf32>
    %c3_72 = arith.constant 3 : index
    %c0_73 = arith.constant 0 : index
    %c0_74 = arith.constant 0 : index
    %96 = vector.load %arg3[%c3_72, %c0_73, %c0_74] : memref<7x40x1xf32, #tpu.memory_space<vmem>>, vector<1x40x1xf32>
    %97 = vector.shape_cast %96 : vector<1x40x1xf32> to vector<40x1xf32>
    %98 = vector.broadcast %97 : vector<40x1xf32> to vector<40x256xf32>
    %99 = arith.addf %95, %98 : vector<40x256xf32>
    %100 = math.tanh %99 : vector<40x256xf32>
    %c4_75 = arith.constant 4 : index
    %c0_76 = arith.constant 0 : index
    %c0_77 = arith.constant 0 : index
    %101 = vector.load %arg2[%c4_75, %c0_76, %c0_77] : memref<7x40x40xf32, #tpu.memory_space<vmem>>, vector<1x40x40xf32>
    %102 = vector.shape_cast %101 : vector<1x40x40xf32> to vector<40x40xf32>
    %cst_78 = arith.constant dense<0.000000e+00> : vector<40x256xf32>
    %103 = tpu.matmul %102, %100, %cst_78 {dimension_numbers = #tpu.dot_dimension_numbers<[1], [0], [0], [1], [0, 0, 1, 1], [], []>} : vector<40x40xf32>, vector<40x256xf32>, vector<40x256xf32> -> vector<40x256xf32>
    %c4_79 = arith.constant 4 : index
    %c0_80 = arith.constant 0 : index
    %c0_81 = arith.constant 0 : index
    %104 = vector.load %arg3[%c4_79, %c0_80, %c0_81] : memref<7x40x1xf32, #tpu.memory_space<vmem>>, vector<1x40x1xf32>
    %105 = vector.shape_cast %104 : vector<1x40x1xf32> to vector<40x1xf32>
    %106 = vector.broadcast %105 : vector<40x1xf32> to vector<40x256xf32>
    %107 = arith.addf %103, %106 : vector<40x256xf32>
    %108 = math.tanh %107 : vector<40x256xf32>
    %c5_82 = arith.constant 5 : index
    %c0_83 = arith.constant 0 : index
    %c0_84 = arith.constant 0 : index
    %109 = vector.load %arg2[%c5_82, %c0_83, %c0_84] : memref<7x40x40xf32, #tpu.memory_space<vmem>>, vector<1x40x40xf32>
    %110 = vector.shape_cast %109 : vector<1x40x40xf32> to vector<40x40xf32>
    %cst_85 = arith.constant dense<0.000000e+00> : vector<40x256xf32>
    %111 = tpu.matmul %110, %108, %cst_85 {dimension_numbers = #tpu.dot_dimension_numbers<[1], [0], [0], [1], [0, 0, 1, 1], [], []>} : vector<40x40xf32>, vector<40x256xf32>, vector<40x256xf32> -> vector<40x256xf32>
    %c5_86 = arith.constant 5 : index
    %c0_87 = arith.constant 0 : index
    %c0_88 = arith.constant 0 : index
    %112 = vector.load %arg3[%c5_86, %c0_87, %c0_88] : memref<7x40x1xf32, #tpu.memory_space<vmem>>, vector<1x40x1xf32>
    %113 = vector.shape_cast %112 : vector<1x40x1xf32> to vector<40x1xf32>
    %114 = vector.broadcast %113 : vector<40x1xf32> to vector<40x256xf32>
    %115 = arith.addf %111, %114 : vector<40x256xf32>
    %116 = math.tanh %115 : vector<40x256xf32>
    %c6_89 = arith.constant 6 : index
    %c0_90 = arith.constant 0 : index
    %c0_91 = arith.constant 0 : index
    %117 = vector.load %arg2[%c6_89, %c0_90, %c0_91] : memref<7x40x40xf32, #tpu.memory_space<vmem>>, vector<1x40x40xf32>
    %118 = vector.shape_cast %117 : vector<1x40x40xf32> to vector<40x40xf32>
    %119 = vector.extract_strided_slice %118 {offsets = [0, 0], sizes = [1, 40], strides = [1, 1]} : vector<40x40xf32> to vector<1x40xf32>
    %c6_92 = arith.constant 6 : index
    %c0_93 = arith.constant 0 : index
    %c0_94 = arith.constant 0 : index
    %120 = vector.load %arg3[%c6_92, %c0_93, %c0_94] : memref<7x40x1xf32, #tpu.memory_space<vmem>>, vector<1x40x1xf32>
    %121 = vector.shape_cast %120 : vector<1x40x1xf32> to vector<40x1xf32>
    %122 = vector.extract_strided_slice %121 {offsets = [0, 0], sizes = [1, 1], strides = [1, 1]} : vector<40x1xf32> to vector<1x1xf32>
    %cst_95 = arith.constant dense<0.000000e+00> : vector<1x256xf32>
    %123 = tpu.matmul %119, %116, %cst_95 {dimension_numbers = #tpu.dot_dimension_numbers<[1], [0], [0], [1], [0, 0, 1, 1], [], []>} : vector<1x40xf32>, vector<40x256xf32>, vector<1x256xf32> -> vector<1x256xf32>
    %124 = vector.broadcast %122 : vector<1x1xf32> to vector<1x256xf32>
    %125 = arith.addf %123, %124 : vector<1x256xf32>
    %126 = arith.index_cast %c1_i32 : i32 to index
    %c0_96 = arith.constant 0 : index
    %c0_97 = arith.constant 0 : index
    %127 = vector.load %arg4[%126, %c0_96, %c0_97] : memref<4x1x256xf32, #tpu.memory_space<vmem>>, vector<1x1x256xf32>
    %128 = vector.shape_cast %127 : vector<1x1x256xf32> to vector<1x256xf32>
    %129 = vector.shape_cast %125 : vector<1x256xf32> to vector<1x1x256xf32>
    tpu.vector_store %arg4[%126, %c0_96, %c0_97], %129 {strides = array<i32>} : memref<4x1x256xf32, #tpu.memory_space<vmem>>, vector<1x1x256xf32>,
    %c2_i32 = arith.constant 2 : i32
    %130 = arith.index_cast %c2_i32 : i32 to index
    %c0_98 = arith.constant 0 : index
    %c0_99 = arith.constant 0 : index
    %131 = vector.load %arg1[%130, %c0_98, %c0_99] : memref<4x3x256xf32, #tpu.memory_space<vmem>>, vector<1x3x256xf32>
    %132 = vector.shape_cast %131 : vector<1x3x256xf32> to vector<3x256xf32>
    %c0_100 = arith.constant 0 : index
    %c0_101 = arith.constant 0 : index
    %c0_102 = arith.constant 0 : index
    %133 = vector.load %arg2[%c0_100, %c0_101, %c0_102] : memref<7x40x40xf32, #tpu.memory_space<vmem>>, vector<1x40x40xf32>
    %134 = vector.shape_cast %133 : vector<1x40x40xf32> to vector<40x40xf32>
    %135 = vector.extract_strided_slice %134 {offsets = [0, 0], sizes = [40, 3], strides = [1, 1]} : vector<40x40xf32> to vector<40x3xf32>
    %cst_103 = arith.constant dense<0.000000e+00> : vector<40x256xf32>
    %136 = tpu.matmul %135, %132, %cst_103 {dimension_numbers = #tpu.dot_dimension_numbers<[1], [0], [0], [1], [0, 0, 1, 1], [], []>} : vector<40x3xf32>, vector<3x256xf32>, vector<40x256xf32> -> vector<40x256xf32>
    %c0_104 = arith.constant 0 : index
    %c0_105 = arith.constant 0 : index
    %c0_106 = arith.constant 0 : index
    %137 = vector.load %arg3[%c0_104, %c0_105, %c0_106] : memref<7x40x1xf32, #tpu.memory_space<vmem>>, vector<1x40x1xf32>
    %138 = vector.shape_cast %137 : vector<1x40x1xf32> to vector<40x1xf32>
    %139 = vector.broadcast %138 : vector<40x1xf32> to vector<40x256xf32>
    %140 = arith.addf %136, %139 : vector<40x256xf32>
    %141 = math.tanh %140 : vector<40x256xf32>
    %c1_107 = arith.constant 1 : index
    %c0_108 = arith.constant 0 : index
    %c0_109 = arith.constant 0 : index
    %142 = vector.load %arg2[%c1_107, %c0_108, %c0_109] : memref<7x40x40xf32, #tpu.memory_space<vmem>>, vector<1x40x40xf32>
    %143 = vector.shape_cast %142 : vector<1x40x40xf32> to vector<40x40xf32>
    %cst_110 = arith.constant dense<0.000000e+00> : vector<40x256xf32>
    %144 = tpu.matmul %143, %141, %cst_110 {dimension_numbers = #tpu.dot_dimension_numbers<[1], [0], [0], [1], [0, 0, 1, 1], [], []>} : vector<40x40xf32>, vector<40x256xf32>, vector<40x256xf32> -> vector<40x256xf32>
    %c1_111 = arith.constant 1 : index
    %c0_112 = arith.constant 0 : index
    %c0_113 = arith.constant 0 : index
    %145 = vector.load %arg3[%c1_111, %c0_112, %c0_113] : memref<7x40x1xf32, #tpu.memory_space<vmem>>, vector<1x40x1xf32>
    %146 = vector.shape_cast %145 : vector<1x40x1xf32> to vector<40x1xf32>
    %147 = vector.broadcast %146 : vector<40x1xf32> to vector<40x256xf32>
    %148 = arith.addf %144, %147 : vector<40x256xf32>
    %149 = math.tanh %148 : vector<40x256xf32>
    %c2_114 = arith.constant 2 : index
    %c0_115 = arith.constant 0 : index
    %c0_116 = arith.constant 0 : index
    %150 = vector.load %arg2[%c2_114, %c0_115, %c0_116] : memref<7x40x40xf32, #tpu.memory_space<vmem>>, vector<1x40x40xf32>
    %151 = vector.shape_cast %150 : vector<1x40x40xf32> to vector<40x40xf32>
    %cst_117 = arith.constant dense<0.000000e+00> : vector<40x256xf32>
    %152 = tpu.matmul %151, %149, %cst_117 {dimension_numbers = #tpu.dot_dimension_numbers<[1], [0], [0], [1], [0, 0, 1, 1], [], []>} : vector<40x40xf32>, vector<40x256xf32>, vector<40x256xf32> -> vector<40x256xf32>
    %c2_118 = arith.constant 2 : index
    %c0_119 = arith.constant 0 : index
    %c0_120 = arith.constant 0 : index
    %153 = vector.load %arg3[%c2_118, %c0_119, %c0_120] : memref<7x40x1xf32, #tpu.memory_space<vmem>>, vector<1x40x1xf32>
    %154 = vector.shape_cast %153 : vector<1x40x1xf32> to vector<40x1xf32>
    %155 = vector.broadcast %154 : vector<40x1xf32> to vector<40x256xf32>
    %156 = arith.addf %152, %155 : vector<40x256xf32>
    %157 = math.tanh %156 : vector<40x256xf32>
    %c3_121 = arith.constant 3 : index
    %c0_122 = arith.constant 0 : index
    %c0_123 = arith.constant 0 : index
    %158 = vector.load %arg2[%c3_121, %c0_122, %c0_123] : memref<7x40x40xf32, #tpu.memory_space<vmem>>, vector<1x40x40xf32>
    %159 = vector.shape_cast %158 : vector<1x40x40xf32> to vector<40x40xf32>
    %cst_124 = arith.constant dense<0.000000e+00> : vector<40x256xf32>
    %160 = tpu.matmul %159, %157, %cst_124 {dimension_numbers = #tpu.dot_dimension_numbers<[1], [0], [0], [1], [0, 0, 1, 1], [], []>} : vector<40x40xf32>, vector<40x256xf32>, vector<40x256xf32> -> vector<40x256xf32>
    %c3_125 = arith.constant 3 : index
    %c0_126 = arith.constant 0 : index
    %c0_127 = arith.constant 0 : index
    %161 = vector.load %arg3[%c3_125, %c0_126, %c0_127] : memref<7x40x1xf32, #tpu.memory_space<vmem>>, vector<1x40x1xf32>
    %162 = vector.shape_cast %161 : vector<1x40x1xf32> to vector<40x1xf32>
    %163 = vector.broadcast %162 : vector<40x1xf32> to vector<40x256xf32>
    %164 = arith.addf %160, %163 : vector<40x256xf32>
    %165 = math.tanh %164 : vector<40x256xf32>
    %c4_128 = arith.constant 4 : index
    %c0_129 = arith.constant 0 : index
    %c0_130 = arith.constant 0 : index
    %166 = vector.load %arg2[%c4_128, %c0_129, %c0_130] : memref<7x40x40xf32, #tpu.memory_space<vmem>>, vector<1x40x40xf32>
    %167 = vector.shape_cast %166 : vector<1x40x40xf32> to vector<40x40xf32>
    %cst_131 = arith.constant dense<0.000000e+00> : vector<40x256xf32>
    %168 = tpu.matmul %167, %165, %cst_131 {dimension_numbers = #tpu.dot_dimension_numbers<[1], [0], [0], [1], [0, 0, 1, 1], [], []>} : vector<40x40xf32>, vector<40x256xf32>, vector<40x256xf32> -> vector<40x256xf32>
    %c4_132 = arith.constant 4 : index
    %c0_133 = arith.constant 0 : index
    %c0_134 = arith.constant 0 : index
    %169 = vector.load %arg3[%c4_132, %c0_133, %c0_134] : memref<7x40x1xf32, #tpu.memory_space<vmem>>, vector<1x40x1xf32>
    %170 = vector.shape_cast %169 : vector<1x40x1xf32> to vector<40x1xf32>
    %171 = vector.broadcast %170 : vector<40x1xf32> to vector<40x256xf32>
    %172 = arith.addf %168, %171 : vector<40x256xf32>
    %173 = math.tanh %172 : vector<40x256xf32>
    %c5_135 = arith.constant 5 : index
    %c0_136 = arith.constant 0 : index
    %c0_137 = arith.constant 0 : index
    %174 = vector.load %arg2[%c5_135, %c0_136, %c0_137] : memref<7x40x40xf32, #tpu.memory_space<vmem>>, vector<1x40x40xf32>
    %175 = vector.shape_cast %174 : vector<1x40x40xf32> to vector<40x40xf32>
    %cst_138 = arith.constant dense<0.000000e+00> : vector<40x256xf32>
    %176 = tpu.matmul %175, %173, %cst_138 {dimension_numbers = #tpu.dot_dimension_numbers<[1], [0], [0], [1], [0, 0, 1, 1], [], []>} : vector<40x40xf32>, vector<40x256xf32>, vector<40x256xf32> -> vector<40x256xf32>
    %c5_139 = arith.constant 5 : index
    %c0_140 = arith.constant 0 : index
    %c0_141 = arith.constant 0 : index
    %177 = vector.load %arg3[%c5_139, %c0_140, %c0_141] : memref<7x40x1xf32, #tpu.memory_space<vmem>>, vector<1x40x1xf32>
    %178 = vector.shape_cast %177 : vector<1x40x1xf32> to vector<40x1xf32>
    %179 = vector.broadcast %178 : vector<40x1xf32> to vector<40x256xf32>
    %180 = arith.addf %176, %179 : vector<40x256xf32>
    %181 = math.tanh %180 : vector<40x256xf32>
    %c6_142 = arith.constant 6 : index
    %c0_143 = arith.constant 0 : index
    %c0_144 = arith.constant 0 : index
    %182 = vector.load %arg2[%c6_142, %c0_143, %c0_144] : memref<7x40x40xf32, #tpu.memory_space<vmem>>, vector<1x40x40xf32>
    %183 = vector.shape_cast %182 : vector<1x40x40xf32> to vector<40x40xf32>
    %184 = vector.extract_strided_slice %183 {offsets = [0, 0], sizes = [1, 40], strides = [1, 1]} : vector<40x40xf32> to vector<1x40xf32>
    %c6_145 = arith.constant 6 : index
    %c0_146 = arith.constant 0 : index
    %c0_147 = arith.constant 0 : index
    %185 = vector.load %arg3[%c6_145, %c0_146, %c0_147] : memref<7x40x1xf32, #tpu.memory_space<vmem>>, vector<1x40x1xf32>
    %186 = vector.shape_cast %185 : vector<1x40x1xf32> to vector<40x1xf32>
    %187 = vector.extract_strided_slice %186 {offsets = [0, 0], sizes = [1, 1], strides = [1, 1]} : vector<40x1xf32> to vector<1x1xf32>
    %cst_148 = arith.constant dense<0.000000e+00> : vector<1x256xf32>
    %188 = tpu.matmul %184, %181, %cst_148 {dimension_numbers = #tpu.dot_dimension_numbers<[1], [0], [0], [1], [0, 0, 1, 1], [], []>} : vector<1x40xf32>, vector<40x256xf32>, vector<1x256xf32> -> vector<1x256xf32>
    %189 = vector.broadcast %187 : vector<1x1xf32> to vector<1x256xf32>
    %190 = arith.addf %188, %189 : vector<1x256xf32>
    %191 = arith.index_cast %c2_i32 : i32 to index
    %c0_149 = arith.constant 0 : index
    %c0_150 = arith.constant 0 : index
    %192 = vector.load %arg4[%191, %c0_149, %c0_150] : memref<4x1x256xf32, #tpu.memory_space<vmem>>, vector<1x1x256xf32>
    %193 = vector.shape_cast %192 : vector<1x1x256xf32> to vector<1x256xf32>
    %194 = vector.shape_cast %190 : vector<1x256xf32> to vector<1x1x256xf32>
    tpu.vector_store %arg4[%191, %c0_149, %c0_150], %194 {strides = array<i32>} : memref<4x1x256xf32, #tpu.memory_space<vmem>>, vector<1x1x256xf32>,
    %c3_i32 = arith.constant 3 : i32
    %195 = arith.index_cast %c3_i32 : i32 to index
    %c0_151 = arith.constant 0 : index
    %c0_152 = arith.constant 0 : index
    %196 = vector.load %arg1[%195, %c0_151, %c0_152] : memref<4x3x256xf32, #tpu.memory_space<vmem>>, vector<1x3x256xf32>
    %197 = vector.shape_cast %196 : vector<1x3x256xf32> to vector<3x256xf32>
    %c0_153 = arith.constant 0 : index
    %c0_154 = arith.constant 0 : index
    %c0_155 = arith.constant 0 : index
    %198 = vector.load %arg2[%c0_153, %c0_154, %c0_155] : memref<7x40x40xf32, #tpu.memory_space<vmem>>, vector<1x40x40xf32>
    %199 = vector.shape_cast %198 : vector<1x40x40xf32> to vector<40x40xf32>
    %200 = vector.extract_strided_slice %199 {offsets = [0, 0], sizes = [40, 3], strides = [1, 1]} : vector<40x40xf32> to vector<40x3xf32>
    %cst_156 = arith.constant dense<0.000000e+00> : vector<40x256xf32>
    %201 = tpu.matmul %200, %197, %cst_156 {dimension_numbers = #tpu.dot_dimension_numbers<[1], [0], [0], [1], [0, 0, 1, 1], [], []>} : vector<40x3xf32>, vector<3x256xf32>, vector<40x256xf32> -> vector<40x256xf32>
    %c0_157 = arith.constant 0 : index
    %c0_158 = arith.constant 0 : index
    %c0_159 = arith.constant 0 : index
    %202 = vector.load %arg3[%c0_157, %c0_158, %c0_159] : memref<7x40x1xf32, #tpu.memory_space<vmem>>, vector<1x40x1xf32>
    %203 = vector.shape_cast %202 : vector<1x40x1xf32> to vector<40x1xf32>
    %204 = vector.broadcast %203 : vector<40x1xf32> to vector<40x256xf32>
    %205 = arith.addf %201, %204 : vector<40x256xf32>
    %206 = math.tanh %205 : vector<40x256xf32>
    %c1_160 = arith.constant 1 : index
    %c0_161 = arith.constant 0 : index
    %c0_162 = arith.constant 0 : index
    %207 = vector.load %arg2[%c1_160, %c0_161, %c0_162] : memref<7x40x40xf32, #tpu.memory_space<vmem>>, vector<1x40x40xf32>
    %208 = vector.shape_cast %207 : vector<1x40x40xf32> to vector<40x40xf32>
    %cst_163 = arith.constant dense<0.000000e+00> : vector<40x256xf32>
    %209 = tpu.matmul %208, %206, %cst_163 {dimension_numbers = #tpu.dot_dimension_numbers<[1], [0], [0], [1], [0, 0, 1, 1], [], []>} : vector<40x40xf32>, vector<40x256xf32>, vector<40x256xf32> -> vector<40x256xf32>
    %c1_164 = arith.constant 1 : index
    %c0_165 = arith.constant 0 : index
    %c0_166 = arith.constant 0 : index
    %210 = vector.load %arg3[%c1_164, %c0_165, %c0_166] : memref<7x40x1xf32, #tpu.memory_space<vmem>>, vector<1x40x1xf32>
    %211 = vector.shape_cast %210 : vector<1x40x1xf32> to vector<40x1xf32>
    %212 = vector.broadcast %211 : vector<40x1xf32> to vector<40x256xf32>
    %213 = arith.addf %209, %212 : vector<40x256xf32>
    %214 = math.tanh %213 : vector<40x256xf32>
    %c2_167 = arith.constant 2 : index
    %c0_168 = arith.constant 0 : index
    %c0_169 = arith.constant 0 : index
    %215 = vector.load %arg2[%c2_167, %c0_168, %c0_169] : memref<7x40x40xf32, #tpu.memory_space<vmem>>, vector<1x40x40xf32>
    %216 = vector.shape_cast %215 : vector<1x40x40xf32> to vector<40x40xf32>
    %cst_170 = arith.constant dense<0.000000e+00> : vector<40x256xf32>
    %217 = tpu.matmul %216, %214, %cst_170 {dimension_numbers = #tpu.dot_dimension_numbers<[1], [0], [0], [1], [0, 0, 1, 1], [], []>} : vector<40x40xf32>, vector<40x256xf32>, vector<40x256xf32> -> vector<40x256xf32>
    %c2_171 = arith.constant 2 : index
    %c0_172 = arith.constant 0 : index
    %c0_173 = arith.constant 0 : index
    %218 = vector.load %arg3[%c2_171, %c0_172, %c0_173] : memref<7x40x1xf32, #tpu.memory_space<vmem>>, vector<1x40x1xf32>
    %219 = vector.shape_cast %218 : vector<1x40x1xf32> to vector<40x1xf32>
    %220 = vector.broadcast %219 : vector<40x1xf32> to vector<40x256xf32>
    %221 = arith.addf %217, %220 : vector<40x256xf32>
    %222 = math.tanh %221 : vector<40x256xf32>
    %c3_174 = arith.constant 3 : index
    %c0_175 = arith.constant 0 : index
    %c0_176 = arith.constant 0 : index
    %223 = vector.load %arg2[%c3_174, %c0_175, %c0_176] : memref<7x40x40xf32, #tpu.memory_space<vmem>>, vector<1x40x40xf32>
    %224 = vector.shape_cast %223 : vector<1x40x40xf32> to vector<40x40xf32>
    %cst_177 = arith.constant dense<0.000000e+00> : vector<40x256xf32>
    %225 = tpu.matmul %224, %222, %cst_177 {dimension_numbers = #tpu.dot_dimension_numbers<[1], [0], [0], [1], [0, 0, 1, 1], [], []>} : vector<40x40xf32>, vector<40x256xf32>, vector<40x256xf32> -> vector<40x256xf32>
    %c3_178 = arith.constant 3 : index
    %c0_179 = arith.constant 0 : index
    %c0_180 = arith.constant 0 : index
    %226 = vector.load %arg3[%c3_178, %c0_179, %c0_180] : memref<7x40x1xf32, #tpu.memory_space<vmem>>, vector<1x40x1xf32>
    %227 = vector.shape_cast %226 : vector<1x40x1xf32> to vector<40x1xf32>
    %228 = vector.broadcast %227 : vector<40x1xf32> to vector<40x256xf32>
    %229 = arith.addf %225, %228 : vector<40x256xf32>
    %230 = math.tanh %229 : vector<40x256xf32>
    %c4_181 = arith.constant 4 : index
    %c0_182 = arith.constant 0 : index
    %c0_183 = arith.constant 0 : index
    %231 = vector.load %arg2[%c4_181, %c0_182, %c0_183] : memref<7x40x40xf32, #tpu.memory_space<vmem>>, vector<1x40x40xf32>
    %232 = vector.shape_cast %231 : vector<1x40x40xf32> to vector<40x40xf32>
    %cst_184 = arith.constant dense<0.000000e+00> : vector<40x256xf32>
    %233 = tpu.matmul %232, %230, %cst_184 {dimension_numbers = #tpu.dot_dimension_numbers<[1], [0], [0], [1], [0, 0, 1, 1], [], []>} : vector<40x40xf32>, vector<40x256xf32>, vector<40x256xf32> -> vector<40x256xf32>
    %c4_185 = arith.constant 4 : index
    %c0_186 = arith.constant 0 : index
    %c0_187 = arith.constant 0 : index
    %234 = vector.load %arg3[%c4_185, %c0_186, %c0_187] : memref<7x40x1xf32, #tpu.memory_space<vmem>>, vector<1x40x1xf32>
    %235 = vector.shape_cast %234 : vector<1x40x1xf32> to vector<40x1xf32>
    %236 = vector.broadcast %235 : vector<40x1xf32> to vector<40x256xf32>
    %237 = arith.addf %233, %236 : vector<40x256xf32>
    %238 = math.tanh %237 : vector<40x256xf32>
    %c5_188 = arith.constant 5 : index
    %c0_189 = arith.constant 0 : index
    %c0_190 = arith.constant 0 : index
    %239 = vector.load %arg2[%c5_188, %c0_189, %c0_190] : memref<7x40x40xf32, #tpu.memory_space<vmem>>, vector<1x40x40xf32>
    %240 = vector.shape_cast %239 : vector<1x40x40xf32> to vector<40x40xf32>
    %cst_191 = arith.constant dense<0.000000e+00> : vector<40x256xf32>
    %241 = tpu.matmul %240, %238, %cst_191 {dimension_numbers = #tpu.dot_dimension_numbers<[1], [0], [0], [1], [0, 0, 1, 1], [], []>} : vector<40x40xf32>, vector<40x256xf32>, vector<40x256xf32> -> vector<40x256xf32>
    %c5_192 = arith.constant 5 : index
    %c0_193 = arith.constant 0 : index
    %c0_194 = arith.constant 0 : index
    %242 = vector.load %arg3[%c5_192, %c0_193, %c0_194] : memref<7x40x1xf32, #tpu.memory_space<vmem>>, vector<1x40x1xf32>
    %243 = vector.shape_cast %242 : vector<1x40x1xf32> to vector<40x1xf32>
    %244 = vector.broadcast %243 : vector<40x1xf32> to vector<40x256xf32>
    %245 = arith.addf %241, %244 : vector<40x256xf32>
    %246 = math.tanh %245 : vector<40x256xf32>
    %c6_195 = arith.constant 6 : index
    %c0_196 = arith.constant 0 : index
    %c0_197 = arith.constant 0 : index
    %247 = vector.load %arg2[%c6_195, %c0_196, %c0_197] : memref<7x40x40xf32, #tpu.memory_space<vmem>>, vector<1x40x40xf32>
    %248 = vector.shape_cast %247 : vector<1x40x40xf32> to vector<40x40xf32>
    %249 = vector.extract_strided_slice %248 {offsets = [0, 0], sizes = [1, 40], strides = [1, 1]} : vector<40x40xf32> to vector<1x40xf32>
    %c6_198 = arith.constant 6 : index
    %c0_199 = arith.constant 0 : index
    %c0_200 = arith.constant 0 : index
    %250 = vector.load %arg3[%c6_198, %c0_199, %c0_200] : memref<7x40x1xf32, #tpu.memory_space<vmem>>, vector<1x40x1xf32>
    %251 = vector.shape_cast %250 : vector<1x40x1xf32> to vector<40x1xf32>
    %252 = vector.extract_strided_slice %251 {offsets = [0, 0], sizes = [1, 1], strides = [1, 1]} : vector<40x1xf32> to vector<1x1xf32>
    %cst_201 = arith.constant dense<0.000000e+00> : vector<1x256xf32>
    %253 = tpu.matmul %249, %246, %cst_201 {dimension_numbers = #tpu.dot_dimension_numbers<[1], [0], [0], [1], [0, 0, 1, 1], [], []>} : vector<1x40xf32>, vector<40x256xf32>, vector<1x256xf32> -> vector<1x256xf32>
    %254 = vector.broadcast %252 : vector<1x1xf32> to vector<1x256xf32>
    %255 = arith.addf %253, %254 : vector<1x256xf32>
    %256 = arith.index_cast %c3_i32 : i32 to index
    %c0_202 = arith.constant 0 : index
    %c0_203 = arith.constant 0 : index
    %257 = vector.load %arg4[%256, %c0_202, %c0_203] : memref<4x1x256xf32, #tpu.memory_space<vmem>>, vector<1x1x256xf32>
    %258 = vector.shape_cast %257 : vector<1x1x256xf32> to vector<1x256xf32>
    %259 = vector.shape_cast %255 : vector<1x256xf32> to vector<1x1x256xf32>
    tpu.vector_store %arg4[%256, %c0_202, %c0_203], %259 {strides = array<i32>} : memref<4x1x256xf32, #tpu.memory_space<vmem>>, vector<1x1x256xf32>,
    %c4_i32 = arith.constant 4 : i32
    return
  }
  func.func @transform_0(%arg0: i32) -> (i32, i32, i32) {
    %c0_i32 = arith.constant 0 : i32
    %c0_i32_0 = arith.constant 0 : i32
    %c0_i32_1 = arith.constant 0 : i32
    return %arg0, %c0_i32, %c0_i32_0 : i32, i32, i32
  }
  func.func @transform_1(%arg0: i32) -> (i32, i32, i32) {
    %c0_i32 = arith.constant 0 : i32
    %c0_i32_0 = arith.constant 0 : i32
    %c0_i32_1 = arith.constant 0 : i32
    %c0_i32_2 = arith.constant 0 : i32
    return %c0_i32, %c0_i32_0, %c0_i32_1 : i32, i32, i32
  }
  func.func @transform_2(%arg0: i32) -> (i32, i32, i32) {
    %c0_i32 = arith.constant 0 : i32
    %c0_i32_0 = arith.constant 0 : i32
    %c0_i32_1 = arith.constant 0 : i32
    %c0_i32_2 = arith.constant 0 : i32
    return %c0_i32, %c0_i32_0, %c0_i32_1 : i32, i32, i32
  }
  func.func @transform_3(%arg0: i32) -> (i32, i32, i32) {
    %c0_i32 = arith.constant 0 : i32
    %c0_i32_0 = arith.constant 0 : i32
    %c0_i32_1 = arith.constant 0 : i32
    return %arg0, %c0_i32, %c0_i32_0 : i32, i32, i32
  }
}

</mosaic_0001>

<llo_original>
// kernel: mlp_forward.1
$region0: #{mlp_forward.1}
  #allocation0 [shape = 'u32[]', space=smem, size = 0x4, offset = 0x4, fixed_abs, tag = 'smem constant byte address 0x4 - core index']
  #allocation1 [shape = 'u32[144,128]{1,0:T(1,128)}', space=vmem, size = 0x12000, scoped, tag = 'internal scratch']
  %s0 = inlined_call_operand.vmem [shape: f32[8,3,256], index: 0, kind: input, shape index: {}]
  %s1 = inlined_call_operand.vmem [shape: f32[7,40,40], index: 1, kind: input, shape index: {}]
  %s2 = inlined_call_operand.vmem [shape: f32[7,40,1], index: 2, kind: input, shape index: {}]
  %s3 = inlined_call_operand.vmem [shape: f32[8,1,256], index: 3, kind: output, shape index: {}]
  %s4 = sld [smem:[#allocation0]]
  $region45: #{mlp_forward.1} parent=0
    _
  %s6 = ssub.s32 1, %s4
  %s7 = scalar_select 0, %s6, %s4
  loop: start=0, step=1, limit=4
  $region2: #{mlp_forward.1} parent=0 // loop_pre_header
    _
  $region3: #{mlp_forward.1} parent=0 // loop_header
    %s9 = sphi 0, %s13
    %p10 = scmp.ge.s32.totalorder %s9, 4
    %s19 = sphi 0, %s21
    %s22 = sphi 0, %s19
    %s23 = sphi 0, %s22
    %s39 = sphi 0, %s23
    %s43 = sphi 0, %s43
    %s45 = sphi 0, %s43
    %s46 = sphi 0, %s45
    %s60 = sphi 0, %s46
    %s64 = sphi 0, %s64
    %s66 = sphi 0, %s64
    %s67 = sphi 0, %s66
    %s81 = sphi 0, %s67
    %s87 = sphi 0, %s89
    %s90 = sphi 0, %s87
    %s91 = sphi 0, %s90
    %s107 = sphi 0, %s91
  $region4: #{mlp_forward.1} parent=0 // loop_header_branch
    %12 = sbr.rel (%p10) target = $region8
  $region5: #{mlp_forward.1} parent=0 // loop_body
    %s14 = ssub.s32 %s9, 1
    %s15 = ssub.s32 %s9, 2
    %s16 = sadd.s32 %s9, 1
    %s17 = ssub.s32 %s9, %s16
    %p18 = scmp.eq.s32.totalorder %s17, 0
    %s20 = sadd.s32 %s19, 1
    %s21 = scalar_select %p18, %s19, %s20
    %p24 = pneg %p18
    %p25 = scmp.eq.s32.totalorder %s9, 1
    %p26 = por %p24, %p25
    %p27 = scmp.ne.s32.totalorder %s19, %s22
    %p28 = scmp.eq.s32.totalorder %s9, 0
    %p29 = por %p27, %p28
    %p30 = scmp.ne.s32.totalorder %s19, %s22
    %p31 = scmp.eq.s32.totalorder %s14, 1
    %p32 = por %p30, %p31
    %p33 = scmp.ne.s32.totalorder %s22, %s23
    %p34 = scmp.eq.s32.totalorder %s14, 0
    %p35 = por %p33, %p34
    %p36 = scmp.ne.s32.totalorder %s22, %s23
    %p37 = scmp.eq.s32.totalorder %s15, 1
    %p38 = por %p36, %p37
    %p40 = scmp.ne.s32.totalorder %s23, %s39
    %p41 = scmp.eq.s32.totalorder %s15, 0
    %p42 = por %p40, %p41
    %s44 = sadd.s32 %s43, 1
    %p47 = scmp.eq.s32.totalorder %s9, 1
    %p48 = scmp.ne.s32.totalorder %s43, %s45
    %p49 = scmp.eq.s32.totalorder %s9, 0
    %p50 = por %p48, %p49
    %p51 = scmp.ne.s32.totalorder %s43, %s45
    %p52 = scmp.eq.s32.totalorder %s14, 1
    %p53 = por %p51, %p52
    %p54 = scmp.ne.s32.totalorder %s45, %s46
    %p55 = scmp.eq.s32.totalorder %s14, 0
    %p56 = por %p54, %p55
    %p57 = scmp.ne.s32.totalorder %s45, %s46
    %p58 = scmp.eq.s32.totalorder %s15, 1
    %p59 = por %p57, %p58
    %p61 = scmp.ne.s32.totalorder %s46, %s60
    %p62 = scmp.eq.s32.totalorder %s15, 0
    %p63 = por %p61, %p62
    %s65 = sadd.s32 %s64, 1
    %p68 = scmp.eq.s32.totalorder %s9, 1
    %p69 = scmp.ne.s32.totalorder %s64, %s66
    %p70 = scmp.eq.s32.totalorder %s9, 0
    %p71 = por %p69, %p70
    %p72 = scmp.ne.s32.totalorder %s64, %s66
    %p73 = scmp.eq.s32.totalorder %s14, 1
    %p74 = por %p72, %p73
    %p75 = scmp.ne.s32.totalorder %s66, %s67
    %p76 = scmp.eq.s32.totalorder %s14, 0
    %p77 = por %p75, %p76
    %p78 = scmp.ne.s32.totalorder %s66, %s67
    %p79 = scmp.eq.s32.totalorder %s15, 1
    %p80 = por %p78, %p79
    %p82 = scmp.ne.s32.totalorder %s67, %s81
    %p83 = scmp.eq.s32.totalorder %s15, 0
    %p84 = por %p82, %p83
    %s85 = ssub.s32 %s9, %s16
    %p86 = scmp.eq.s32.totalorder %s85, 0
    %s88 = sadd.s32 %s87, 1
    %s89 = scalar_select %p86, %s87, %s88
    %p92 = pneg %p86
    %p93 = scmp.eq.s32.totalorder %s9, 1
    %p94 = por %p92, %p93
    %p95 = scmp.ne.s32.totalorder %s87, %s90
    %p96 = scmp.eq.s32.totalorder %s9, 0
    %p97 = por %p95, %p96
    %p98 = scmp.ne.s32.totalorder %s87, %s90
    %p99 = scmp.eq.s32.totalorder %s14, 1
    %p100 = por %p98, %p99
    %p101 = scmp.ne.s32.totalorder %s90, %s91
    %p102 = scmp.eq.s32.totalorder %s14, 0
    %p103 = por %p101, %p102
    %p104 = scmp.ne.s32.totalorder %s90, %s91
    %p105 = scmp.eq.s32.totalorder %s15, 1
    %p106 = por %p104, %p105
    %p108 = scmp.ne.s32.totalorder %s91, %s107
    %p109 = scmp.eq.s32.totalorder %s15, 0
    %p110 = por %p108, %p109
    %p111 = scmp.le.s32.totalorder 1, %s9
    %p112 = scmp.lt.s32.totalorder %s9, 3
    %p113 = pnand %p111, %p112
    %p114 = pneg %p113
    // Predicated region
    $region9: #{mlp_forward.1} parent=5 // pred_check
      _
    $region10: #{mlp_forward.1} parent=5 // pred_check_branch
      %116 = sbr.rel (%p113) target = $region12
    $region11: #{mlp_forward.1} parent=5 // pred_region
      %s117 = ssub.s32 %s9, 1
      // Predicated region
      $region13: #{mlp_forward.1} parent=11 // pred_check
        %p118 = pneg %p56
      $region14: #{mlp_forward.1} parent=11 // pred_check_branch
        %120 = sbr.rel (%p118) target = $region16
      $region15: #{mlp_forward.1} parent=11 // pred_region
        _
      $region16: #{mlp_forward.1} parent=11 // pred_fallthru
        _
      // Predicated region
      $region17: #{mlp_forward.1} parent=11 // pred_check
        %p121 = pneg %p77
      $region18: #{mlp_forward.1} parent=11 // pred_check_branch
        %123 = sbr.rel (%p121) target = $region20
      $region19: #{mlp_forward.1} parent=11 // pred_region
        _
      $region20: #{mlp_forward.1} parent=11 // pred_fallthru
        _
    $region12: #{mlp_forward.1} parent=5 // pred_fallthru
      _
    %p124 = scmp.lt.s32.totalorder %s9, 2
    // Predicated region
    $region21: #{mlp_forward.1} parent=5 // pred_check
      %p125 = pneg %p124
    $region22: #{mlp_forward.1} parent=5 // pred_check_branch
      %127 = sbr.rel (%p125) target = $region24
    $region23: #{mlp_forward.1} parent=5 // pred_region
      // Predicated region
      $region25: #{mlp_forward.1} parent=23 // pred_check
        %p128 = pneg %p29
      $region26: #{mlp_forward.1} parent=23 // pred_check_branch
        %130 = sbr.rel (%p128) target = $region28
      $region27: #{mlp_forward.1} parent=23 // pred_region
        %s131 = smul.u32 4, %s9
        %p132 = scmp.lt.s32.totalorder %s131, 7
        %s133 = scalar_select %p132, %s131, 7
        %s134 = smul.addr %s133, 2
        %s135 = smul.addr %s134, 4
        %s136 = scalar_lea.vmem %s0, %s135
        %s137 = smul.u32 4, %s9
      $region28: #{mlp_forward.1} parent=23 // pred_fallthru
        _
    $region24: #{mlp_forward.1} parent=5 // pred_fallthru
      _
    %p138 = scmp.le.s32.totalorder 1, %s9
    %p139 = scmp.lt.s32.totalorder %s9, 3
    %p140 = pnand %p138, %p139
    %p141 = pneg %p140
    // Predicated region
    $region29: #{mlp_forward.1} parent=5 // pred_check
      _
    $region30: #{mlp_forward.1} parent=5 // pred_check_branch
      %143 = sbr.rel (%p140) target = $region32
    $region31: #{mlp_forward.1} parent=5 // pred_region
      %s144 = ssub.s32 %s9, 1
      %s145 = smul.u32 4, %s14
      %p146 = scmp.lt.s32.totalorder %s145, 7
      %s147 = scalar_select %p146, %s145, 7
      %s148 = smul.addr %s147, 2
      %s149 = smul.addr %s148, 4
      %s150 = scalar_lea.vmem %s0, %s149
      %p151 = pneg %p35
      %p152 = pneg %p32
      %p153 = pneg %p56
      %p154 = pneg %p53
      %p155 = pneg %p77
      %p156 = pneg %p74
      %p157 = pneg %p103
      %p158 = pneg %p100
      %s159 = smul.u32 4, %s14
      %p160 = scmp.lt.s32.totalorder %s159, 7
      %s161 = scalar_select %p160, %s159, 7
      %s162 = smul.addr %s161, 2
      %s163 = scalar_lea.vmem %s3, %s162
      %s164 = smul.u32 4, %s14
      %p165 = scmp.lt.s32.totalorder %s164, 7
      %s166 = scalar_select %p165, %s164, 7
      %s167 = smul.addr %s166, 2
      %s168 = smul.addr %s167, 4
      %s169 = scalar_lea.vmem %s0, %s168
      %s170 = smul.u32 4, %s14
      %s171 = smul.u32 4, %s14
      %p172 = scmp.lt.s32.totalorder %s171, 7
      %s173 = scalar_select %p172, %s171, 7
      %s174 = smul.addr %s173, 2
      %s175 = scalar_lea.vmem %s3, %s174
      %s176 = smul.u32 4, %s14
      %v177 = vld [vmem:[%s169] sm:$0x77]
      %v178 = vld [vmem:[%s1] sm:$0xff]
      %v179 = vld [vmem:[%s1 + $0x8] sm:$0xff]
      %v180 = vld [vmem:[%s1 + $0x10] sm:$0xff]
      %v181 = vld [vmem:[%s1 + $0x18] sm:$0xff]
      %v182 = vld [vmem:[%s1 + $0x20] sm:$0xff]
      %v183 = vld [vmem:[%s2] sm:$0xff]
      %v184 = vld [vmem:[%s2 + $0x8] sm:$0xff]
      %v185 = vld [vmem:[%s2 + $0x10] sm:$0xff]
      %v186 = vld [vmem:[%s2 + $0x18] sm:$0xff]
      %v187 = vld [vmem:[%s2 + $0x20] sm:$0xff]
      %189 = vset.pattern.permute.xlu0 0
      %190 = vperm.xlu0 %189, %v183
      %v191 = vpop.permute.xlu0 %190
      %194 = vset.pattern.permute.xlu0 0
      %195 = vperm.xlu0 %194, %v184
      %v196 = vpop.permute.xlu0 %195
      %199 = vset.pattern.permute.xlu0 0
      %200 = vperm.xlu0 %199, %v185
      %v201 = vpop.permute.xlu0 %200
      %204 = vset.pattern.permute.xlu0 0
      %205 = vperm.xlu0 %204, %v186
      %v206 = vpop.permute.xlu0 %205
      %209 = vset.pattern.permute.xlu0 0
      %210 = vperm.xlu0 %209, %v187
      %v211 = vpop.permute.xlu0 %210
      %v214 = vcombine.high %v177, %v177
      %vm215 = vcmask 23552
      %v217 = vsel %vm215, %v178, 0
      %v220 = vsel %vm215, %v179, 0
      %v223 = vsel %vm215, %v180, 0
      %v226 = vsel %vm215, %v181, 0
      %v229 = vsel %vm215, %v182, 0
      %vm231 = vcmask 1042432
      %v232 = vsel %vm231, %v177, 0
      %v234 = vsel %vm231, %v214, 0
      %236 = vmatprep.subr.mxu0 0.0
      %237 = vmatpush1.msra.mxu0 0.0
      %238 = vmatprep.subr.mxu0 0.0
      %239 = vmatpush1.msra.mxu0 0.0
      %240 = vmatprep.subr.mxu0 0.0
      %241 = vmatpush1.msra.mxu0 0.0
      %242 = vmatprep.subr.mxu0 0.0
      %243 = vmatpush1.msra.mxu0 0.0
      %244 = vmatprep.subr.mxu0 0.0
      %245 = vmatpush1.msra.mxu0 0.0
      %246 = vmatprep.subr.mxu0 0.0
      %247 = vmatpush1.msra.mxu0 0.0
      %248 = vmatprep.subr.mxu0 0.0
      %249 = vmatpush1.msra.mxu0 0.0
      %250 = vmatprep.subr.mxu0 0.0
      %251 = vmatpush1.msra.mxu0 0.0
      %252 = vmatprep.subr.mxu0 0.0
      %253 = vmatpush1.msra.mxu0 0.0
      %254 = vmatprep.subr.mxu0 0.0
      %255 = vmatpush1.msra.mxu0 0.0
      %256 = vmatprep.subr.mxu0 0.0
      %257 = vmatpush1.msra.mxu0 0.0
      %258 = vmatprep.subr.mxu0 0.0
      %259 = vmatpush1.msra.mxu0 0.0
      %260 = vmatprep.subr.mxu0 0.0
      %261 = vmatpush1.msra.mxu0 0.0
      %262 = vmatprep.subr.mxu0 0.0
      %263 = vmatpush1.msra.mxu0 0.0
      %264 = vmatprep.subr.mxu0 0.0
      %265 = vmatpush1.msra.mxu0 0.0
      %266 = vmatprep.subr.mxu0 %v234
      %267 = vmatpush1.msra.mxu0 %v232
      %268 = vmatprep.subr.mxu0 0.0
      %269 = vmatpush2.msra.mxu0 0.0
      %270 = vmatprep.subr.mxu0 0.0
      %271 = vmatpush2.msra.mxu0 0.0
      %272 = vmatprep.subr.mxu0 0.0
      %273 = vmatpush2.msra.mxu0 0.0
      %274 = vmatprep.subr.mxu0 0.0
      %275 = vmatpush2.msra.mxu0 0.0
      %276 = vmatprep.subr.mxu0 0.0
      %277 = vmatpush2.msra.mxu0 0.0
      %278 = vmatprep.subr.mxu0 0.0
      %279 = vmatpush2.msra.mxu0 0.0
      %280 = vmatprep.subr.mxu0 0.0
      %281 = vmatpush2.msra.mxu0 0.0
      %282 = vmatprep.subr.mxu0 0.0
      %283 = vmatpush2.msra.mxu0 0.0
      %284 = vmatprep.subr.mxu0 0.0
      %285 = vmatpush2.msra.mxu0 0.0
      %286 = vmatprep.subr.mxu0 0.0
      %287 = vmatpush2.msra.mxu0 0.0
      %288 = vmatprep.subr.mxu0 0.0
      %289 = vmatpush2.msra.mxu0 0.0
      %290 = vmatprep.subr.mxu0 0.0
      %291 = vmatpush2.msra.mxu0 0.0
      %292 = vmatprep.subr.mxu0 0.0
      %293 = vmatpush2.msra.mxu0 0.0
      %294 = vmatprep.subr.mxu0 0.0
      %295 = vmatpush2.msra.mxu0 0.0
      %296 = vmatprep.subr.mxu0 0.0
      %297 = vmatpush2.msra.mxu0 0.0
      %298 = vmatprep.subr.mxu0 0.0
      %299 = vmatpush2.msra.mxu0 0.0
      %300 = vmatprep.mubr.f32.mxu0 0.0
      %301 = vmatmul.mubr.f32.gmra.mxu0 %v217
      %v302 = vpop.f32.mrf.mxu0
      %v303 = vadd.f32 %v191, %v302
      %v304 = vpop.f32.mrf.mxu0
      %v305 = vadd.f32 %v191, %v304
      %306 = vmatprep.mubr.f32.mxu0 0.0
      %307 = vmatmul.mubr.f32.gmra.mxu0 %v220
      %v308 = vpop.f32.mrf.mxu0
      %v309 = vadd.f32 %v196, %v308
      %v310 = vpop.f32.mrf.mxu0
      %v311 = vadd.f32 %v196, %v310
      %312 = vmatprep.mubr.f32.mxu0 0.0
      %313 = vmatmul.mubr.f32.gmra.mxu0 %v223
      %v314 = vpop.f32.mrf.mxu0
      %v315 = vadd.f32 %v201, %v314
      %v316 = vpop.f32.mrf.mxu0
      %v317 = vadd.f32 %v201, %v316
      %318 = vmatprep.mubr.f32.mxu0 0.0
      %319 = vmatmul.mubr.f32.gmra.mxu0 %v226
      %v320 = vpop.f32.mrf.mxu0
      %v321 = vadd.f32 %v206, %v320
      %v322 = vpop.f32.mrf.mxu0
      %v323 = vadd.f32 %v206, %v322
      %324 = vmatprep.mubr.f32.mxu0 0.0
      %325 = vmatmul.mubr.f32.gmra.mxu0 %v229
      %v326 = vpop.f32.mrf.mxu0
      %v327 = vadd.f32 %v211, %v326
      %v328 = vpop.f32.mrf.mxu0
      %v329 = vadd.f32 %v211, %v328
      %330 = vdwg.mxu0
      %v331 = vtanh.pop %v303
      %v332 = vtanh.pop %v305
      %v333 = vtanh.pop %v309
      %v334 = vtanh.pop %v311
      %v335 = vtanh.pop %v315
      %v336 = vtanh.pop %v317
      %v337 = vtanh.pop %v321
      %v338 = vtanh.pop %v323
      %v339 = vtanh.pop %v327
      %v340 = vtanh.pop %v329
      %s341 = scalar_lea.vmem %s1, 40
      %v342 = vld [vmem:[%s341] sm:$0xff]
      %v343 = vld [vmem:[%s341 + $0x8] sm:$0xff]
      %v344 = vld [vmem:[%s341 + $0x10] sm:$0xff]
      %v345 = vld [vmem:[%s341 + $0x18] sm:$0xff]
      %v346 = vld [vmem:[%s341 + $0x20] sm:$0xff]
      %s347 = scalar_lea.vmem %s2, 40
      %v348 = vld [vmem:[%s347] sm:$0xff]
      %v349 = vld [vmem:[%s347 + $0x8] sm:$0xff]
      %v350 = vld [vmem:[%s347 + $0x10] sm:$0xff]
      %v351 = vld [vmem:[%s347 + $0x18] sm:$0xff]
      %v352 = vld [vmem:[%s347 + $0x20] sm:$0xff]
      %354 = vset.pattern.permute.xlu0 0
      %355 = vperm.xlu0 %354, %v348
      %v356 = vpop.permute.xlu0 %355
      %359 = vset.pattern.permute.xlu0 0
      %360 = vperm.xlu0 %359, %v349
      %v361 = vpop.permute.xlu0 %360
      %364 = vset.pattern.permute.xlu0 0
      %365 = vperm.xlu0 %364, %v350
      %v366 = vpop.permute.xlu0 %365
      %369 = vset.pattern.permute.xlu0 0
      %370 = vperm.xlu0 %369, %v351
      %v371 = vpop.permute.xlu0 %370
      %374 = vset.pattern.permute.xlu0 0
      %375 = vperm.xlu0 %374, %v352
      %v376 = vpop.permute.xlu0 %375
      %vm378 = vcmask 326656
      %v380 = vsel %vm378, %v342, 0
      %v383 = vsel %vm378, %v343, 0
      %v386 = vsel %vm378, %v344, 0
      %v389 = vsel %vm378, %v345, 0
      %v392 = vsel %vm378, %v346, 0
      %394 = vmatprep.subr.mxu0 0.0
      %395 = vmatpush1.msra.mxu0 0.0
      %396 = vmatprep.subr.mxu0 0.0
      %397 = vmatpush1.msra.mxu0 0.0
      %398 = vmatprep.subr.mxu0 0.0
      %399 = vmatpush1.msra.mxu0 0.0
      %400 = vmatprep.subr.mxu0 0.0
      %401 = vmatpush1.msra.mxu0 0.0
      %402 = vmatprep.subr.mxu0 0.0
      %403 = vmatpush1.msra.mxu0 0.0
      %404 = vmatprep.subr.mxu0 0.0
      %405 = vmatpush1.msra.mxu0 0.0
      %406 = vmatprep.subr.mxu0 0.0
      %407 = vmatpush1.msra.mxu0 0.0
      %408 = vmatprep.subr.mxu0 0.0
      %409 = vmatpush1.msra.mxu0 0.0
      %410 = vmatprep.subr.mxu0 0.0
      %411 = vmatpush1.msra.mxu0 0.0
      %412 = vmatprep.subr.mxu0 0.0
      %413 = vmatpush1.msra.mxu0 0.0
      %414 = vmatprep.subr.mxu0 0.0
      %415 = vmatpush1.msra.mxu0 0.0
      %416 = vmatprep.subr.mxu0 %v340
      %417 = vmatpush1.msra.mxu0 %v339
      %418 = vmatprep.subr.mxu0 %v338
      %419 = vmatpush1.msra.mxu0 %v337
      %420 = vmatprep.subr.mxu0 %v336
      %421 = vmatpush1.msra.mxu0 %v335
      %422 = vmatprep.subr.mxu0 %v334
      %423 = vmatpush1.msra.mxu0 %v333
      %424 = vmatprep.subr.mxu0 %v332
      %425 = vmatpush1.msra.mxu0 %v331
      %426 = vmatprep.subr.mxu0 0.0
      %427 = vmatpush2.msra.mxu0 0.0
      %428 = vmatprep.subr.mxu0 0.0
      %429 = vmatpush2.msra.mxu0 0.0
      %430 = vmatprep.subr.mxu0 0.0
      %431 = vmatpush2.msra.mxu0 0.0
      %432 = vmatprep.subr.mxu0 0.0
      %433 = vmatpush2.msra.mxu0 0.0
      %434 = vmatprep.subr.mxu0 0.0
      %435 = vmatpush2.msra.mxu0 0.0
      %436 = vmatprep.subr.mxu0 0.0
      %437 = vmatpush2.msra.mxu0 0.0
      %438 = vmatprep.subr.mxu0 0.0
      %439 = vmatpush2.msra.mxu0 0.0
      %440 = vmatprep.subr.mxu0 0.0
      %441 = vmatpush2.msra.mxu0 0.0
      %442 = vmatprep.subr.mxu0 0.0
      %443 = vmatpush2.msra.mxu0 0.0
      %444 = vmatprep.subr.mxu0 0.0
      %445 = vmatpush2.msra.mxu0 0.0
      %446 = vmatprep.subr.mxu0 0.0
      %447 = vmatpush2.msra.mxu0 0.0
      %448 = vmatprep.subr.mxu0 0.0
      %449 = vmatpush2.msra.mxu0 0.0
      %450 = vmatprep.subr.mxu0 0.0
      %451 = vmatpush2.msra.mxu0 0.0
      %452 = vmatprep.subr.mxu0 0.0
      %453 = vmatpush2.msra.mxu0 0.0
      %454 = vmatprep.subr.mxu0 0.0
      %455 = vmatpush2.msra.mxu0 0.0
      %456 = vmatprep.subr.mxu0 0.0
      %457 = vmatpush2.msra.mxu0 0.0
      %458 = vmatprep.mubr.f32.mxu0 0.0
      %459 = vmatmul.mubr.f32.gmra.mxu0 %v380
      %v460 = vpop.f32.mrf.mxu0
      %v461 = vadd.f32 %v356, %v460
      %v462 = vpop.f32.mrf.mxu0
      %v463 = vadd.f32 %v356, %v462
      %464 = vmatprep.mubr.f32.mxu0 0.0
      %465 = vmatmul.mubr.f32.gmra.mxu0 %v383
      %v466 = vpop.f32.mrf.mxu0
      %v467 = vadd.f32 %v361, %v466
      %v468 = vpop.f32.mrf.mxu0
      %v469 = vadd.f32 %v361, %v468
      %470 = vmatprep.mubr.f32.mxu0 0.0
      %471 = vmatmul.mubr.f32.gmra.mxu0 %v386
      %v472 = vpop.f32.mrf.mxu0
      %v473 = vadd.f32 %v366, %v472
      %v474 = vpop.f32.mrf.mxu0
      %v475 = vadd.f32 %v366, %v474
      %476 = vmatprep.mubr.f32.mxu0 0.0
      %477 = vmatmul.mubr.f32.gmra.mxu0 %v389
      %v478 = vpop.f32.mrf.mxu0
      %v479 = vadd.f32 %v371, %v478
      %v480 = vpop.f32.mrf.mxu0
      %v481 = vadd.f32 %v371, %v480
      %482 = vmatprep.mubr.f32.mxu0 0.0
      %483 = vmatmul.mubr.f32.gmra.mxu0 %v392
      %v484 = vpop.f32.mrf.mxu0
      %v485 = vadd.f32 %v376, %v484
      %v486 = vpop.f32.mrf.mxu0
      %v487 = vadd.f32 %v376, %v486
      %488 = vdwg.mxu0
      %v489 = vtanh.pop %v461
      %v490 = vtanh.pop %v463
      %v491 = vtanh.pop %v467
      %v492 = vtanh.pop %v469
      %v493 = vtanh.pop %v473
      %v494 = vtanh.pop %v475
      %v495 = vtanh.pop %v479
      %v496 = vtanh.pop %v481
      %v497 = vtanh.pop %v485
      %v498 = vtanh.pop %v487
      %s499 = scalar_lea.vmem %s1, 80
      %v500 = vld [vmem:[%s499] sm:$0xff]
      %v501 = vld [vmem:[%s499 + $0x8] sm:$0xff]
      %v502 = vld [vmem:[%s499 + $0x10] sm:$0xff]
      %v503 = vld [vmem:[%s499 + $0x18] sm:$0xff]
      %v504 = vld [vmem:[%s499 + $0x20] sm:$0xff]
      %s505 = scalar_lea.vmem %s2, 80
      %v506 = vld [vmem:[%s505] sm:$0xff]
      %v507 = vld [vmem:[%s505 + $0x8] sm:$0xff]
      %v508 = vld [vmem:[%s505 + $0x10] sm:$0xff]
      %v509 = vld [vmem:[%s505 + $0x18] sm:$0xff]
      %v510 = vld [vmem:[%s505 + $0x20] sm:$0xff]
      %512 = vset.pattern.permute.xlu0 0
      %513 = vperm.xlu0 %512, %v506
      %v514 = vpop.permute.xlu0 %513
      %517 = vset.pattern.permute.xlu0 0
      %518 = vperm.xlu0 %517, %v507
      %v519 = vpop.permute.xlu0 %518
      %522 = vset.pattern.permute.xlu0 0
      %523 = vperm.xlu0 %522, %v508
      %v524 = vpop.permute.xlu0 %523
      %527 = vset.pattern.permute.xlu0 0
      %528 = vperm.xlu0 %527, %v509
      %v529 = vpop.permute.xlu0 %528
      %532 = vset.pattern.permute.xlu0 0
      %533 = vperm.xlu0 %532, %v510
      %v534 = vpop.permute.xlu0 %533
      %v537 = vsel %vm378, %v500, 0
      %v540 = vsel %vm378, %v501, 0
      %v543 = vsel %vm378, %v502, 0
      %v546 = vsel %vm378, %v503, 0
      %v549 = vsel %vm378, %v504, 0
      %551 = vmatprep.subr.mxu0 0.0
      %552 = vmatpush1.msra.mxu0 0.0
      %553 = vmatprep.subr.mxu0 0.0
      %554 = vmatpush1.msra.mxu0 0.0
      %555 = vmatprep.subr.mxu0 0.0
      %556 = vmatpush1.msra.mxu0 0.0
      %557 = vmatprep.subr.mxu0 0.0
      %558 = vmatpush1.msra.mxu0 0.0
      %559 = vmatprep.subr.mxu0 0.0
      %560 = vmatpush1.msra.mxu0 0.0
      %561 = vmatprep.subr.mxu0 0.0
      %562 = vmatpush1.msra.mxu0 0.0
      %563 = vmatprep.subr.mxu0 0.0
      %564 = vmatpush1.msra.mxu0 0.0
      %565 = vmatprep.subr.mxu0 0.0
      %566 = vmatpush1.msra.mxu0 0.0
      %567 = vmatprep.subr.mxu0 0.0
      %568 = vmatpush1.msra.mxu0 0.0
      %569 = vmatprep.subr.mxu0 0.0
      %570 = vmatpush1.msra.mxu0 0.0
      %571 = vmatprep.subr.mxu0 0.0
      %572 = vmatpush1.msra.mxu0 0.0
      %573 = vmatprep.subr.mxu0 %v498
      %574 = vmatpush1.msra.mxu0 %v497
      %575 = vmatprep.subr.mxu0 %v496
      %576 = vmatpush1.msra.mxu0 %v495
      %577 = vmatprep.subr.mxu0 %v494
      %578 = vmatpush1.msra.mxu0 %v493
      %579 = vmatprep.subr.mxu0 %v492
      %580 = vmatpush1.msra.mxu0 %v491
      %581 = vmatprep.subr.mxu0 %v490
      %582 = vmatpush1.msra.mxu0 %v489
      %583 = vmatprep.subr.mxu0 0.0
      %584 = vmatpush2.msra.mxu0 0.0
      %585 = vmatprep.subr.mxu0 0.0
      %586 = vmatpush2.msra.mxu0 0.0
      %587 = vmatprep.subr.mxu0 0.0
      %588 = vmatpush2.msra.mxu0 0.0
      %589 = vmatprep.subr.mxu0 0.0
      %590 = vmatpush2.msra.mxu0 0.0
      %591 = vmatprep.subr.mxu0 0.0
      %592 = vmatpush2.msra.mxu0 0.0
      %593 = vmatprep.subr.mxu0 0.0
      %594 = vmatpush2.msra.mxu0 0.0
      %595 = vmatprep.subr.mxu0 0.0
      %596 = vmatpush2.msra.mxu0 0.0
      %597 = vmatprep.subr.mxu0 0.0
      %598 = vmatpush2.msra.mxu0 0.0
      %599 = vmatprep.subr.mxu0 0.0
      %600 = vmatpush2.msra.mxu0 0.0
      %601 = vmatprep.subr.mxu0 0.0
      %602 = vmatpush2.msra.mxu0 0.0
      %603 = vmatprep.subr.mxu0 0.0
      %604 = vmatpush2.msra.mxu0 0.0
      %605 = vmatprep.subr.mxu0 0.0
      %606 = vmatpush2.msra.mxu0 0.0
      %607 = vmatprep.subr.mxu0 0.0
      %608 = vmatpush2.msra.mxu0 0.0
      %609 = vmatprep.subr.mxu0 0.0
      %610 = vmatpush2.msra.mxu0 0.0
      %611 = vmatprep.subr.mxu0 0.0
      %612 = vmatpush2.msra.mxu0 0.0
      %613 = vmatprep.subr.mxu0 0.0
      %614 = vmatpush2.msra.mxu0 0.0
      %615 = vmatprep.mubr.f32.mxu0 0.0
      %616 = vmatmul.mubr.f32.gmra.mxu0 %v537
      %v617 = vpop.f32.mrf.mxu0
      %v618 = vadd.f32 %v514, %v617
      %v619 = vpop.f32.mrf.mxu0
      %v620 = vadd.f32 %v514, %v619
      %621 = vmatprep.mubr.f32.mxu0 0.0
      %622 = vmatmul.mubr.f32.gmra.mxu0 %v540
      %v623 = vpop.f32.mrf.mxu0
      %v624 = vadd.f32 %v519, %v623
      %v625 = vpop.f32.mrf.mxu0
      %v626 = vadd.f32 %v519, %v625
      %627 = vmatprep.mubr.f32.mxu0 0.0
      %628 = vmatmul.mubr.f32.gmra.mxu0 %v543
      %v629 = vpop.f32.mrf.mxu0
      %v630 = vadd.f32 %v524, %v629
      %v631 = vpop.f32.mrf.mxu0
      %v632 = vadd.f32 %v524, %v631
      %633 = vmatprep.mubr.f32.mxu0 0.0
      %634 = vmatmul.mubr.f32.gmra.mxu0 %v546
      %v635 = vpop.f32.mrf.mxu0
      %v636 = vadd.f32 %v529, %v635
      %v637 = vpop.f32.mrf.mxu0
      %v638 = vadd.f32 %v529, %v637
      %639 = vmatprep.mubr.f32.mxu0 0.0
      %640 = vmatmul.mubr.f32.gmra.mxu0 %v549
      %v641 = vpop.f32.mrf.mxu0
      %v642 = vadd.f32 %v534, %v641
      %v643 = vpop.f32.mrf.mxu0
      %v644 = vadd.f32 %v534, %v643
      %645 = vdwg.mxu0
      %v646 = vtanh.pop %v618
      %v647 = vtanh.pop %v620
      %v648 = vtanh.pop %v624
      %v649 = vtanh.pop %v626
      %v650 = vtanh.pop %v630
      %v651 = vtanh.pop %v632
      %v652 = vtanh.pop %v636
      %v653 = vtanh.pop %v638
      %v654 = vtanh.pop %v642
      %v655 = vtanh.pop %v644
      %s656 = scalar_lea.vmem %s1, 120
      %v657 = vld [vmem:[%s656] sm:$0xff]
      %v658 = vld [vmem:[%s656 + $0x8] sm:$0xff]
      %v659 = vld [vmem:[%s656 + $0x10] sm:$0xff]
      %v660 = vld [vmem:[%s656 + $0x18] sm:$0xff]
      %v661 = vld [vmem:[%s656 + $0x20] sm:$0xff]
      %s662 = scalar_lea.vmem %s2, 120
      %v663 = vld [vmem:[%s662] sm:$0xff]
      %v664 = vld [vmem:[%s662 + $0x8] sm:$0xff]
      %v665 = vld [vmem:[%s662 + $0x10] sm:$0xff]
      %v666 = vld [vmem:[%s662 + $0x18] sm:$0xff]
      %v667 = vld [vmem:[%s662 + $0x20] sm:$0xff]
      %669 = vset.pattern.permute.xlu0 0
      %670 = vperm.xlu0 %669, %v663
      %v671 = vpop.permute.xlu0 %670
      %674 = vset.pattern.permute.xlu0 0
      %675 = vperm.xlu0 %674, %v664
      %v676 = vpop.permute.xlu0 %675
      %679 = vset.pattern.permute.xlu0 0
      %680 = vperm.xlu0 %679, %v665
      %v681 = vpop.permute.xlu0 %680
      %684 = vset.pattern.permute.xlu0 0
      %685 = vperm.xlu0 %684, %v666
      %v686 = vpop.permute.xlu0 %685
      %689 = vset.pattern.permute.xlu0 0
      %690 = vperm.xlu0 %689, %v667
      %v691 = vpop.permute.xlu0 %690
      %v694 = vsel %vm378, %v657, 0
      %v697 = vsel %vm378, %v658, 0
      %v700 = vsel %vm378, %v659, 0
      %v703 = vsel %vm378, %v660, 0
      %v706 = vsel %vm378, %v661, 0
      %708 = vmatprep.subr.mxu0 0.0
      %709 = vmatpush1.msra.mxu0 0.0
      %710 = vmatprep.subr.mxu0 0.0
      %711 = vmatpush1.msra.mxu0 0.0
      %712 = vmatprep.subr.mxu0 0.0
      %713 = vmatpush1.msra.mxu0 0.0
      %714 = vmatprep.subr.mxu0 0.0
      %715 = vmatpush1.msra.mxu0 0.0
      %716 = vmatprep.subr.mxu0 0.0
      %717 = vmatpush1.msra.mxu0 0.0
      %718 = vmatprep.subr.mxu0 0.0
      %719 = vmatpush1.msra.mxu0 0.0
      %720 = vmatprep.subr.mxu0 0.0
      %721 = vmatpush1.msra.mxu0 0.0
      %722 = vmatprep.subr.mxu0 0.0
      %723 = vmatpush1.msra.mxu0 0.0
      %724 = vmatprep.subr.mxu0 0.0
      %725 = vmatpush1.msra.mxu0 0.0
      %726 = vmatprep.subr.mxu0 0.0
      %727 = vmatpush1.msra.mxu0 0.0
      %728 = vmatprep.subr.mxu0 0.0
      %729 = vmatpush1.msra.mxu0 0.0
      %730 = vmatprep.subr.mxu0 %v655
      %731 = vmatpush1.msra.mxu0 %v654
      %732 = vmatprep.subr.mxu0 %v653
      %733 = vmatpush1.msra.mxu0 %v652
      %734 = vmatprep.subr.mxu0 %v651
      %735 = vmatpush1.msra.mxu0 %v650
      %736 = vmatprep.subr.mxu0 %v649
      %737 = vmatpush1.msra.mxu0 %v648
      %738 = vmatprep.subr.mxu0 %v647
      %739 = vmatpush1.msra.mxu0 %v646
      %740 = vmatprep.subr.mxu0 0.0
      %741 = vmatpush2.msra.mxu0 0.0
      %742 = vmatprep.subr.mxu0 0.0
      %743 = vmatpush2.msra.mxu0 0.0
      %744 = vmatprep.subr.mxu0 0.0
      %745 = vmatpush2.msra.mxu0 0.0
      %746 = vmatprep.subr.mxu0 0.0
      %747 = vmatpush2.msra.mxu0 0.0
      %748 = vmatprep.subr.mxu0 0.0
      %749 = vmatpush2.msra.mxu0 0.0
      %750 = vmatprep.subr.mxu0 0.0
      %751 = vmatpush2.msra.mxu0 0.0
      %752 = vmatprep.subr.mxu0 0.0
      %753 = vmatpush2.msra.mxu0 0.0
      %754 = vmatprep.subr.mxu0 0.0
      %755 = vmatpush2.msra.mxu0 0.0
      %756 = vmatprep.subr.mxu0 0.0
      %757 = vmatpush2.msra.mxu0 0.0
      %758 = vmatprep.subr.mxu0 0.0
      %759 = vmatpush2.msra.mxu0 0.0
      %760 = vmatprep.subr.mxu0 0.0
      %761 = vmatpush2.msra.mxu0 0.0
      %762 = vmatprep.subr.mxu0 0.0
      %763 = vmatpush2.msra.mxu0 0.0
      %764 = vmatprep.subr.mxu0 0.0
      %765 = vmatpush2.msra.mxu0 0.0
      %766 = vmatprep.subr.mxu0 0.0
      %767 = vmatpush2.msra.mxu0 0.0
      %768 = vmatprep.subr.mxu0 0.0
      %769 = vmatpush2.msra.mxu0 0.0
      %770 = vmatprep.subr.mxu0 0.0
      %771 = vmatpush2.msra.mxu0 0.0
      %772 = vmatprep.mubr.f32.mxu0 0.0
      %773 = vmatmul.mubr.f32.gmra.mxu0 %v694
      %v774 = vpop.f32.mrf.mxu0
      %v775 = vadd.f32 %v671, %v774
      %v776 = vpop.f32.mrf.mxu0
      %v777 = vadd.f32 %v671, %v776
      %778 = vmatprep.mubr.f32.mxu0 0.0
      %779 = vmatmul.mubr.f32.gmra.mxu0 %v697
      %v780 = vpop.f32.mrf.mxu0
      %v781 = vadd.f32 %v676, %v780
      %v782 = vpop.f32.mrf.mxu0
      %v783 = vadd.f32 %v676, %v782
      %784 = vmatprep.mubr.f32.mxu0 0.0
      %785 = vmatmul.mubr.f32.gmra.mxu0 %v700
      %v786 = vpop.f32.mrf.mxu0
      %v787 = vadd.f32 %v681, %v786
      %v788 = vpop.f32.mrf.mxu0
      %v789 = vadd.f32 %v681, %v788
      %790 = vmatprep.mubr.f32.mxu0 0.0
      %791 = vmatmul.mubr.f32.gmra.mxu0 %v703
      %v792 = vpop.f32.mrf.mxu0
      %v793 = vadd.f32 %v686, %v792
      %v794 = vpop.f32.mrf.mxu0
      %v795 = vadd.f32 %v686, %v794
      %796 = vmatprep.mubr.f32.mxu0 0.0
      %797 = vmatmul.mubr.f32.gmra.mxu0 %v706
      %v798 = vpop.f32.mrf.mxu0
      %v799 = vadd.f32 %v691, %v798
      %v800 = vpop.f32.mrf.mxu0
      %v801 = vadd.f32 %v691, %v800
      %802 = vdwg.mxu0
      %v803 = vtanh.pop %v775
      %v804 = vtanh.pop %v777
      %v805 = vtanh.pop %v781
      %v806 = vtanh.pop %v783
      %v807 = vtanh.pop %v787
      %v808 = vtanh.pop %v789
      %v809 = vtanh.pop %v793
      %v810 = vtanh.pop %v795
      %v811 = vtanh.pop %v799
      %v812 = vtanh.pop %v801
      %s813 = scalar_lea.vmem %s1, 160
      %v814 = vld [vmem:[%s813] sm:$0xff]
      %v815 = vld [vmem:[%s813 + $0x8] sm:$0xff]
      %v816 = vld [vmem:[%s813 + $0x10] sm:$0xff]
      %v817 = vld [vmem:[%s813 + $0x18] sm:$0xff]
      %v818 = vld [vmem:[%s813 + $0x20] sm:$0xff]
      %s819 = scalar_lea.vmem %s2, 160
      %v820 = vld [vmem:[%s819] sm:$0xff]
      %v821 = vld [vmem:[%s819 + $0x8] sm:$0xff]
      %v822 = vld [vmem:[%s819 + $0x10] sm:$0xff]
      %v823 = vld [vmem:[%s819 + $0x18] sm:$0xff]
      %v824 = vld [vmem:[%s819 + $0x20] sm:$0xff]
      %826 = vset.pattern.permute.xlu0 0
      %827 = vperm.xlu0 %826, %v820
      %v828 = vpop.permute.xlu0 %827
      %831 = vset.pattern.permute.xlu0 0
      %832 = vperm.xlu0 %831, %v821
      %v833 = vpop.permute.xlu0 %832
      %836 = vset.pattern.permute.xlu0 0
      %837 = vperm.xlu0 %836, %v822
      %v838 = vpop.permute.xlu0 %837
      %841 = vset.pattern.permute.xlu0 0
      %842 = vperm.xlu0 %841, %v823
      %v843 = vpop.permute.xlu0 %842
      %846 = vset.pattern.permute.xlu0 0
      %847 = vperm.xlu0 %846, %v824
      %v848 = vpop.permute.xlu0 %847
      %v851 = vsel %vm378, %v814, 0
      %v854 = vsel %vm378, %v815, 0
      %v857 = vsel %vm378, %v816, 0
      %v860 = vsel %vm378, %v817, 0
      %v863 = vsel %vm378, %v818, 0
      %865 = vmatprep.subr.mxu0 0.0
      %866 = vmatpush1.msra.mxu0 0.0
      %867 = vmatprep.subr.mxu0 0.0
      %868 = vmatpush1.msra.mxu0 0.0
      %869 = vmatprep.subr.mxu0 0.0
      %870 = vmatpush1.msra.mxu0 0.0
      %871 = vmatprep.subr.mxu0 0.0
      %872 = vmatpush1.msra.mxu0 0.0
      %873 = vmatprep.subr.mxu0 0.0
      %874 = vmatpush1.msra.mxu0 0.0
      %875 = vmatprep.subr.mxu0 0.0
      %876 = vmatpush1.msra.mxu0 0.0
      %877 = vmatprep.subr.mxu0 0.0
      %878 = vmatpush1.msra.mxu0 0.0
      %879 = vmatprep.subr.mxu0 0.0
      %880 = vmatpush1.msra.mxu0 0.0
      %881 = vmatprep.subr.mxu0 0.0
      %882 = vmatpush1.msra.mxu0 0.0
      %883 = vmatprep.subr.mxu0 0.0
      %884 = vmatpush1.msra.mxu0 0.0
      %885 = vmatprep.subr.mxu0 0.0
      %886 = vmatpush1.msra.mxu0 0.0
      %887 = vmatprep.subr.mxu0 %v812
      %888 = vmatpush1.msra.mxu0 %v811
      %889 = vmatprep.subr.mxu0 %v810
      %890 = vmatpush1.msra.mxu0 %v809
      %891 = vmatprep.subr.mxu0 %v808
      %892 = vmatpush1.msra.mxu0 %v807
      %893 = vmatprep.subr.mxu0 %v806
      %894 = vmatpush1.msra.mxu0 %v805
      %895 = vmatprep.subr.mxu0 %v804
      %896 = vmatpush1.msra.mxu0 %v803
      %897 = vmatprep.subr.mxu0 0.0
      %898 = vmatpush2.msra.mxu0 0.0
      %899 = vmatprep.subr.mxu0 0.0
      %900 = vmatpush2.msra.mxu0 0.0
      %901 = vmatprep.subr.mxu0 0.0
      %902 = vmatpush2.msra.mxu0 0.0
      %903 = vmatprep.subr.mxu0 0.0
      %904 = vmatpush2.msra.mxu0 0.0
      %905 = vmatprep.subr.mxu0 0.0
      %906 = vmatpush2.msra.mxu0 0.0
      %907 = vmatprep.subr.mxu0 0.0
      %908 = vmatpush2.msra.mxu0 0.0
      %909 = vmatprep.subr.mxu0 0.0
      %910 = vmatpush2.msra.mxu0 0.0
      %911 = vmatprep.subr.mxu0 0.0
      %912 = vmatpush2.msra.mxu0 0.0
      %913 = vmatprep.subr.mxu0 0.0
      %914 = vmatpush2.msra.mxu0 0.0
      %915 = vmatprep.subr.mxu0 0.0
      %916 = vmatpush2.msra.mxu0 0.0
      %917 = vmatprep.subr.mxu0 0.0
      %918 = vmatpush2.msra.mxu0 0.0
      %919 = vmatprep.subr.mxu0 0.0
      %920 = vmatpush2.msra.mxu0 0.0
      %921 = vmatprep.subr.mxu0 0.0
      %922 = vmatpush2.msra.mxu0 0.0
      %923 = vmatprep.subr.mxu0 0.0
      %924 = vmatpush2.msra.mxu0 0.0
      %925 = vmatprep.subr.mxu0 0.0
      %926 = vmatpush2.msra.mxu0 0.0
      %927 = vmatprep.subr.mxu0 0.0
      %928 = vmatpush2.msra.mxu0 0.0
      %929 = vmatprep.mubr.f32.mxu0 0.0
      %930 = vmatmul.mubr.f32.gmra.mxu0 %v851
      %v931 = vpop.f32.mrf.mxu0
      %v932 = vadd.f32 %v828, %v931
      %v933 = vpop.f32.mrf.mxu0
      %v934 = vadd.f32 %v828, %v933
      %935 = vmatprep.mubr.f32.mxu0 0.0
      %936 = vmatmul.mubr.f32.gmra.mxu0 %v854
      %v937 = vpop.f32.mrf.mxu0
      %v938 = vadd.f32 %v833, %v937
      %v939 = vpop.f32.mrf.mxu0
      %v940 = vadd.f32 %v833, %v939
      %941 = vmatprep.mubr.f32.mxu0 0.0
      %942 = vmatmul.mubr.f32.gmra.mxu0 %v857
      %v943 = vpop.f32.mrf.mxu0
      %v944 = vadd.f32 %v838, %v943
      %v945 = vpop.f32.mrf.mxu0
      %v946 = vadd.f32 %v838, %v945
      %947 = vmatprep.mubr.f32.mxu0 0.0
      %948 = vmatmul.mubr.f32.gmra.mxu0 %v860
      %v949 = vpop.f32.mrf.mxu0
      %v950 = vadd.f32 %v843, %v949
      %v951 = vpop.f32.mrf.mxu0
      %v952 = vadd.f32 %v843, %v951
      %953 = vmatprep.mubr.f32.mxu0 0.0
      %954 = vmatmul.mubr.f32.gmra.mxu0 %v863
      %v955 = vpop.f32.mrf.mxu0
      %v956 = vadd.f32 %v848, %v955
      %v957 = vpop.f32.mrf.mxu0
      %v958 = vadd.f32 %v848, %v957
      %959 = vdwg.mxu0
      %v960 = vtanh.pop %v932
      %v961 = vtanh.pop %v934
      %v962 = vtanh.pop %v938
      %v963 = vtanh.pop %v940
      %v964 = vtanh.pop %v944
      %v965 = vtanh.pop %v946
      %v966 = vtanh.pop %v950
      %v967 = vtanh.pop %v952
      %v968 = vtanh.pop %v956
      %v969 = vtanh.pop %v958
      %s970 = scalar_lea.vmem %s1, 200
      %v971 = vld [vmem:[%s970] sm:$0xff]
      %v972 = vld [vmem:[%s970 + $0x8] sm:$0xff]
      %v973 = vld [vmem:[%s970 + $0x10] sm:$0xff]
      %v974 = vld [vmem:[%s970 + $0x18] sm:$0xff]
      %v975 = vld [vmem:[%s970 + $0x20] sm:$0xff]
      %s976 = scalar_lea.vmem %s2, 200
      %v977 = vld [vmem:[%s976] sm:$0xff]
      %v978 = vld [vmem:[%s976 + $0x8] sm:$0xff]
      %v979 = vld [vmem:[%s976 + $0x10] sm:$0xff]
      %v980 = vld [vmem:[%s976 + $0x18] sm:$0xff]
      %v981 = vld [vmem:[%s976 + $0x20] sm:$0xff]
      %983 = vset.pattern.permute.xlu0 0
      %984 = vperm.xlu0 %983, %v977
      %v985 = vpop.permute.xlu0 %984
      %988 = vset.pattern.permute.xlu0 0
      %989 = vperm.xlu0 %988, %v978
      %v990 = vpop.permute.xlu0 %989
      %993 = vset.pattern.permute.xlu0 0
      %994 = vperm.xlu0 %993, %v979
      %v995 = vpop.permute.xlu0 %994
      %998 = vset.pattern.permute.xlu0 0
      %999 = vperm.xlu0 %998, %v980
      %v1000 = vpop.permute.xlu0 %999
      %1003 = vset.pattern.permute.xlu0 0
      %1004 = vperm.xlu0 %1003, %v981
      %v1005 = vpop.permute.xlu0 %1004
      %v1008 = vsel %vm378, %v971, 0
      %v1011 = vsel %vm378, %v972, 0
      %v1014 = vsel %vm378, %v973, 0
      %v1017 = vsel %vm378, %v974, 0
      %v1020 = vsel %vm378, %v975, 0
      %1022 = vmatprep.subr.mxu0 0.0
      %1023 = vmatpush1.msra.mxu0 0.0
      %1024 = vmatprep.subr.mxu0 0.0
      %1025 = vmatpush1.msra.mxu0 0.0
      %1026 = vmatprep.subr.mxu0 0.0
      %1027 = vmatpush1.msra.mxu0 0.0
      %1028 = vmatprep.subr.mxu0 0.0
      %1029 = vmatpush1.msra.mxu0 0.0
      %1030 = vmatprep.subr.mxu0 0.0
      %1031 = vmatpush1.msra.mxu0 0.0
      %1032 = vmatprep.subr.mxu0 0.0
      %1033 = vmatpush1.msra.mxu0 0.0
      %1034 = vmatprep.subr.mxu0 0.0
      %1035 = vmatpush1.msra.mxu0 0.0
      %1036 = vmatprep.subr.mxu0 0.0
      %1037 = vmatpush1.msra.mxu0 0.0
      %1038 = vmatprep.subr.mxu0 0.0
      %1039 = vmatpush1.msra.mxu0 0.0
      %1040 = vmatprep.subr.mxu0 0.0
      %1041 = vmatpush1.msra.mxu0 0.0
      %1042 = vmatprep.subr.mxu0 0.0
      %1043 = vmatpush1.msra.mxu0 0.0
      %1044 = vmatprep.subr.mxu0 %v969
      %1045 = vmatpush1.msra.mxu0 %v968
      %1046 = vmatprep.subr.mxu0 %v967
      %1047 = vmatpush1.msra.mxu0 %v966
      %1048 = vmatprep.subr.mxu0 %v965
      %1049 = vmatpush1.msra.mxu0 %v964
      %1050 = vmatprep.subr.mxu0 %v963
      %1051 = vmatpush1.msra.mxu0 %v962
      %1052 = vmatprep.subr.mxu0 %v961
      %1053 = vmatpush1.msra.mxu0 %v960
      %1054 = vmatprep.subr.mxu0 0.0
      %1055 = vmatpush2.msra.mxu0 0.0
      %1056 = vmatprep.subr.mxu0 0.0
      %1057 = vmatpush2.msra.mxu0 0.0
      %1058 = vmatprep.subr.mxu0 0.0
      %1059 = vmatpush2.msra.mxu0 0.0
      %1060 = vmatprep.subr.mxu0 0.0
      %1061 = vmatpush2.msra.mxu0 0.0
      %1062 = vmatprep.subr.mxu0 0.0
      %1063 = vmatpush2.msra.mxu0 0.0
      %1064 = vmatprep.subr.mxu0 0.0
      %1065 = vmatpush2.msra.mxu0 0.0
      %1066 = vmatprep.subr.mxu0 0.0
      %1067 = vmatpush2.msra.mxu0 0.0
      %1068 = vmatprep.subr.mxu0 0.0
      %1069 = vmatpush2.msra.mxu0 0.0
      %1070 = vmatprep.subr.mxu0 0.0
      %1071 = vmatpush2.msra.mxu0 0.0
      %1072 = vmatprep.subr.mxu0 0.0
      %1073 = vmatpush2.msra.mxu0 0.0
      %1074 = vmatprep.subr.mxu0 0.0
      %1075 = vmatpush2.msra.mxu0 0.0
      %1076 = vmatprep.subr.mxu0 0.0
      %1077 = vmatpush2.msra.mxu0 0.0
      %1078 = vmatprep.subr.mxu0 0.0
      %1079 = vmatpush2.msra.mxu0 0.0
      %1080 = vmatprep.subr.mxu0 0.0
      %1081 = vmatpush2.msra.mxu0 0.0
      %1082 = vmatprep.subr.mxu0 0.0
      %1083 = vmatpush2.msra.mxu0 0.0
      %1084 = vmatprep.subr.mxu0 0.0
      %1085 = vmatpush2.msra.mxu0 0.0
      %1086 = vmatprep.mubr.f32.mxu0 0.0
      %1087 = vmatmul.mubr.f32.gmra.mxu0 %v1008
      %v1088 = vpop.f32.mrf.mxu0
      %v1089 = vadd.f32 %v985, %v1088
      %v1090 = vpop.f32.mrf.mxu0
      %v1091 = vadd.f32 %v985, %v1090
      %1092 = vmatprep.mubr.f32.mxu0 0.0
      %1093 = vmatmul.mubr.f32.gmra.mxu0 %v1011
      %v1094 = vpop.f32.mrf.mxu0
      %v1095 = vadd.f32 %v990, %v1094
      %v1096 = vpop.f32.mrf.mxu0
      %v1097 = vadd.f32 %v990, %v1096
      %1098 = vmatprep.mubr.f32.mxu0 0.0
      %1099 = vmatmul.mubr.f32.gmra.mxu0 %v1014
      %v1100 = vpop.f32.mrf.mxu0
      %v1101 = vadd.f32 %v995, %v1100
      %v1102 = vpop.f32.mrf.mxu0
      %v1103 = vadd.f32 %v995, %v1102
      %1104 = vmatprep.mubr.f32.mxu0 0.0
      %1105 = vmatmul.mubr.f32.gmra.mxu0 %v1017
      %v1106 = vpop.f32.mrf.mxu0
      %v1107 = vadd.f32 %v1000, %v1106
      %v1108 = vpop.f32.mrf.mxu0
      %v1109 = vadd.f32 %v1000, %v1108
      %1110 = vmatprep.mubr.f32.mxu0 0.0
      %1111 = vmatmul.mubr.f32.gmra.mxu0 %v1020
      %v1112 = vpop.f32.mrf.mxu0
      %v1113 = vadd.f32 %v1005, %v1112
      %v1114 = vpop.f32.mrf.mxu0
      %v1115 = vadd.f32 %v1005, %v1114
      %1116 = vdwg.mxu0
      %v1117 = vtanh.pop %v1089
      %v1118 = vtanh.pop %v1091
      %v1119 = vtanh.pop %v1095
      %v1120 = vtanh.pop %v1097
      %v1121 = vtanh.pop %v1101
      %v1122 = vtanh.pop %v1103
      %v1123 = vtanh.pop %v1107
      %v1124 = vtanh.pop %v1109
      %v1125 = vtanh.pop %v1113
      %v1126 = vtanh.pop %v1115
      %s1127 = scalar_lea.vmem %s1, 240
      %v1128 = vld [vmem:[%s1127] sm:$0xff]
      %s1129 = scalar_lea.vmem %s2, 240
      %v1130 = vld [vmem:[%s1129] sm:$0xff]
      %1132 = vset.pattern.permute.xlu0 0
      %1133 = vperm.xlu0 %1132, %v1130
      %v1134 = vpop.permute.xlu0 %1133
      %v1137 = vsel %vm378, %v1128, 0
      %1139 = vmatprep.subr.mxu0 0.0
      %1140 = vmatpush1.msra.mxu0 0.0
      %1141 = vmatprep.subr.mxu0 0.0
      %1142 = vmatpush1.msra.mxu0 0.0
      %1143 = vmatprep.subr.mxu0 0.0
      %1144 = vmatpush1.msra.mxu0 0.0
      %1145 = vmatprep.subr.mxu0 0.0
      %1146 = vmatpush1.msra.mxu0 0.0
      %1147 = vmatprep.subr.mxu0 0.0
      %1148 = vmatpush1.msra.mxu0 0.0
      %1149 = vmatprep.subr.mxu0 0.0
      %1150 = vmatpush1.msra.mxu0 0.0
      %1151 = vmatprep.subr.mxu0 0.0
      %1152 = vmatpush1.msra.mxu0 0.0
      %1153 = vmatprep.subr.mxu0 0.0
      %1154 = vmatpush1.msra.mxu0 0.0
      %1155 = vmatprep.subr.mxu0 0.0
      %1156 = vmatpush1.msra.mxu0 0.0
      %1157 = vmatprep.subr.mxu0 0.0
      %1158 = vmatpush1.msra.mxu0 0.0
      %1159 = vmatprep.subr.mxu0 0.0
      %1160 = vmatpush1.msra.mxu0 0.0
      %1161 = vmatprep.subr.mxu0 %v1126
      %1162 = vmatpush1.msra.mxu0 %v1125
      %1163 = vmatprep.subr.mxu0 %v1124
      %1164 = vmatpush1.msra.mxu0 %v1123
      %1165 = vmatprep.subr.mxu0 %v1122
      %1166 = vmatpush1.msra.mxu0 %v1121
      %1167 = vmatprep.subr.mxu0 %v1120
      %1168 = vmatpush1.msra.mxu0 %v1119
      %1169 = vmatprep.subr.mxu0 %v1118
      %1170 = vmatpush1.msra.mxu0 %v1117
      %1171 = vmatprep.subr.mxu0 0.0
      %1172 = vmatpush2.msra.mxu0 0.0
      %1173 = vmatprep.subr.mxu0 0.0
      %1174 = vmatpush2.msra.mxu0 0.0
      %1175 = vmatprep.subr.mxu0 0.0
      %1176 = vmatpush2.msra.mxu0 0.0
      %1177 = vmatprep.subr.mxu0 0.0
      %1178 = vmatpush2.msra.mxu0 0.0
      %1179 = vmatprep.subr.mxu0 0.0
      %1180 = vmatpush2.msra.mxu0 0.0
      %1181 = vmatprep.subr.mxu0 0.0
      %1182 = vmatpush2.msra.mxu0 0.0
      %1183 = vmatprep.subr.mxu0 0.0
      %1184 = vmatpush2.msra.mxu0 0.0
      %1185 = vmatprep.subr.mxu0 0.0
      %1186 = vmatpush2.msra.mxu0 0.0
      %1187 = vmatprep.subr.mxu0 0.0
      %1188 = vmatpush2.msra.mxu0 0.0
      %1189 = vmatprep.subr.mxu0 0.0
      %1190 = vmatpush2.msra.mxu0 0.0
      %1191 = vmatprep.subr.mxu0 0.0
      %1192 = vmatpush2.msra.mxu0 0.0
      %1193 = vmatprep.subr.mxu0 0.0
      %1194 = vmatpush2.msra.mxu0 0.0
      %1195 = vmatprep.subr.mxu0 0.0
      %1196 = vmatpush2.msra.mxu0 0.0
      %1197 = vmatprep.subr.mxu0 0.0
      %1198 = vmatpush2.msra.mxu0 0.0
      %1199 = vmatprep.subr.mxu0 0.0
      %1200 = vmatpush2.msra.mxu0 0.0
      %1201 = vmatprep.subr.mxu0 0.0
      %1202 = vmatpush2.msra.mxu0 0.0
      %1203 = vmatprep.mubr.f32.mxu0 0.0
      %1204 = vmatmul.mubr.f32.gmra.mxu0 %v1137
      %v1205 = vpop.f32.mrf.mxu0
      %v1206 = vadd.f32 %v1134, %v1205
      %v1207 = vpop.f32.mrf.mxu0
      %v1208 = vadd.f32 %v1134, %v1207
      %1209 = vdwg.mxu0
      %v1212 = vcombine.low %v1206, %v1208
      %v1214 = vunpack.c.l.s4 1966171168
      %v1215 = vunpack.c.0.s8 %v1214
      %v1216 = vlaneseq
      %v1217 = vshrl.u32 %v1216, 7
      %v1218 = vsub.s32 %v1215, %v1217
      %v1219 = vrot.slane %v1212, %v1218
      %v1221 = vunpack.c.l.s4 1966171168
      %v1222 = vunpack.c.0.s8 %v1221
      %v1223 = vlaneseq
      %v1224 = vshrl.u32 %v1223, 7
      %v1225 = vsub.s32 %v1222, %v1224
      %v1226 = vrot.slane %v1219, %v1225
      %v1228 = vlaneseq
      %vm1229 = vcmp.ge.s32.totalorder %v1228, 0
      %vm1230 = vcmp.lt.s32.totalorder %v1228, 256
      %vm1231 = vmand %vm1229, %vm1230
      %1232 = vst.msk [vmem:[%s175] sm:$0x3] %vm1231, %v1226
      %s1233 = scalar_lea.vmem %s169, 8
      %v1234 = vld [vmem:[%s1233] sm:$0x77]
      %v1235 = vld [vmem:[%s1] sm:$0xff]
      %v1236 = vld [vmem:[%s1 + $0x8] sm:$0xff]
      %v1237 = vld [vmem:[%s1 + $0x10] sm:$0xff]
      %v1238 = vld [vmem:[%s1 + $0x18] sm:$0xff]
      %v1239 = vld [vmem:[%s1 + $0x20] sm:$0xff]
      %v1240 = vld [vmem:[%s2] sm:$0xff]
      %v1241 = vld [vmem:[%s2 + $0x8] sm:$0xff]
      %v1242 = vld [vmem:[%s2 + $0x10] sm:$0xff]
      %v1243 = vld [vmem:[%s2 + $0x18] sm:$0xff]
      %v1244 = vld [vmem:[%s2 + $0x20] sm:$0xff]
      %1246 = vset.pattern.permute.xlu0 0
      %1247 = vperm.xlu0 %1246, %v1240
      %v1248 = vpop.permute.xlu0 %1247
      %1251 = vset.pattern.permute.xlu0 0
      %1252 = vperm.xlu0 %1251, %v1241
      %v1253 = vpop.permute.xlu0 %1252
      %1256 = vset.pattern.permute.xlu0 0
      %1257 = vperm.xlu0 %1256, %v1242
      %v1258 = vpop.permute.xlu0 %1257
      %1261 = vset.pattern.permute.xlu0 0
      %1262 = vperm.xlu0 %1261, %v1243
      %v1263 = vpop.permute.xlu0 %1262
      %1266 = vset.pattern.permute.xlu0 0
      %1267 = vperm.xlu0 %1266, %v1244
      %v1268 = vpop.permute.xlu0 %1267
      %v1271 = vcombine.high %v1234, %v1234
      %v1273 = vsel %vm215, %v1235, 0
      %v1276 = vsel %vm215, %v1236, 0
      %v1279 = vsel %vm215, %v1237, 0
      %v1282 = vsel %vm215, %v1238, 0
      %v1285 = vsel %vm215, %v1239, 0
      %v1287 = vsel %vm231, %v1234, 0
      %v1289 = vsel %vm231, %v1271, 0
      %1291 = vmatprep.subr.mxu0 0.0
      %1292 = vmatpush1.msra.mxu0 0.0
      %1293 = vmatprep.subr.mxu0 0.0
      %1294 = vmatpush1.msra.mxu0 0.0
      %1295 = vmatprep.subr.mxu0 0.0
      %1296 = vmatpush1.msra.mxu0 0.0
      %1297 = vmatprep.subr.mxu0 0.0
      %1298 = vmatpush1.msra.mxu0 0.0
      %1299 = vmatprep.subr.mxu0 0.0
      %1300 = vmatpush1.msra.mxu0 0.0
      %1301 = vmatprep.subr.mxu0 0.0
      %1302 = vmatpush1.msra.mxu0 0.0
      %1303 = vmatprep.subr.mxu0 0.0
      %1304 = vmatpush1.msra.mxu0 0.0
      %1305 = vmatprep.subr.mxu0 0.0
      %1306 = vmatpush1.msra.mxu0 0.0
      %1307 = vmatprep.subr.mxu0 0.0
      %1308 = vmatpush1.msra.mxu0 0.0
      %1309 = vmatprep.subr.mxu0 0.0
      %1310 = vmatpush1.msra.mxu0 0.0
      %1311 = vmatprep.subr.mxu0 0.0
      %1312 = vmatpush1.msra.mxu0 0.0
      %1313 = vmatprep.subr.mxu0 0.0
      %1314 = vmatpush1.msra.mxu0 0.0
      %1315 = vmatprep.subr.mxu0 0.0
      %1316 = vmatpush1.msra.mxu0 0.0
      %1317 = vmatprep.subr.mxu0 0.0
      %1318 = vmatpush1.msra.mxu0 0.0
      %1319 = vmatprep.subr.mxu0 0.0
      %1320 = vmatpush1.msra.mxu0 0.0
      %1321 = vmatprep.subr.mxu0 %v1289
      %1322 = vmatpush1.msra.mxu0 %v1287
      %1323 = vmatprep.subr.mxu0 0.0
      %1324 = vmatpush2.msra.mxu0 0.0
      %1325 = vmatprep.subr.mxu0 0.0
      %1326 = vmatpush2.msra.mxu0 0.0
      %1327 = vmatprep.subr.mxu0 0.0
      %1328 = vmatpush2.msra.mxu0 0.0
      %1329 = vmatprep.subr.mxu0 0.0
      %1330 = vmatpush2.msra.mxu0 0.0
      %1331 = vmatprep.subr.mxu0 0.0
      %1332 = vmatpush2.msra.mxu0 0.0
      %1333 = vmatprep.subr.mxu0 0.0
      %1334 = vmatpush2.msra.mxu0 0.0
      %1335 = vmatprep.subr.mxu0 0.0
      %1336 = vmatpush2.msra.mxu0 0.0
      %1337 = vmatprep.subr.mxu0 0.0
      %1338 = vmatpush2.msra.mxu0 0.0
      %1339 = vmatprep.subr.mxu0 0.0
      %1340 = vmatpush2.msra.mxu0 0.0
      %1341 = vmatprep.subr.mxu0 0.0
      %1342 = vmatpush2.msra.mxu0 0.0
      %1343 = vmatprep.subr.mxu0 0.0
      %1344 = vmatpush2.msra.mxu0 0.0
      %1345 = vmatprep.subr.mxu0 0.0
      %1346 = vmatpush2.msra.mxu0 0.0
      %1347 = vmatprep.subr.mxu0 0.0
      %1348 = vmatpush2.msra.mxu0 0.0
      %1349 = vmatprep.subr.mxu0 0.0
      %1350 = vmatpush2.msra.mxu0 0.0
      %1351 = vmatprep.subr.mxu0 0.0
      %1352 = vmatpush2.msra.mxu0 0.0
      %1353 = vmatprep.subr.mxu0 0.0
      %1354 = vmatpush2.msra.mxu0 0.0
      %1355 = vmatprep.mubr.f32.mxu0 0.0
      %1356 = vmatmul.mubr.f32.gmra.mxu0 %v1273
      %v1357 = vpop.f32.mrf.mxu0
      %v1358 = vadd.f32 %v1248, %v1357
      %v1359 = vpop.f32.mrf.mxu0
      %v1360 = vadd.f32 %v1248, %v1359
      %1361 = vmatprep.mubr.f32.mxu0 0.0
      %1362 = vmatmul.mubr.f32.gmra.mxu0 %v1276
      %v1363 = vpop.f32.mrf.mxu0
      %v1364 = vadd.f32 %v1253, %v1363
      %v1365 = vpop.f32.mrf.mxu0
      %v1366 = vadd.f32 %v1253, %v1365
      %1367 = vmatprep.mubr.f32.mxu0 0.0
      %1368 = vmatmul.mubr.f32.gmra.mxu0 %v1279
      %v1369 = vpop.f32.mrf.mxu0
      %v1370 = vadd.f32 %v1258, %v1369
      %v1371 = vpop.f32.mrf.mxu0
      %v1372 = vadd.f32 %v1258, %v1371
      %1373 = vmatprep.mubr.f32.mxu0 0.0
      %1374 = vmatmul.mubr.f32.gmra.mxu0 %v1282
      %v1375 = vpop.f32.mrf.mxu0
      %v1376 = vadd.f32 %v1263, %v1375
      %v1377 = vpop.f32.mrf.mxu0
      %v1378 = vadd.f32 %v1263, %v1377
      %1379 = vmatprep.mubr.f32.mxu0 0.0
      %1380 = vmatmul.mubr.f32.gmra.mxu0 %v1285
      %v1381 = vpop.f32.mrf.mxu0
      %v1382 = vadd.f32 %v1268, %v1381
      %v1383 = vpop.f32.mrf.mxu0
      %v1384 = vadd.f32 %v1268, %v1383
      %1385 = vdwg.mxu0
      %v1386 = vtanh.pop %v1358
      %v1387 = vtanh.pop %v1360
      %v1388 = vtanh.pop %v1364
      %v1389 = vtanh.pop %v1366
      %v1390 = vtanh.pop %v1370
      %v1391 = vtanh.pop %v1372
      %v1392 = vtanh.pop %v1376
      %v1393 = vtanh.pop %v1378
      %v1394 = vtanh.pop %v1382
      %v1395 = vtanh.pop %v1384
      %v1396 = vld [vmem:[%s341] sm:$0xff]
      %v1397 = vld [vmem:[%s341 + $0x8] sm:$0xff]
      %v1398 = vld [vmem:[%s341 + $0x10] sm:$0xff]
      %v1399 = vld [vmem:[%s341 + $0x18] sm:$0xff]
      %v1400 = vld [vmem:[%s341 + $0x20] sm:$0xff]
      %v1401 = vld [vmem:[%s347] sm:$0xff]
      %v1402 = vld [vmem:[%s347 + $0x8] sm:$0xff]
      %v1403 = vld [vmem:[%s347 + $0x10] sm:$0xff]
      %v1404 = vld [vmem:[%s347 + $0x18] sm:$0xff]
      %v1405 = vld [vmem:[%s347 + $0x20] sm:$0xff]
      %1407 = vset.pattern.permute.xlu0 0
      %1408 = vperm.xlu0 %1407, %v1401
      %v1409 = vpop.permute.xlu0 %1408
      %1412 = vset.pattern.permute.xlu0 0
      %1413 = vperm.xlu0 %1412, %v1402
      %v1414 = vpop.permute.xlu0 %1413
      %1417 = vset.pattern.permute.xlu0 0
      %1418 = vperm.xlu0 %1417, %v1403
      %v1419 = vpop.permute.xlu0 %1418
      %1422 = vset.pattern.permute.xlu0 0
      %1423 = vperm.xlu0 %1422, %v1404
      %v1424 = vpop.permute.xlu0 %1423
      %1427 = vset.pattern.permute.xlu0 0
      %1428 = vperm.xlu0 %1427, %v1405
      %v1429 = vpop.permute.xlu0 %1428
      %v1432 = vsel %vm378, %v1396, 0
      %v1435 = vsel %vm378, %v1397, 0
      %v1438 = vsel %vm378, %v1398, 0
      %v1441 = vsel %vm378, %v1399, 0
      %v1444 = vsel %vm378, %v1400, 0
      %1446 = vmatprep.subr.mxu0 0.0
      %1447 = vmatpush1.msra.mxu0 0.0
      %1448 = vmatprep.subr.mxu0 0.0
      %1449 = vmatpush1.msra.mxu0 0.0
      %1450 = vmatprep.subr.mxu0 0.0
      %1451 = vmatpush1.msra.mxu0 0.0
      %1452 = vmatprep.subr.mxu0 0.0
      %1453 = vmatpush1.msra.mxu0 0.0
      %1454 = vmatprep.subr.mxu0 0.0
      %1455 = vmatpush1.msra.mxu0 0.0
      %1456 = vmatprep.subr.mxu0 0.0
      %1457 = vmatpush1.msra.mxu0 0.0
      %1458 = vmatprep.subr.mxu0 0.0
      %1459 = vmatpush1.msra.mxu0 0.0
      %1460 = vmatprep.subr.mxu0 0.0
      %1461 = vmatpush1.msra.mxu0 0.0
      %1462 = vmatprep.subr.mxu0 0.0
      %1463 = vmatpush1.msra.mxu0 0.0
      %1464 = vmatprep.subr.mxu0 0.0
      %1465 = vmatpush1.msra.mxu0 0.0
      %1466 = vmatprep.subr.mxu0 0.0
      %1467 = vmatpush1.msra.mxu0 0.0
      %1468 = vmatprep.subr.mxu0 %v1395
      %1469 = vmatpush1.msra.mxu0 %v1394
      %1470 = vmatprep.subr.mxu0 %v1393
      %1471 = vmatpush1.msra.mxu0 %v1392
      %1472 = vmatprep.subr.mxu0 %v1391
      %1473 = vmatpush1.msra.mxu0 %v1390
      %1474 = vmatprep.subr.mxu0 %v1389
      %1475 = vmatpush1.msra.mxu0 %v1388
      %1476 = vmatprep.subr.mxu0 %v1387
      %1477 = vmatpush1.msra.mxu0 %v1386
      %1478 = vmatprep.subr.mxu0 0.0
      %1479 = vmatpush2.msra.mxu0 0.0
      %1480 = vmatprep.subr.mxu0 0.0
      %1481 = vmatpush2.msra.mxu0 0.0
      %1482 = vmatprep.subr.mxu0 0.0
      %1483 = vmatpush2.msra.mxu0 0.0
      %1484 = vmatprep.subr.mxu0 0.0
      %1485 = vmatpush2.msra.mxu0 0.0
      %1486 = vmatprep.subr.mxu0 0.0
      %1487 = vmatpush2.msra.mxu0 0.0
      %1488 = vmatprep.subr.mxu0 0.0
      %1489 = vmatpush2.msra.mxu0 0.0
      %1490 = vmatprep.subr.mxu0 0.0
      %1491 = vmatpush2.msra.mxu0 0.0
      %1492 = vmatprep.subr.mxu0 0.0
      %1493 = vmatpush2.msra.mxu0 0.0
      %1494 = vmatprep.subr.mxu0 0.0
      %1495 = vmatpush2.msra.mxu0 0.0
      %1496 = vmatprep.subr.mxu0 0.0
      %1497 = vmatpush2.msra.mxu0 0.0
      %1498 = vmatprep.subr.mxu0 0.0
      %1499 = vmatpush2.msra.mxu0 0.0
      %1500 = vmatprep.subr.mxu0 0.0
      %1501 = vmatpush2.msra.mxu0 0.0
      %1502 = vmatprep.subr.mxu0 0.0
      %1503 = vmatpush2.msra.mxu0 0.0
      %1504 = vmatprep.subr.mxu0 0.0
      %1505 = vmatpush2.msra.mxu0 0.0
      %1506 = vmatprep.subr.mxu0 0.0
      %1507 = vmatpush2.msra.mxu0 0.0
      %1508 = vmatprep.subr.mxu0 0.0
      %1509 = vmatpush2.msra.mxu0 0.0
      %1510 = vmatprep.mubr.f32.mxu0 0.0
      %1511 = vmatmul.mubr.f32.gmra.mxu0 %v1432
      %v1512 = vpop.f32.mrf.mxu0
      %v1513 = vadd.f32 %v1409, %v1512
      %v1514 = vpop.f32.mrf.mxu0
      %v1515 = vadd.f32 %v1409, %v1514
      %1516 = vmatprep.mubr.f32.mxu0 0.0
      %1517 = vmatmul.mubr.f32.gmra.mxu0 %v1435
      %v1518 = vpop.f32.mrf.mxu0
      %v1519 = vadd.f32 %v1414, %v1518
      %v1520 = vpop.f32.mrf.mxu0
      %v1521 = vadd.f32 %v1414, %v1520
      %1522 = vmatprep.mubr.f32.mxu0 0.0
      %1523 = vmatmul.mubr.f32.gmra.mxu0 %v1438
      %v1524 = vpop.f32.mrf.mxu0
      %v1525 = vadd.f32 %v1419, %v1524
      %v1526 = vpop.f32.mrf.mxu0
      %v1527 = vadd.f32 %v1419, %v1526
      %1528 = vmatprep.mubr.f32.mxu0 0.0
      %1529 = vmatmul.mubr.f32.gmra.mxu0 %v1441
      %v1530 = vpop.f32.mrf.mxu0
      %v1531 = vadd.f32 %v1424, %v1530
      %v1532 = vpop.f32.mrf.mxu0
      %v1533 = vadd.f32 %v1424, %v1532
      %1534 = vmatprep.mubr.f32.mxu0 0.0
      %1535 = vmatmul.mubr.f32.gmra.mxu0 %v1444
      %v1536 = vpop.f32.mrf.mxu0
      %v1537 = vadd.f32 %v1429, %v1536
      %v1538 = vpop.f32.mrf.mxu0
      %v1539 = vadd.f32 %v1429, %v1538
      %1540 = vdwg.mxu0
      %v1541 = vtanh.pop %v1513
      %v1542 = vtanh.pop %v1515
      %v1543 = vtanh.pop %v1519
      %v1544 = vtanh.pop %v1521
      %v1545 = vtanh.pop %v1525
      %v1546 = vtanh.pop %v1527
      %v1547 = vtanh.pop %v1531
      %v1548 = vtanh.pop %v1533
      %v1549 = vtanh.pop %v1537
      %v1550 = vtanh.pop %v1539
      %v1551 = vld [vmem:[%s499] sm:$0xff]
      %v1552 = vld [vmem:[%s499 + $0x8] sm:$0xff]
      %v1553 = vld [vmem:[%s499 + $0x10] sm:$0xff]
      %v1554 = vld [vmem:[%s499 + $0x18] sm:$0xff]
      %v1555 = vld [vmem:[%s499 + $0x20] sm:$0xff]
      %v1556 = vld [vmem:[%s505] sm:$0xff]
      %v1557 = vld [vmem:[%s505 + $0x8] sm:$0xff]
      %v1558 = vld [vmem:[%s505 + $0x10] sm:$0xff]
      %v1559 = vld [vmem:[%s505 + $0x18] sm:$0xff]
      %v1560 = vld [vmem:[%s505 + $0x20] sm:$0xff]
      %1562 = vset.pattern.permute.xlu0 0
      %1563 = vperm.xlu0 %1562, %v1556
      %v1564 = vpop.permute.xlu0 %1563
      %1567 = vset.pattern.permute.xlu0 0
      %1568 = vperm.xlu0 %1567, %v1557
      %v1569 = vpop.permute.xlu0 %1568
      %1572 = vset.pattern.permute.xlu0 0
      %1573 = vperm.xlu0 %1572, %v1558
      %v1574 = vpop.permute.xlu0 %1573
      %1577 = vset.pattern.permute.xlu0 0
      %1578 = vperm.xlu0 %1577, %v1559
      %v1579 = vpop.permute.xlu0 %1578
      %1582 = vset.pattern.permute.xlu0 0
      %1583 = vperm.xlu0 %1582, %v1560
      %v1584 = vpop.permute.xlu0 %1583
      %v1587 = vsel %vm378, %v1551, 0
      %v1590 = vsel %vm378, %v1552, 0
      %v1593 = vsel %vm378, %v1553, 0
      %v1596 = vsel %vm378, %v1554, 0
      %v1599 = vsel %vm378, %v1555, 0
      %1601 = vmatprep.subr.mxu0 0.0
      %1602 = vmatpush1.msra.mxu0 0.0
      %1603 = vmatprep.subr.mxu0 0.0
      %1604 = vmatpush1.msra.mxu0 0.0
      %1605 = vmatprep.subr.mxu0 0.0
      %1606 = vmatpush1.msra.mxu0 0.0
      %1607 = vmatprep.subr.mxu0 0.0
      %1608 = vmatpush1.msra.mxu0 0.0
      %1609 = vmatprep.subr.mxu0 0.0
      %1610 = vmatpush1.msra.mxu0 0.0
      %1611 = vmatprep.subr.mxu0 0.0
      %1612 = vmatpush1.msra.mxu0 0.0
      %1613 = vmatprep.subr.mxu0 0.0
      %1614 = vmatpush1.msra.mxu0 0.0
      %1615 = vmatprep.subr.mxu0 0.0
      %1616 = vmatpush1.msra.mxu0 0.0
      %1617 = vmatprep.subr.mxu0 0.0
      %1618 = vmatpush1.msra.mxu0 0.0
      %1619 = vmatprep.subr.mxu0 0.0
      %1620 = vmatpush1.msra.mxu0 0.0
      %1621 = vmatprep.subr.mxu0 0.0
      %1622 = vmatpush1.msra.mxu0 0.0
      %1623 = vmatprep.subr.mxu0 %v1550
      %1624 = vmatpush1.msra.mxu0 %v1549
      %1625 = vmatprep.subr.mxu0 %v1548
      %1626 = vmatpush1.msra.mxu0 %v1547
      %1627 = vmatprep.subr.mxu0 %v1546
      %1628 = vmatpush1.msra.mxu0 %v1545
      %1629 = vmatprep.subr.mxu0 %v1544
      %1630 = vmatpush1.msra.mxu0 %v1543
      %1631 = vmatprep.subr.mxu0 %v1542
      %1632 = vmatpush1.msra.mxu0 %v1541
      %1633 = vmatprep.subr.mxu0 0.0
      %1634 = vmatpush2.msra.mxu0 0.0
      %1635 = vmatprep.subr.mxu0 0.0
      %1636 = vmatpush2.msra.mxu0 0.0
      %1637 = vmatprep.subr.mxu0 0.0
      %1638 = vmatpush2.msra.mxu0 0.0
      %1639 = vmatprep.subr.mxu0 0.0
      %1640 = vmatpush2.msra.mxu0 0.0
      %1641 = vmatprep.subr.mxu0 0.0
      %1642 = vmatpush2.msra.mxu0 0.0
      %1643 = vmatprep.subr.mxu0 0.0
      %1644 = vmatpush2.msra.mxu0 0.0
      %1645 = vmatprep.subr.mxu0 0.0
      %1646 = vmatpush2.msra.mxu0 0.0
      %1647 = vmatprep.subr.mxu0 0.0
      %1648 = vmatpush2.msra.mxu0 0.0
      %1649 = vmatprep.subr.mxu0 0.0
      %1650 = vmatpush2.msra.mxu0 0.0
      %1651 = vmatprep.subr.mxu0 0.0
      %1652 = vmatpush2.msra.mxu0 0.0
      %1653 = vmatprep.subr.mxu0 0.0
      %1654 = vmatpush2.msra.mxu0 0.0
      %1655 = vmatprep.subr.mxu0 0.0
      %1656 = vmatpush2.msra.mxu0 0.0
      %1657 = vmatprep.subr.mxu0 0.0
      %1658 = vmatpush2.msra.mxu0 0.0
      %1659 = vmatprep.subr.mxu0 0.0
      %1660 = vmatpush2.msra.mxu0 0.0
      %1661 = vmatprep.subr.mxu0 0.0
      %1662 = vmatpush2.msra.mxu0 0.0
      %1663 = vmatprep.subr.mxu0 0.0
      %1664 = vmatpush2.msra.mxu0 0.0
      %1665 = vmatprep.mubr.f32.mxu0 0.0
      %1666 = vmatmul.mubr.f32.gmra.mxu0 %v1587
      %v1667 = vpop.f32.mrf.mxu0
      %v1668 = vadd.f32 %v1564, %v1667
      %v1669 = vpop.f32.mrf.mxu0
      %v1670 = vadd.f32 %v1564, %v1669
      %1671 = vmatprep.mubr.f32.mxu0 0.0
      %1672 = vmatmul.mubr.f32.gmra.mxu0 %v1590
      %v1673 = vpop.f32.mrf.mxu0
      %v1674 = vadd.f32 %v1569, %v1673
      %v1675 = vpop.f32.mrf.mxu0
      %v1676 = vadd.f32 %v1569, %v1675
      %1677 = vmatprep.mubr.f32.mxu0 0.0
      %1678 = vmatmul.mubr.f32.gmra.mxu0 %v1593
      %v1679 = vpop.f32.mrf.mxu0
      %v1680 = vadd.f32 %v1574, %v1679
      %v1681 = vpop.f32.mrf.mxu0
      %v1682 = vadd.f32 %v1574, %v1681
      %1683 = vmatprep.mubr.f32.mxu0 0.0
      %1684 = vmatmul.mubr.f32.gmra.mxu0 %v1596
      %v1685 = vpop.f32.mrf.mxu0
      %v1686 = vadd.f32 %v1579, %v1685
      %v1687 = vpop.f32.mrf.mxu0
      %v1688 = vadd.f32 %v1579, %v1687
      %1689 = vmatprep.mubr.f32.mxu0 0.0
      %1690 = vmatmul.mubr.f32.gmra.mxu0 %v1599
      %v1691 = vpop.f32.mrf.mxu0
      %v1692 = vadd.f32 %v1584, %v1691
      %v1693 = vpop.f32.mrf.mxu0
      %v1694 = vadd.f32 %v1584, %v1693
      %1695 = vdwg.mxu0
      %v1696 = vtanh.pop %v1668
      %v1697 = vtanh.pop %v1670
      %v1698 = vtanh.pop %v1674
      %v1699 = vtanh.pop %v1676
      %v1700 = vtanh.pop %v1680
      %v1701 = vtanh.pop %v1682
      %v1702 = vtanh.pop %v1686
      %v1703 = vtanh.pop %v1688
      %v1704 = vtanh.pop %v1692
      %v1705 = vtanh.pop %v1694
      %v1706 = vld [vmem:[%s656] sm:$0xff]
      %v1707 = vld [vmem:[%s656 + $0x8] sm:$0xff]
      %v1708 = vld [vmem:[%s656 + $0x10] sm:$0xff]
      %v1709 = vld [vmem:[%s656 + $0x18] sm:$0xff]
      %v1710 = vld [vmem:[%s656 + $0x20] sm:$0xff]
      %v1711 = vld [vmem:[%s662] sm:$0xff]
      %v1712 = vld [vmem:[%s662 + $0x8] sm:$0xff]
      %v1713 = vld [vmem:[%s662 + $0x10] sm:$0xff]
      %v1714 = vld [vmem:[%s662 + $0x18] sm:$0xff]
      %v1715 = vld [vmem:[%s662 + $0x20] sm:$0xff]
      %1717 = vset.pattern.permute.xlu0 0
      %1718 = vperm.xlu0 %1717, %v1711
      %v1719 = vpop.permute.xlu0 %1718
      %1722 = vset.pattern.permute.xlu0 0
      %1723 = vperm.xlu0 %1722, %v1712
      %v1724 = vpop.permute.xlu0 %1723
      %1727 = vset.pattern.permute.xlu0 0
      %1728 = vperm.xlu0 %1727, %v1713
      %v1729 = vpop.permute.xlu0 %1728
      %1732 = vset.pattern.permute.xlu0 0
      %1733 = vperm.xlu0 %1732, %v1714
      %v1734 = vpop.permute.xlu0 %1733
      %1737 = vset.pattern.permute.xlu0 0
      %1738 = vperm.xlu0 %1737, %v1715
      %v1739 = vpop.permute.xlu0 %1738
      %v1742 = vsel %vm378, %v1706, 0
      %v1745 = vsel %vm378, %v1707, 0
      %v1748 = vsel %vm378, %v1708, 0
      %v1751 = vsel %vm378, %v1709, 0
      %v1754 = vsel %vm378, %v1710, 0
      %1756 = vmatprep.subr.mxu0 0.0
      %1757 = vmatpush1.msra.mxu0 0.0
      %1758 = vmatprep.subr.mxu0 0.0
      %1759 = vmatpush1.msra.mxu0 0.0
      %1760 = vmatprep.subr.mxu0 0.0
      %1761 = vmatpush1.msra.mxu0 0.0
      %1762 = vmatprep.subr.mxu0 0.0
      %1763 = vmatpush1.msra.mxu0 0.0
      %1764 = vmatprep.subr.mxu0 0.0
      %1765 = vmatpush1.msra.mxu0 0.0
      %1766 = vmatprep.subr.mxu0 0.0
      %1767 = vmatpush1.msra.mxu0 0.0
      %1768 = vmatprep.subr.mxu0 0.0
      %1769 = vmatpush1.msra.mxu0 0.0
      %1770 = vmatprep.subr.mxu0 0.0
      %1771 = vmatpush1.msra.mxu0 0.0
      %1772 = vmatprep.subr.mxu0 0.0
      %1773 = vmatpush1.msra.mxu0 0.0
      %1774 = vmatprep.subr.mxu0 0.0
      %1775 = vmatpush1.msra.mxu0 0.0
      %1776 = vmatprep.subr.mxu0 0.0
      %1777 = vmatpush1.msra.mxu0 0.0
      %1778 = vmatprep.subr.mxu0 %v1705
      %1779 = vmatpush1.msra.mxu0 %v1704
      %1780 = vmatprep.subr.mxu0 %v1703
      %1781 = vmatpush1.msra.mxu0 %v1702
      %1782 = vmatprep.subr.mxu0 %v1701
      %1783 = vmatpush1.msra.mxu0 %v1700
      %1784 = vmatprep.subr.mxu0 %v1699
      %1785 = vmatpush1.msra.mxu0 %v1698
      %1786 = vmatprep.subr.mxu0 %v1697
      %1787 = vmatpush1.msra.mxu0 %v1696
      %1788 = vmatprep.subr.mxu0 0.0
      %1789 = vmatpush2.msra.mxu0 0.0
      %1790 = vmatprep.subr.mxu0 0.0
      %1791 = vmatpush2.msra.mxu0 0.0
      %1792 = vmatprep.subr.mxu0 0.0
      %1793 = vmatpush2.msra.mxu0 0.0
      %1794 = vmatprep.subr.mxu0 0.0
      %1795 = vmatpush2.msra.mxu0 0.0
      %1796 = vmatprep.subr.mxu0 0.0
      %1797 = vmatpush2.msra.mxu0 0.0
      %1798 = vmatprep.subr.mxu0 0.0
      %1799 = vmatpush2.msra.mxu0 0.0
      %1800 = vmatprep.subr.mxu0 0.0
      %1801 = vmatpush2.msra.mxu0 0.0
      %1802 = vmatprep.subr.mxu0 0.0
      %1803 = vmatpush2.msra.mxu0 0.0
      %1804 = vmatprep.subr.mxu0 0.0
      %1805 = vmatpush2.msra.mxu0 0.0
      %1806 = vmatprep.subr.mxu0 0.0
      %1807 = vmatpush2.msra.mxu0 0.0
      %1808 = vmatprep.subr.mxu0 0.0
      %1809 = vmatpush2.msra.mxu0 0.0
      %1810 = vmatprep.subr.mxu0 0.0
      %1811 = vmatpush2.msra.mxu0 0.0
      %1812 = vmatprep.subr.mxu0 0.0
      %1813 = vmatpush2.msra.mxu0 0.0
      %1814 = vmatprep.subr.mxu0 0.0
      %1815 = vmatpush2.msra.mxu0 0.0
      %1816 = vmatprep.subr.mxu0 0.0
      %1817 = vmatpush2.msra.mxu0 0.0
      %1818 = vmatprep.subr.mxu0 0.0
      %1819 = vmatpush2.msra.mxu0 0.0
      %1820 = vmatprep.mubr.f32.mxu0 0.0
      %1821 = vmatmul.mubr.f32.gmra.mxu0 %v1742
      %v1822 = vpop.f32.mrf.mxu0
      %v1823 = vadd.f32 %v1719, %v1822
      %v1824 = vpop.f32.mrf.mxu0
      %v1825 = vadd.f32 %v1719, %v1824
      %1826 = vmatprep.mubr.f32.mxu0 0.0
      %1827 = vmatmul.mubr.f32.gmra.mxu0 %v1745
      %v1828 = vpop.f32.mrf.mxu0
      %v1829 = vadd.f32 %v1724, %v1828
      %v1830 = vpop.f32.mrf.mxu0
      %v1831 = vadd.f32 %v1724, %v1830
      %1832 = vmatprep.mubr.f32.mxu0 0.0
      %1833 = vmatmul.mubr.f32.gmra.mxu0 %v1748
      %v1834 = vpop.f32.mrf.mxu0
      %v1835 = vadd.f32 %v1729, %v1834
      %v1836 = vpop.f32.mrf.mxu0
      %v1837 = vadd.f32 %v1729, %v1836
      %1838 = vmatprep.mubr.f32.mxu0 0.0
      %1839 = vmatmul.mubr.f32.gmra.mxu0 %v1751
      %v1840 = vpop.f32.mrf.mxu0
      %v1841 = vadd.f32 %v1734, %v1840
      %v1842 = vpop.f32.mrf.mxu0
      %v1843 = vadd.f32 %v1734, %v1842
      %1844 = vmatprep.mubr.f32.mxu0 0.0
      %1845 = vmatmul.mubr.f32.gmra.mxu0 %v1754
      %v1846 = vpop.f32.mrf.mxu0
      %v1847 = vadd.f32 %v1739, %v1846
      %v1848 = vpop.f32.mrf.mxu0
      %v1849 = vadd.f32 %v1739, %v1848
      %1850 = vdwg.mxu0
      %v1851 = vtanh.pop %v1823
      %v1852 = vtanh.pop %v1825
      %v1853 = vtanh.pop %v1829
      %v1854 = vtanh.pop %v1831
      %v1855 = vtanh.pop %v1835
      %v1856 = vtanh.pop %v1837
      %v1857 = vtanh.pop %v1841
      %v1858 = vtanh.pop %v1843
      %v1859 = vtanh.pop %v1847
      %v1860 = vtanh.pop %v1849
      %v1861 = vld [vmem:[%s813] sm:$0xff]
      %v1862 = vld [vmem:[%s813 + $0x8] sm:$0xff]
      %v1863 = vld [vmem:[%s813 + $0x10] sm:$0xff]
      %v1864 = vld [vmem:[%s813 + $0x18] sm:$0xff]
      %v1865 = vld [vmem:[%s813 + $0x20] sm:$0xff]
      %v1866 = vld [vmem:[%s819] sm:$0xff]
      %v1867 = vld [vmem:[%s819 + $0x8] sm:$0xff]
      %v1868 = vld [vmem:[%s819 + $0x10] sm:$0xff]
      %v1869 = vld [vmem:[%s819 + $0x18] sm:$0xff]
      %v1870 = vld [vmem:[%s819 + $0x20] sm:$0xff]
      %1872 = vset.pattern.permute.xlu0 0
      %1873 = vperm.xlu0 %1872, %v1866
      %v1874 = vpop.permute.xlu0 %1873
      %1877 = vset.pattern.permute.xlu0 0
      %1878 = vperm.xlu0 %1877, %v1867
      %v1879 = vpop.permute.xlu0 %1878
      %1882 = vset.pattern.permute.xlu0 0
      %1883 = vperm.xlu0 %1882, %v1868
      %v1884 = vpop.permute.xlu0 %1883
      %1887 = vset.pattern.permute.xlu0 0
      %1888 = vperm.xlu0 %1887, %v1869
      %v1889 = vpop.permute.xlu0 %1888
      %1892 = vset.pattern.permute.xlu0 0
      %1893 = vperm.xlu0 %1892, %v1870
      %v1894 = vpop.permute.xlu0 %1893
      %v1897 = vsel %vm378, %v1861, 0
      %v1900 = vsel %vm378, %v1862, 0
      %v1903 = vsel %vm378, %v1863, 0
      %v1906 = vsel %vm378, %v1864, 0
      %v1909 = vsel %vm378, %v1865, 0
      %1911 = vmatprep.subr.mxu0 0.0
      %1912 = vmatpush1.msra.mxu0 0.0
      %1913 = vmatprep.subr.mxu0 0.0
      %1914 = vmatpush1.msra.mxu0 0.0
      %1915 = vmatprep.subr.mxu0 0.0
      %1916 = vmatpush1.msra.mxu0 0.0
      %1917 = vmatprep.subr.mxu0 0.0
      %1918 = vmatpush1.msra.mxu0 0.0
      %1919 = vmatprep.subr.mxu0 0.0
      %1920 = vmatpush1.msra.mxu0 0.0
      %1921 = vmatprep.subr.mxu0 0.0
      %1922 = vmatpush1.msra.mxu0 0.0
      %1923 = vmatprep.subr.mxu0 0.0
      %1924 = vmatpush1.msra.mxu0 0.0
      %1925 = vmatprep.subr.mxu0 0.0
      %1926 = vmatpush1.msra.mxu0 0.0
      %1927 = vmatprep.subr.mxu0 0.0
      %1928 = vmatpush1.msra.mxu0 0.0
      %1929 = vmatprep.subr.mxu0 0.0
      %1930 = vmatpush1.msra.mxu0 0.0
      %1931 = vmatprep.subr.mxu0 0.0
      %1932 = vmatpush1.msra.mxu0 0.0
      %1933 = vmatprep.subr.mxu0 %v1860
      %1934 = vmatpush1.msra.mxu0 %v1859
      %1935 = vmatprep.subr.mxu0 %v1858
      %1936 = vmatpush1.msra.mxu0 %v1857
      %1937 = vmatprep.subr.mxu0 %v1856
      %1938 = vmatpush1.msra.mxu0 %v1855
      %1939 = vmatprep.subr.mxu0 %v1854
      %1940 = vmatpush1.msra.mxu0 %v1853
      %1941 = vmatprep.subr.mxu0 %v1852
      %1942 = vmatpush1.msra.mxu0 %v1851
      %1943 = vmatprep.subr.mxu0 0.0
      %1944 = vmatpush2.msra.mxu0 0.0
      %1945 = vmatprep.subr.mxu0 0.0
      %1946 = vmatpush2.msra.mxu0 0.0
      %1947 = vmatprep.subr.mxu0 0.0
      %1948 = vmatpush2.msra.mxu0 0.0
      %1949 = vmatprep.subr.mxu0 0.0
      %1950 = vmatpush2.msra.mxu0 0.0
      %1951 = vmatprep.subr.mxu0 0.0
      %1952 = vmatpush2.msra.mxu0 0.0
      %1953 = vmatprep.subr.mxu0 0.0
      %1954 = vmatpush2.msra.mxu0 0.0
      %1955 = vmatprep.subr.mxu0 0.0
      %1956 = vmatpush2.msra.mxu0 0.0
      %1957 = vmatprep.subr.mxu0 0.0
      %1958 = vmatpush2.msra.mxu0 0.0
      %1959 = vmatprep.subr.mxu0 0.0
      %1960 = vmatpush2.msra.mxu0 0.0
      %1961 = vmatprep.subr.mxu0 0.0
      %1962 = vmatpush2.msra.mxu0 0.0
      %1963 = vmatprep.subr.mxu0 0.0
      %1964 = vmatpush2.msra.mxu0 0.0
      %1965 = vmatprep.subr.mxu0 0.0
      %1966 = vmatpush2.msra.mxu0 0.0
      %1967 = vmatprep.subr.mxu0 0.0
      %1968 = vmatpush2.msra.mxu0 0.0
      %1969 = vmatprep.subr.mxu0 0.0
      %1970 = vmatpush2.msra.mxu0 0.0
      %1971 = vmatprep.subr.mxu0 0.0
      %1972 = vmatpush2.msra.mxu0 0.0
      %1973 = vmatprep.subr.mxu0 0.0
      %1974 = vmatpush2.msra.mxu0 0.0
      %1975 = vmatprep.mubr.f32.mxu0 0.0
      %1976 = vmatmul.mubr.f32.gmra.mxu0 %v1897
      %v1977 = vpop.f32.mrf.mxu0
      %v1978 = vadd.f32 %v1874, %v1977
      %v1979 = vpop.f32.mrf.mxu0
      %v1980 = vadd.f32 %v1874, %v1979
      %1981 = vmatprep.mubr.f32.mxu0 0.0
      %1982 = vmatmul.mubr.f32.gmra.mxu0 %v1900
      %v1983 = vpop.f32.mrf.mxu0
      %v1984 = vadd.f32 %v1879, %v1983
      %v1985 = vpop.f32.mrf.mxu0
      %v1986 = vadd.f32 %v1879, %v1985
      %1987 = vmatprep.mubr.f32.mxu0 0.0
      %1988 = vmatmul.mubr.f32.gmra.mxu0 %v1903
      %v1989 = vpop.f32.mrf.mxu0
      %v1990 = vadd.f32 %v1884, %v1989
      %v1991 = vpop.f32.mrf.mxu0
      %v1992 = vadd.f32 %v1884, %v1991
      %1993 = vmatprep.mubr.f32.mxu0 0.0
      %1994 = vmatmul.mubr.f32.gmra.mxu0 %v1906
      %v1995 = vpop.f32.mrf.mxu0
      %v1996 = vadd.f32 %v1889, %v1995
      %v1997 = vpop.f32.mrf.mxu0
      %v1998 = vadd.f32 %v1889, %v1997
      %1999 = vmatprep.mubr.f32.mxu0 0.0
      %2000 = vmatmul.mubr.f32.gmra.mxu0 %v1909
      %v2001 = vpop.f32.mrf.mxu0
      %v2002 = vadd.f32 %v1894, %v2001
      %v2003 = vpop.f32.mrf.mxu0
      %v2004 = vadd.f32 %v1894, %v2003
      %2005 = vdwg.mxu0
      %v2006 = vtanh.pop %v1978
      %v2007 = vtanh.pop %v1980
      %v2008 = vtanh.pop %v1984
      %v2009 = vtanh.pop %v1986
      %v2010 = vtanh.pop %v1990
      %v2011 = vtanh.pop %v1992
      %v2012 = vtanh.pop %v1996
      %v2013 = vtanh.pop %v1998
      %v2014 = vtanh.pop %v2002
      %v2015 = vtanh.pop %v2004
      %v2016 = vld [vmem:[%s970] sm:$0xff]
      %v2017 = vld [vmem:[%s970 + $0x8] sm:$0xff]
      %v2018 = vld [vmem:[%s970 + $0x10] sm:$0xff]
      %v2019 = vld [vmem:[%s970 + $0x18] sm:$0xff]
      %v2020 = vld [vmem:[%s970 + $0x20] sm:$0xff]
      %v2021 = vld [vmem:[%s976] sm:$0xff]
      %v2022 = vld [vmem:[%s976 + $0x8] sm:$0xff]
      %v2023 = vld [vmem:[%s976 + $0x10] sm:$0xff]
      %v2024 = vld [vmem:[%s976 + $0x18] sm:$0xff]
      %v2025 = vld [vmem:[%s976 + $0x20] sm:$0xff]
      %2027 = vset.pattern.permute.xlu0 0
      %2028 = vperm.xlu0 %2027, %v2021
      %v2029 = vpop.permute.xlu0 %2028
      %2032 = vset.pattern.permute.xlu0 0
      %2033 = vperm.xlu0 %2032, %v2022
      %v2034 = vpop.permute.xlu0 %2033
      %2037 = vset.pattern.permute.xlu0 0
      %2038 = vperm.xlu0 %2037, %v2023
      %v2039 = vpop.permute.xlu0 %2038
      %2042 = vset.pattern.permute.xlu0 0
      %2043 = vperm.xlu0 %2042, %v2024
      %v2044 = vpop.permute.xlu0 %2043
      %2047 = vset.pattern.permute.xlu0 0
      %2048 = vperm.xlu0 %2047, %v2025
      %v2049 = vpop.permute.xlu0 %2048
      %v2052 = vsel %vm378, %v2016, 0
      %v2055 = vsel %vm378, %v2017, 0
      %v2058 = vsel %vm378, %v2018, 0
      %v2061 = vsel %vm378, %v2019, 0
      %v2064 = vsel %vm378, %v2020, 0
      %2066 = vmatprep.subr.mxu0 0.0
      %2067 = vmatpush1.msra.mxu0 0.0
      %2068 = vmatprep.subr.mxu0 0.0
      %2069 = vmatpush1.msra.mxu0 0.0
      %2070 = vmatprep.subr.mxu0 0.0
      %2071 = vmatpush1.msra.mxu0 0.0
      %2072 = vmatprep.subr.mxu0 0.0
      %2073 = vmatpush1.msra.mxu0 0.0
      %2074 = vmatprep.subr.mxu0 0.0
      %2075 = vmatpush1.msra.mxu0 0.0
      %2076 = vmatprep.subr.mxu0 0.0
      %2077 = vmatpush1.msra.mxu0 0.0
      %2078 = vmatprep.subr.mxu0 0.0
      %2079 = vmatpush1.msra.mxu0 0.0
      %2080 = vmatprep.subr.mxu0 0.0
      %2081 = vmatpush1.msra.mxu0 0.0
      %2082 = vmatprep.subr.mxu0 0.0
      %2083 = vmatpush1.msra.mxu0 0.0
      %2084 = vmatprep.subr.mxu0 0.0
      %2085 = vmatpush1.msra.mxu0 0.0
      %2086 = vmatprep.subr.mxu0 0.0
      %2087 = vmatpush1.msra.mxu0 0.0
      %2088 = vmatprep.subr.mxu0 %v2015
      %2089 = vmatpush1.msra.mxu0 %v2014
      %2090 = vmatprep.subr.mxu0 %v2013
      %2091 = vmatpush1.msra.mxu0 %v2012
      %2092 = vmatprep.subr.mxu0 %v2011
      %2093 = vmatpush1.msra.mxu0 %v2010
      %2094 = vmatprep.subr.mxu0 %v2009
      %2095 = vmatpush1.msra.mxu0 %v2008
      %2096 = vmatprep.subr.mxu0 %v2007
      %2097 = vmatpush1.msra.mxu0 %v2006
      %2098 = vmatprep.subr.mxu0 0.0
      %2099 = vmatpush2.msra.mxu0 0.0
      %2100 = vmatprep.subr.mxu0 0.0
      %2101 = vmatpush2.msra.mxu0 0.0
      %2102 = vmatprep.subr.mxu0 0.0
      %2103 = vmatpush2.msra.mxu0 0.0
      %2104 = vmatprep.subr.mxu0 0.0
      %2105 = vmatpush2.msra.mxu0 0.0
      %2106 = vmatprep.subr.mxu0 0.0
      %2107 = vmatpush2.msra.mxu0 0.0
      %2108 = vmatprep.subr.mxu0 0.0
      %2109 = vmatpush2.msra.mxu0 0.0
      %2110 = vmatprep.subr.mxu0 0.0
      %2111 = vmatpush2.msra.mxu0 0.0
      %2112 = vmatprep.subr.mxu0 0.0
      %2113 = vmatpush2.msra.mxu0 0.0
      %2114 = vmatprep.subr.mxu0 0.0
      %2115 = vmatpush2.msra.mxu0 0.0
      %2116 = vmatprep.subr.mxu0 0.0
      %2117 = vmatpush2.msra.mxu0 0.0
      %2118 = vmatprep.subr.mxu0 0.0
      %2119 = vmatpush2.msra.mxu0 0.0
      %2120 = vmatprep.subr.mxu0 0.0
      %2121 = vmatpush2.msra.mxu0 0.0
      %2122 = vmatprep.subr.mxu0 0.0
      %2123 = vmatpush2.msra.mxu0 0.0
      %2124 = vmatprep.subr.mxu0 0.0
      %2125 = vmatpush2.msra.mxu0 0.0
      %2126 = vmatprep.subr.mxu0 0.0
      %2127 = vmatpush2.msra.mxu0 0.0
      %2128 = vmatprep.subr.mxu0 0.0
      %2129 = vmatpush2.msra.mxu0 0.0
      %2130 = vmatprep.mubr.f32.mxu0 0.0
      %2131 = vmatmul.mubr.f32.gmra.mxu0 %v2052
      %v2132 = vpop.f32.mrf.mxu0
      %v2133 = vadd.f32 %v2029, %v2132
      %v2134 = vpop.f32.mrf.mxu0
      %v2135 = vadd.f32 %v2029, %v2134
      %2136 = vmatprep.mubr.f32.mxu0 0.0
      %2137 = vmatmul.mubr.f32.gmra.mxu0 %v2055
      %v2138 = vpop.f32.mrf.mxu0
      %v2139 = vadd.f32 %v2034, %v2138
      %v2140 = vpop.f32.mrf.mxu0
      %v2141 = vadd.f32 %v2034, %v2140
      %2142 = vmatprep.mubr.f32.mxu0 0.0
      %2143 = vmatmul.mubr.f32.gmra.mxu0 %v2058
      %v2144 = vpop.f32.mrf.mxu0
      %v2145 = vadd.f32 %v2039, %v2144
      %v2146 = vpop.f32.mrf.mxu0
      %v2147 = vadd.f32 %v2039, %v2146
      %2148 = vmatprep.mubr.f32.mxu0 0.0
      %2149 = vmatmul.mubr.f32.gmra.mxu0 %v2061
      %v2150 = vpop.f32.mrf.mxu0
      %v2151 = vadd.f32 %v2044, %v2150
      %v2152 = vpop.f32.mrf.mxu0
      %v2153 = vadd.f32 %v2044, %v2152
      %2154 = vmatprep.mubr.f32.mxu0 0.0
      %2155 = vmatmul.mubr.f32.gmra.mxu0 %v2064
      %v2156 = vpop.f32.mrf.mxu0
      %v2157 = vadd.f32 %v2049, %v2156
      %v2158 = vpop.f32.mrf.mxu0
      %v2159 = vadd.f32 %v2049, %v2158
      %2160 = vdwg.mxu0
      %v2161 = vtanh.pop %v2133
      %v2162 = vtanh.pop %v2135
      %v2163 = vtanh.pop %v2139
      %v2164 = vtanh.pop %v2141
      %v2165 = vtanh.pop %v2145
      %v2166 = vtanh.pop %v2147
      %v2167 = vtanh.pop %v2151
      %v2168 = vtanh.pop %v2153
      %v2169 = vtanh.pop %v2157
      %v2170 = vtanh.pop %v2159
      %v2171 = vld [vmem:[%s1127] sm:$0xff]
      %v2172 = vld [vmem:[%s1129] sm:$0xff]
      %2174 = vset.pattern.permute.xlu0 0
      %2175 = vperm.xlu0 %2174, %v2172
      %v2176 = vpop.permute.xlu0 %2175
      %v2179 = vsel %vm378, %v2171, 0
      %2181 = vmatprep.subr.mxu0 0.0
      %2182 = vmatpush1.msra.mxu0 0.0
      %2183 = vmatprep.subr.mxu0 0.0
      %2184 = vmatpush1.msra.mxu0 0.0
      %2185 = vmatprep.subr.mxu0 0.0
      %2186 = vmatpush1.msra.mxu0 0.0
      %2187 = vmatprep.subr.mxu0 0.0
      %2188 = vmatpush1.msra.mxu0 0.0
      %2189 = vmatprep.subr.mxu0 0.0
      %2190 = vmatpush1.msra.mxu0 0.0
      %2191 = vmatprep.subr.mxu0 0.0
      %2192 = vmatpush1.msra.mxu0 0.0
      %2193 = vmatprep.subr.mxu0 0.0
      %2194 = vmatpush1.msra.mxu0 0.0
      %2195 = vmatprep.subr.mxu0 0.0
      %2196 = vmatpush1.msra.mxu0 0.0
      %2197 = vmatprep.subr.mxu0 0.0
      %2198 = vmatpush1.msra.mxu0 0.0
      %2199 = vmatprep.subr.mxu0 0.0
      %2200 = vmatpush1.msra.mxu0 0.0
      %2201 = vmatprep.subr.mxu0 0.0
      %2202 = vmatpush1.msra.mxu0 0.0
      %2203 = vmatprep.subr.mxu0 %v2170
      %2204 = vmatpush1.msra.mxu0 %v2169
      %2205 = vmatprep.subr.mxu0 %v2168
      %2206 = vmatpush1.msra.mxu0 %v2167
      %2207 = vmatprep.subr.mxu0 %v2166
      %2208 = vmatpush1.msra.mxu0 %v2165
      %2209 = vmatprep.subr.mxu0 %v2164
      %2210 = vmatpush1.msra.mxu0 %v2163
      %2211 = vmatprep.subr.mxu0 %v2162
      %2212 = vmatpush1.msra.mxu0 %v2161
      %2213 = vmatprep.subr.mxu0 0.0
      %2214 = vmatpush2.msra.mxu0 0.0
      %2215 = vmatprep.subr.mxu0 0.0
      %2216 = vmatpush2.msra.mxu0 0.0
      %2217 = vmatprep.subr.mxu0 0.0
      %2218 = vmatpush2.msra.mxu0 0.0
      %2219 = vmatprep.subr.mxu0 0.0
      %2220 = vmatpush2.msra.mxu0 0.0
      %2221 = vmatprep.subr.mxu0 0.0
      %2222 = vmatpush2.msra.mxu0 0.0
      %2223 = vmatprep.subr.mxu0 0.0
      %2224 = vmatpush2.msra.mxu0 0.0
      %2225 = vmatprep.subr.mxu0 0.0
      %2226 = vmatpush2.msra.mxu0 0.0
      %2227 = vmatprep.subr.mxu0 0.0
      %2228 = vmatpush2.msra.mxu0 0.0
      %2229 = vmatprep.subr.mxu0 0.0
      %2230 = vmatpush2.msra.mxu0 0.0
      %2231 = vmatprep.subr.mxu0 0.0
      %2232 = vmatpush2.msra.mxu0 0.0
      %2233 = vmatprep.subr.mxu0 0.0
      %2234 = vmatpush2.msra.mxu0 0.0
      %2235 = vmatprep.subr.mxu0 0.0
      %2236 = vmatpush2.msra.mxu0 0.0
      %2237 = vmatprep.subr.mxu0 0.0
      %2238 = vmatpush2.msra.mxu0 0.0
      %2239 = vmatprep.subr.mxu0 0.0
      %2240 = vmatpush2.msra.mxu0 0.0
      %2241 = vmatprep.subr.mxu0 0.0
      %2242 = vmatpush2.msra.mxu0 0.0
      %2243 = vmatprep.subr.mxu0 0.0
      %2244 = vmatpush2.msra.mxu0 0.0
      %2245 = vmatprep.mubr.f32.mxu0 0.0
      %2246 = vmatmul.mubr.f32.gmra.mxu0 %v2179
      %v2247 = vpop.f32.mrf.mxu0
      %v2248 = vadd.f32 %v2176, %v2247
      %v2249 = vpop.f32.mrf.mxu0
      %v2250 = vadd.f32 %v2176, %v2249
      %2251 = vdwg.mxu0
      %v2254 = vcombine.low %v2248, %v2250
      %v2256 = vunpack.c.l.s4 1966171168
      %v2257 = vunpack.c.0.s8 %v2256
      %v2258 = vlaneseq
      %v2259 = vshrl.u32 %v2258, 7
      %v2260 = vsub.s32 %v2257, %v2259
      %v2261 = vrot.slane %v2254, %v2260
      %v2263 = vunpack.c.l.s4 1966171168
      %v2264 = vunpack.c.0.s8 %v2263
      %v2265 = vlaneseq
      %v2266 = vshrl.u32 %v2265, 7
      %v2267 = vsub.s32 %v2264, %v2266
      %v2268 = vrot.slane %v2261, %v2267
      %s2270 = scalar_lea.vmem %s175, 2
      %2271 = vst.msk [vmem:[%s2270] sm:$0x3] %vm1231, %v2268
      %s2272 = scalar_lea.vmem %s169, 16
      %v2273 = vld [vmem:[%s2272] sm:$0x77]
      %v2274 = vld [vmem:[%s1] sm:$0xff]
      %v2275 = vld [vmem:[%s1 + $0x8] sm:$0xff]
      %v2276 = vld [vmem:[%s1 + $0x10] sm:$0xff]
      %v2277 = vld [vmem:[%s1 + $0x18] sm:$0xff]
      %v2278 = vld [vmem:[%s1 + $0x20] sm:$0xff]
      %v2279 = vld [vmem:[%s2] sm:$0xff]
      %v2280 = vld [vmem:[%s2 + $0x8] sm:$0xff]
      %v2281 = vld [vmem:[%s2 + $0x10] sm:$0xff]
      %v2282 = vld [vmem:[%s2 + $0x18] sm:$0xff]
      %v2283 = vld [vmem:[%s2 + $0x20] sm:$0xff]
      %2285 = vset.pattern.permute.xlu0 0
      %2286 = vperm.xlu0 %2285, %v2279
      %v2287 = vpop.permute.xlu0 %2286
      %2290 = vset.pattern.permute.xlu0 0
      %2291 = vperm.xlu0 %2290, %v2280
      %v2292 = vpop.permute.xlu0 %2291
      %2295 = vset.pattern.permute.xlu0 0
      %2296 = vperm.xlu0 %2295, %v2281
      %v2297 = vpop.permute.xlu0 %2296
      %2300 = vset.pattern.permute.xlu0 0
      %2301 = vperm.xlu0 %2300, %v2282
      %v2302 = vpop.permute.xlu0 %2301
      %2305 = vset.pattern.permute.xlu0 0
      %2306 = vperm.xlu0 %2305, %v2283
      %v2307 = vpop.permute.xlu0 %2306
      %v2310 = vcombine.high %v2273, %v2273
      %v2312 = vsel %vm215, %v2274, 0
      %v2315 = vsel %vm215, %v2275, 0
      %v2318 = vsel %vm215, %v2276, 0
      %v2321 = vsel %vm215, %v2277, 0
      %v2324 = vsel %vm215, %v2278, 0
      %v2326 = vsel %vm231, %v2273, 0
      %v2328 = vsel %vm231, %v2310, 0
      %2330 = vmatprep.subr.mxu0 0.0
      %2331 = vmatpush1.msra.mxu0 0.0
      %2332 = vmatprep.subr.mxu0 0.0
      %2333 = vmatpush1.msra.mxu0 0.0
      %2334 = vmatprep.subr.mxu0 0.0
      %2335 = vmatpush1.msra.mxu0 0.0
      %2336 = vmatprep.subr.mxu0 0.0
      %2337 = vmatpush1.msra.mxu0 0.0
      %2338 = vmatprep.subr.mxu0 0.0
      %2339 = vmatpush1.msra.mxu0 0.0
      %2340 = vmatprep.subr.mxu0 0.0
      %2341 = vmatpush1.msra.mxu0 0.0
      %2342 = vmatprep.subr.mxu0 0.0
      %2343 = vmatpush1.msra.mxu0 0.0
      %2344 = vmatprep.subr.mxu0 0.0
      %2345 = vmatpush1.msra.mxu0 0.0
      %2346 = vmatprep.subr.mxu0 0.0
      %2347 = vmatpush1.msra.mxu0 0.0
      %2348 = vmatprep.subr.mxu0 0.0
      %2349 = vmatpush1.msra.mxu0 0.0
      %2350 = vmatprep.subr.mxu0 0.0
      %2351 = vmatpush1.msra.mxu0 0.0
      %2352 = vmatprep.subr.mxu0 0.0
      %2353 = vmatpush1.msra.mxu0 0.0
      %2354 = vmatprep.subr.mxu0 0.0
      %2355 = vmatpush1.msra.mxu0 0.0
      %2356 = vmatprep.subr.mxu0 0.0
      %2357 = vmatpush1.msra.mxu0 0.0
      %2358 = vmatprep.subr.mxu0 0.0
      %2359 = vmatpush1.msra.mxu0 0.0
      %2360 = vmatprep.subr.mxu0 %v2328
      %2361 = vmatpush1.msra.mxu0 %v2326
      %2362 = vmatprep.subr.mxu0 0.0
      %2363 = vmatpush2.msra.mxu0 0.0
      %2364 = vmatprep.subr.mxu0 0.0
      %2365 = vmatpush2.msra.mxu0 0.0
      %2366 = vmatprep.subr.mxu0 0.0
      %2367 = vmatpush2.msra.mxu0 0.0
      %2368 = vmatprep.subr.mxu0 0.0
      %2369 = vmatpush2.msra.mxu0 0.0
      %2370 = vmatprep.subr.mxu0 0.0
      %2371 = vmatpush2.msra.mxu0 0.0
      %2372 = vmatprep.subr.mxu0 0.0
      %2373 = vmatpush2.msra.mxu0 0.0
      %2374 = vmatprep.subr.mxu0 0.0
      %2375 = vmatpush2.msra.mxu0 0.0
      %2376 = vmatprep.subr.mxu0 0.0
      %2377 = vmatpush2.msra.mxu0 0.0
      %2378 = vmatprep.subr.mxu0 0.0
      %2379 = vmatpush2.msra.mxu0 0.0
      %2380 = vmatprep.subr.mxu0 0.0
      %2381 = vmatpush2.msra.mxu0 0.0
      %2382 = vmatprep.subr.mxu0 0.0
      %2383 = vmatpush2.msra.mxu0 0.0
      %2384 = vmatprep.subr.mxu0 0.0
      %2385 = vmatpush2.msra.mxu0 0.0
      %2386 = vmatprep.subr.mxu0 0.0
      %2387 = vmatpush2.msra.mxu0 0.0
      %2388 = vmatprep.subr.mxu0 0.0
      %2389 = vmatpush2.msra.mxu0 0.0
      %2390 = vmatprep.subr.mxu0 0.0
      %2391 = vmatpush2.msra.mxu0 0.0
      %2392 = vmatprep.subr.mxu0 0.0
      %2393 = vmatpush2.msra.mxu0 0.0
      %2394 = vmatprep.mubr.f32.mxu0 0.0
      %2395 = vmatmul.mubr.f32.gmra.mxu0 %v2312
      %v2396 = vpop.f32.mrf.mxu0
      %v2397 = vadd.f32 %v2287, %v2396
      %v2398 = vpop.f32.mrf.mxu0
      %v2399 = vadd.f32 %v2287, %v2398
      %2400 = vmatprep.mubr.f32.mxu0 0.0
      %2401 = vmatmul.mubr.f32.gmra.mxu0 %v2315
      %v2402 = vpop.f32.mrf.mxu0
      %v2403 = vadd.f32 %v2292, %v2402
      %v2404 = vpop.f32.mrf.mxu0
      %v2405 = vadd.f32 %v2292, %v2404
      %2406 = vmatprep.mubr.f32.mxu0 0.0
      %2407 = vmatmul.mubr.f32.gmra.mxu0 %v2318
      %v2408 = vpop.f32.mrf.mxu0
      %v2409 = vadd.f32 %v2297, %v2408
      %v2410 = vpop.f32.mrf.mxu0
      %v2411 = vadd.f32 %v2297, %v2410
      %2412 = vmatprep.mubr.f32.mxu0 0.0
      %2413 = vmatmul.mubr.f32.gmra.mxu0 %v2321
      %v2414 = vpop.f32.mrf.mxu0
      %v2415 = vadd.f32 %v2302, %v2414
      %v2416 = vpop.f32.mrf.mxu0
      %v2417 = vadd.f32 %v2302, %v2416
      %2418 = vmatprep.mubr.f32.mxu0 0.0
      %2419 = vmatmul.mubr.f32.gmra.mxu0 %v2324
      %v2420 = vpop.f32.mrf.mxu0
      %v2421 = vadd.f32 %v2307, %v2420
      %v2422 = vpop.f32.mrf.mxu0
      %v2423 = vadd.f32 %v2307, %v2422
      %2424 = vdwg.mxu0
      %v2425 = vtanh.pop %v2397
      %v2426 = vtanh.pop %v2399
      %v2427 = vtanh.pop %v2403
      %v2428 = vtanh.pop %v2405
      %v2429 = vtanh.pop %v2409
      %v2430 = vtanh.pop %v2411
      %v2431 = vtanh.pop %v2415
      %v2432 = vtanh.pop %v2417
      %v2433 = vtanh.pop %v2421
      %v2434 = vtanh.pop %v2423
      %v2435 = vld [vmem:[%s341] sm:$0xff]
      %v2436 = vld [vmem:[%s341 + $0x8] sm:$0xff]
      %v2437 = vld [vmem:[%s341 + $0x10] sm:$0xff]
      %v2438 = vld [vmem:[%s341 + $0x18] sm:$0xff]
      %v2439 = vld [vmem:[%s341 + $0x20] sm:$0xff]
      %v2440 = vld [vmem:[%s347] sm:$0xff]
      %v2441 = vld [vmem:[%s347 + $0x8] sm:$0xff]
      %v2442 = vld [vmem:[%s347 + $0x10] sm:$0xff]
      %v2443 = vld [vmem:[%s347 + $0x18] sm:$0xff]
      %v2444 = vld [vmem:[%s347 + $0x20] sm:$0xff]
      %2446 = vset.pattern.permute.xlu0 0
      %2447 = vperm.xlu0 %2446, %v2440
      %v2448 = vpop.permute.xlu0 %2447
      %2451 = vset.pattern.permute.xlu0 0
      %2452 = vperm.xlu0 %2451, %v2441
      %v2453 = vpop.permute.xlu0 %2452
      %2456 = vset.pattern.permute.xlu0 0
      %2457 = vperm.xlu0 %2456, %v2442
      %v2458 = vpop.permute.xlu0 %2457
      %2461 = vset.pattern.permute.xlu0 0
      %2462 = vperm.xlu0 %2461, %v2443
      %v2463 = vpop.permute.xlu0 %2462
      %2466 = vset.pattern.permute.xlu0 0
      %2467 = vperm.xlu0 %2466, %v2444
      %v2468 = vpop.permute.xlu0 %2467
      %v2471 = vsel %vm378, %v2435, 0
      %v2474 = vsel %vm378, %v2436, 0
      %v2477 = vsel %vm378, %v2437, 0
      %v2480 = vsel %vm378, %v2438, 0
      %v2483 = vsel %vm378, %v2439, 0
      %2485 = vmatprep.subr.mxu0 0.0
      %2486 = vmatpush1.msra.mxu0 0.0
      %2487 = vmatprep.subr.mxu0 0.0
      %2488 = vmatpush1.msra.mxu0 0.0
      %2489 = vmatprep.subr.mxu0 0.0
      %2490 = vmatpush1.msra.mxu0 0.0
      %2491 = vmatprep.subr.mxu0 0.0
      %2492 = vmatpush1.msra.mxu0 0.0
      %2493 = vmatprep.subr.mxu0 0.0
      %2494 = vmatpush1.msra.mxu0 0.0
      %2495 = vmatprep.subr.mxu0 0.0
      %2496 = vmatpush1.msra.mxu0 0.0
      %2497 = vmatprep.subr.mxu0 0.0
      %2498 = vmatpush1.msra.mxu0 0.0
      %2499 = vmatprep.subr.mxu0 0.0
      %2500 = vmatpush1.msra.mxu0 0.0
      %2501 = vmatprep.subr.mxu0 0.0
      %2502 = vmatpush1.msra.mxu0 0.0
      %2503 = vmatprep.subr.mxu0 0.0
      %2504 = vmatpush1.msra.mxu0 0.0
      %2505 = vmatprep.subr.mxu0 0.0
      %2506 = vmatpush1.msra.mxu0 0.0
      %2507 = vmatprep.subr.mxu0 %v2434
      %2508 = vmatpush1.msra.mxu0 %v2433
      %2509 = vmatprep.subr.mxu0 %v2432
      %2510 = vmatpush1.msra.mxu0 %v2431
      %2511 = vmatprep.subr.mxu0 %v2430
      %2512 = vmatpush1.msra.mxu0 %v2429
      %2513 = vmatprep.subr.mxu0 %v2428
      %2514 = vmatpush1.msra.mxu0 %v2427
      %2515 = vmatprep.subr.mxu0 %v2426
      %2516 = vmatpush1.msra.mxu0 %v2425
      %2517 = vmatprep.subr.mxu0 0.0
      %2518 = vmatpush2.msra.mxu0 0.0
      %2519 = vmatprep.subr.mxu0 0.0
      %2520 = vmatpush2.msra.mxu0 0.0
      %2521 = vmatprep.subr.mxu0 0.0
      %2522 = vmatpush2.msra.mxu0 0.0
      %2523 = vmatprep.subr.mxu0 0.0
      %2524 = vmatpush2.msra.mxu0 0.0
      %2525 = vmatprep.subr.mxu0 0.0
      %2526 = vmatpush2.msra.mxu0 0.0
      %2527 = vmatprep.subr.mxu0 0.0
      %2528 = vmatpush2.msra.mxu0 0.0
      %2529 = vmatprep.subr.mxu0 0.0
      %2530 = vmatpush2.msra.mxu0 0.0
      %2531 = vmatprep.subr.mxu0 0.0
      %2532 = vmatpush2.msra.mxu0 0.0
      %2533 = vmatprep.subr.mxu0 0.0
      %2534 = vmatpush2.msra.mxu0 0.0
      %2535 = vmatprep.subr.mxu0 0.0
      %2536 = vmatpush2.msra.mxu0 0.0
      %2537 = vmatprep.subr.mxu0 0.0
      %2538 = vmatpush2.msra.mxu0 0.0
      %2539 = vmatprep.subr.mxu0 0.0
      %2540 = vmatpush2.msra.mxu0 0.0
      %2541 = vmatprep.subr.mxu0 0.0
      %2542 = vmatpush2.msra.mxu0 0.0
      %2543 = vmatprep.subr.mxu0 0.0
      %2544 = vmatpush2.msra.mxu0 0.0
      %2545 = vmatprep.subr.mxu0 0.0
      %2546 = vmatpush2.msra.mxu0 0.0
      %2547 = vmatprep.subr.mxu0 0.0
      %2548 = vmatpush2.msra.mxu0 0.0
      %2549 = vmatprep.mubr.f32.mxu0 0.0
      %2550 = vmatmul.mubr.f32.gmra.mxu0 %v2471
      %v2551 = vpop.f32.mrf.mxu0
      %v2552 = vadd.f32 %v2448, %v2551
      %v2553 = vpop.f32.mrf.mxu0
      %v2554 = vadd.f32 %v2448, %v2553
      %2555 = vmatprep.mubr.f32.mxu0 0.0
      %2556 = vmatmul.mubr.f32.gmra.mxu0 %v2474
      %v2557 = vpop.f32.mrf.mxu0
      %v2558 = vadd.f32 %v2453, %v2557
      %v2559 = vpop.f32.mrf.mxu0
      %v2560 = vadd.f32 %v2453, %v2559
      %2561 = vmatprep.mubr.f32.mxu0 0.0
      %2562 = vmatmul.mubr.f32.gmra.mxu0 %v2477
      %v2563 = vpop.f32.mrf.mxu0
      %v2564 = vadd.f32 %v2458, %v2563
      %v2565 = vpop.f32.mrf.mxu0
      %v2566 = vadd.f32 %v2458, %v2565
      %2567 = vmatprep.mubr.f32.mxu0 0.0
      %2568 = vmatmul.mubr.f32.gmra.mxu0 %v2480
      %v2569 = vpop.f32.mrf.mxu0
      %v2570 = vadd.f32 %v2463, %v2569
      %v2571 = vpop.f32.mrf.mxu0
      %v2572 = vadd.f32 %v2463, %v2571
      %2573 = vmatprep.mubr.f32.mxu0 0.0
      %2574 = vmatmul.mubr.f32.gmra.mxu0 %v2483
      %v2575 = vpop.f32.mrf.mxu0
      %v2576 = vadd.f32 %v2468, %v2575
      %v2577 = vpop.f32.mrf.mxu0
      %v2578 = vadd.f32 %v2468, %v2577
      %2579 = vdwg.mxu0
      %v2580 = vtanh.pop %v2552
      %v2581 = vtanh.pop %v2554
      %v2582 = vtanh.pop %v2558
      %v2583 = vtanh.pop %v2560
      %v2584 = vtanh.pop %v2564
      %v2585 = vtanh.pop %v2566
      %v2586 = vtanh.pop %v2570
      %v2587 = vtanh.pop %v2572
      %v2588 = vtanh.pop %v2576
      %v2589 = vtanh.pop %v2578
      %v2590 = vld [vmem:[%s499] sm:$0xff]
      %v2591 = vld [vmem:[%s499 + $0x8] sm:$0xff]
      %v2592 = vld [vmem:[%s499 + $0x10] sm:$0xff]
      %v2593 = vld [vmem:[%s499 + $0x18] sm:$0xff]
      %v2594 = vld [vmem:[%s499 + $0x20] sm:$0xff]
      %v2595 = vld [vmem:[%s505] sm:$0xff]
      %v2596 = vld [vmem:[%s505 + $0x8] sm:$0xff]
      %v2597 = vld [vmem:[%s505 + $0x10] sm:$0xff]
      %v2598 = vld [vmem:[%s505 + $0x18] sm:$0xff]
      %v2599 = vld [vmem:[%s505 + $0x20] sm:$0xff]
      %2601 = vset.pattern.permute.xlu0 0
      %2602 = vperm.xlu0 %2601, %v2595
      %v2603 = vpop.permute.xlu0 %2602
      %2606 = vset.pattern.permute.xlu0 0
      %2607 = vperm.xlu0 %2606, %v2596
      %v2608 = vpop.permute.xlu0 %2607
      %2611 = vset.pattern.permute.xlu0 0
      %2612 = vperm.xlu0 %2611, %v2597
      %v2613 = vpop.permute.xlu0 %2612
      %2616 = vset.pattern.permute.xlu0 0
      %2617 = vperm.xlu0 %2616, %v2598
      %v2618 = vpop.permute.xlu0 %2617
      %2621 = vset.pattern.permute.xlu0 0
      %2622 = vperm.xlu0 %2621, %v2599
      %v2623 = vpop.permute.xlu0 %2622
      %v2626 = vsel %vm378, %v2590, 0
      %v2629 = vsel %vm378, %v2591, 0
      %v2632 = vsel %vm378, %v2592, 0
      %v2635 = vsel %vm378, %v2593, 0
      %v2638 = vsel %vm378, %v2594, 0
      %2640 = vmatprep.subr.mxu0 0.0
      %2641 = vmatpush1.msra.mxu0 0.0
      %2642 = vmatprep.subr.mxu0 0.0
      %2643 = vmatpush1.msra.mxu0 0.0
      %2644 = vmatprep.subr.mxu0 0.0
      %2645 = vmatpush1.msra.mxu0 0.0
      %2646 = vmatprep.subr.mxu0 0.0
      %2647 = vmatpush1.msra.mxu0 0.0
      %2648 = vmatprep.subr.mxu0 0.0
      %2649 = vmatpush1.msra.mxu0 0.0
      %2650 = vmatprep.subr.mxu0 0.0
      %2651 = vmatpush1.msra.mxu0 0.0
      %2652 = vmatprep.subr.mxu0 0.0
      %2653 = vmatpush1.msra.mxu0 0.0
      %2654 = vmatprep.subr.mxu0 0.0
      %2655 = vmatpush1.msra.mxu0 0.0
      %2656 = vmatprep.subr.mxu0 0.0
      %2657 = vmatpush1.msra.mxu0 0.0
      %2658 = vmatprep.subr.mxu0 0.0
      %2659 = vmatpush1.msra.mxu0 0.0
      %2660 = vmatprep.subr.mxu0 0.0
      %2661 = vmatpush1.msra.mxu0 0.0
      %2662 = vmatprep.subr.mxu0 %v2589
      %2663 = vmatpush1.msra.mxu0 %v2588
      %2664 = vmatprep.subr.mxu0 %v2587
      %2665 = vmatpush1.msra.mxu0 %v2586
      %2666 = vmatprep.subr.mxu0 %v2585
      %2667 = vmatpush1.msra.mxu0 %v2584
      %2668 = vmatprep.subr.mxu0 %v2583
      %2669 = vmatpush1.msra.mxu0 %v2582
      %2670 = vmatprep.subr.mxu0 %v2581
      %2671 = vmatpush1.msra.mxu0 %v2580
      %2672 = vmatprep.subr.mxu0 0.0
      %2673 = vmatpush2.msra.mxu0 0.0
      %2674 = vmatprep.subr.mxu0 0.0
      %2675 = vmatpush2.msra.mxu0 0.0
      %2676 = vmatprep.subr.mxu0 0.0
      %2677 = vmatpush2.msra.mxu0 0.0
      %2678 = vmatprep.subr.mxu0 0.0
      %2679 = vmatpush2.msra.mxu0 0.0
      %2680 = vmatprep.subr.mxu0 0.0
      %2681 = vmatpush2.msra.mxu0 0.0
      %2682 = vmatprep.subr.mxu0 0.0
      %2683 = vmatpush2.msra.mxu0 0.0
      %2684 = vmatprep.subr.mxu0 0.0
      %2685 = vmatpush2.msra.mxu0 0.0
      %2686 = vmatprep.subr.mxu0 0.0
      %2687 = vmatpush2.msra.mxu0 0.0
      %2688 = vmatprep.subr.mxu0 0.0
      %2689 = vmatpush2.msra.mxu0 0.0
      %2690 = vmatprep.subr.mxu0 0.0
      %2691 = vmatpush2.msra.mxu0 0.0
      %2692 = vmatprep.subr.mxu0 0.0
      %2693 = vmatpush2.msra.mxu0 0.0
      %2694 = vmatprep.subr.mxu0 0.0
      %2695 = vmatpush2.msra.mxu0 0.0
      %2696 = vmatprep.subr.mxu0 0.0
      %2697 = vmatpush2.msra.mxu0 0.0
      %2698 = vmatprep.subr.mxu0 0.0
      %2699 = vmatpush2.msra.mxu0 0.0
      %2700 = vmatprep.subr.mxu0 0.0
      %2701 = vmatpush2.msra.mxu0 0.0
      %2702 = vmatprep.subr.mxu0 0.0
      %2703 = vmatpush2.msra.mxu0 0.0
      %2704 = vmatprep.mubr.f32.mxu0 0.0
      %2705 = vmatmul.mubr.f32.gmra.mxu0 %v2626
      %v2706 = vpop.f32.mrf.mxu0
      %v2707 = vadd.f32 %v2603, %v2706
      %v2708 = vpop.f32.mrf.mxu0
      %v2709 = vadd.f32 %v2603, %v2708
      %2710 = vmatprep.mubr.f32.mxu0 0.0
      %2711 = vmatmul.mubr.f32.gmra.mxu0 %v2629
      %v2712 = vpop.f32.mrf.mxu0
      %v2713 = vadd.f32 %v2608, %v2712
      %v2714 = vpop.f32.mrf.mxu0
      %v2715 = vadd.f32 %v2608, %v2714
      %2716 = vmatprep.mubr.f32.mxu0 0.0
      %2717 = vmatmul.mubr.f32.gmra.mxu0 %v2632
      %v2718 = vpop.f32.mrf.mxu0
      %v2719 = vadd.f32 %v2613, %v2718
      %v2720 = vpop.f32.mrf.mxu0
      %v2721 = vadd.f32 %v2613, %v2720
      %2722 = vmatprep.mubr.f32.mxu0 0.0
      %2723 = vmatmul.mubr.f32.gmra.mxu0 %v2635
      %v2724 = vpop.f32.mrf.mxu0
      %v2725 = vadd.f32 %v2618, %v2724
      %v2726 = vpop.f32.mrf.mxu0
      %v2727 = vadd.f32 %v2618, %v2726
      %2728 = vmatprep.mubr.f32.mxu0 0.0
      %2729 = vmatmul.mubr.f32.gmra.mxu0 %v2638
      %v2730 = vpop.f32.mrf.mxu0
      %v2731 = vadd.f32 %v2623, %v2730
      %v2732 = vpop.f32.mrf.mxu0
      %v2733 = vadd.f32 %v2623, %v2732
      %2734 = vdwg.mxu0
      %v2735 = vtanh.pop %v2707
      %v2736 = vtanh.pop %v2709
      %v2737 = vtanh.pop %v2713
      %v2738 = vtanh.pop %v2715
      %v2739 = vtanh.pop %v2719
      %v2740 = vtanh.pop %v2721
      %v2741 = vtanh.pop %v2725
      %v2742 = vtanh.pop %v2727
      %v2743 = vtanh.pop %v2731
      %v2744 = vtanh.pop %v2733
      %v2745 = vld [vmem:[%s656] sm:$0xff]
      %v2746 = vld [vmem:[%s656 + $0x8] sm:$0xff]
      %v2747 = vld [vmem:[%s656 + $0x10] sm:$0xff]
      %v2748 = vld [vmem:[%s656 + $0x18] sm:$0xff]
      %v2749 = vld [vmem:[%s656 + $0x20] sm:$0xff]
      %v2750 = vld [vmem:[%s662] sm:$0xff]
      %v2751 = vld [vmem:[%s662 + $0x8] sm:$0xff]
      %v2752 = vld [vmem:[%s662 + $0x10] sm:$0xff]
      %v2753 = vld [vmem:[%s662 + $0x18] sm:$0xff]
      %v2754 = vld [vmem:[%s662 + $0x20] sm:$0xff]
      %2756 = vset.pattern.permute.xlu0 0
      %2757 = vperm.xlu0 %2756, %v2750
      %v2758 = vpop.permute.xlu0 %2757
      %2761 = vset.pattern.permute.xlu0 0
      %2762 = vperm.xlu0 %2761, %v2751
      %v2763 = vpop.permute.xlu0 %2762
      %2766 = vset.pattern.permute.xlu0 0
      %2767 = vperm.xlu0 %2766, %v2752
      %v2768 = vpop.permute.xlu0 %2767
      %2771 = vset.pattern.permute.xlu0 0
      %2772 = vperm.xlu0 %2771, %v2753
      %v2773 = vpop.permute.xlu0 %2772
      %2776 = vset.pattern.permute.xlu0 0
      %2777 = vperm.xlu0 %2776, %v2754
      %v2778 = vpop.permute.xlu0 %2777
      %v2781 = vsel %vm378, %v2745, 0
      %v2784 = vsel %vm378, %v2746, 0
      %v2787 = vsel %vm378, %v2747, 0
      %v2790 = vsel %vm378, %v2748, 0
      %v2793 = vsel %vm378, %v2749, 0
      %2795 = vmatprep.subr.mxu0 0.0
      %2796 = vmatpush1.msra.mxu0 0.0
      %2797 = vmatprep.subr.mxu0 0.0
      %2798 = vmatpush1.msra.mxu0 0.0
      %2799 = vmatprep.subr.mxu0 0.0
      %2800 = vmatpush1.msra.mxu0 0.0
      %2801 = vmatprep.subr.mxu0 0.0
      %2802 = vmatpush1.msra.mxu0 0.0
      %2803 = vmatprep.subr.mxu0 0.0
      %2804 = vmatpush1.msra.mxu0 0.0
      %2805 = vmatprep.subr.mxu0 0.0
      %2806 = vmatpush1.msra.mxu0 0.0
      %2807 = vmatprep.subr.mxu0 0.0
      %2808 = vmatpush1.msra.mxu0 0.0
      %2809 = vmatprep.subr.mxu0 0.0
      %2810 = vmatpush1.msra.mxu0 0.0
      %2811 = vmatprep.subr.mxu0 0.0
      %2812 = vmatpush1.msra.mxu0 0.0
      %2813 = vmatprep.subr.mxu0 0.0
      %2814 = vmatpush1.msra.mxu0 0.0
      %2815 = vmatprep.subr.mxu0 0.0
      %2816 = vmatpush1.msra.mxu0 0.0
      %2817 = vmatprep.subr.mxu0 %v2744
      %2818 = vmatpush1.msra.mxu0 %v2743
      %2819 = vmatprep.subr.mxu0 %v2742
      %2820 = vmatpush1.msra.mxu0 %v2741
      %2821 = vmatprep.subr.mxu0 %v2740
      %2822 = vmatpush1.msra.mxu0 %v2739
      %2823 = vmatprep.subr.mxu0 %v2738
      %2824 = vmatpush1.msra.mxu0 %v2737
      %2825 = vmatprep.subr.mxu0 %v2736
      %2826 = vmatpush1.msra.mxu0 %v2735
      %2827 = vmatprep.subr.mxu0 0.0
      %2828 = vmatpush2.msra.mxu0 0.0
      %2829 = vmatprep.subr.mxu0 0.0
      %2830 = vmatpush2.msra.mxu0 0.0
      %2831 = vmatprep.subr.mxu0 0.0
      %2832 = vmatpush2.msra.mxu0 0.0
      %2833 = vmatprep.subr.mxu0 0.0
      %2834 = vmatpush2.msra.mxu0 0.0
      %2835 = vmatprep.subr.mxu0 0.0
      %2836 = vmatpush2.msra.mxu0 0.0
      %2837 = vmatprep.subr.mxu0 0.0
      %2838 = vmatpush2.msra.mxu0 0.0
      %2839 = vmatprep.subr.mxu0 0.0
      %2840 = vmatpush2.msra.mxu0 0.0
      %2841 = vmatprep.subr.mxu0 0.0
      %2842 = vmatpush2.msra.mxu0 0.0
      %2843 = vmatprep.subr.mxu0 0.0
      %2844 = vmatpush2.msra.mxu0 0.0
      %2845 = vmatprep.subr.mxu0 0.0
      %2846 = vmatpush2.msra.mxu0 0.0
      %2847 = vmatprep.subr.mxu0 0.0
      %2848 = vmatpush2.msra.mxu0 0.0
      %2849 = vmatprep.subr.mxu0 0.0
      %2850 = vmatpush2.msra.mxu0 0.0
      %2851 = vmatprep.subr.mxu0 0.0
      %2852 = vmatpush2.msra.mxu0 0.0
      %2853 = vmatprep.subr.mxu0 0.0
      %2854 = vmatpush2.msra.mxu0 0.0
      %2855 = vmatprep.subr.mxu0 0.0
      %2856 = vmatpush2.msra.mxu0 0.0
      %2857 = vmatprep.subr.mxu0 0.0
      %2858 = vmatpush2.msra.mxu0 0.0
      %2859 = vmatprep.mubr.f32.mxu0 0.0
      %2860 = vmatmul.mubr.f32.gmra.mxu0 %v2781
      %v2861 = vpop.f32.mrf.mxu0
      %v2862 = vadd.f32 %v2758, %v2861
      %v2863 = vpop.f32.mrf.mxu0
      %v2864 = vadd.f32 %v2758, %v2863
      %2865 = vmatprep.mubr.f32.mxu0 0.0
      %2866 = vmatmul.mubr.f32.gmra.mxu0 %v2784
      %v2867 = vpop.f32.mrf.mxu0
      %v2868 = vadd.f32 %v2763, %v2867
      %v2869 = vpop.f32.mrf.mxu0
      %v2870 = vadd.f32 %v2763, %v2869
      %2871 = vmatprep.mubr.f32.mxu0 0.0
      %2872 = vmatmul.mubr.f32.gmra.mxu0 %v2787
      %v2873 = vpop.f32.mrf.mxu0
      %v2874 = vadd.f32 %v2768, %v2873
      %v2875 = vpop.f32.mrf.mxu0
      %v2876 = vadd.f32 %v2768, %v2875
      %2877 = vmatprep.mubr.f32.mxu0 0.0
      %2878 = vmatmul.mubr.f32.gmra.mxu0 %v2790
      %v2879 = vpop.f32.mrf.mxu0
      %v2880 = vadd.f32 %v2773, %v2879
      %v2881 = vpop.f32.mrf.mxu0
      %v2882 = vadd.f32 %v2773, %v2881
      %2883 = vmatprep.mubr.f32.mxu0 0.0
      %2884 = vmatmul.mubr.f32.gmra.mxu0 %v2793
      %v2885 = vpop.f32.mrf.mxu0
      %v2886 = vadd.f32 %v2778, %v2885
      %v2887 = vpop.f32.mrf.mxu0
      %v2888 = vadd.f32 %v2778, %v2887
      %2889 = vdwg.mxu0
      %v2890 = vtanh.pop %v2862
      %v2891 = vtanh.pop %v2864
      %v2892 = vtanh.pop %v2868
      %v2893 = vtanh.pop %v2870
      %v2894 = vtanh.pop %v2874
      %v2895 = vtanh.pop %v2876
      %v2896 = vtanh.pop %v2880
      %v2897 = vtanh.pop %v2882
      %v2898 = vtanh.pop %v2886
      %v2899 = vtanh.pop %v2888
      %v2900 = vld [vmem:[%s813] sm:$0xff]
      %v2901 = vld [vmem:[%s813 + $0x8] sm:$0xff]
      %v2902 = vld [vmem:[%s813 + $0x10] sm:$0xff]
      %v2903 = vld [vmem:[%s813 + $0x18] sm:$0xff]
      %v2904 = vld [vmem:[%s813 + $0x20] sm:$0xff]
      %v2905 = vld [vmem:[%s819] sm:$0xff]
      %v2906 = vld [vmem:[%s819 + $0x8] sm:$0xff]
      %v2907 = vld [vmem:[%s819 + $0x10] sm:$0xff]
      %v2908 = vld [vmem:[%s819 + $0x18] sm:$0xff]
      %v2909 = vld [vmem:[%s819 + $0x20] sm:$0xff]
      %2911 = vset.pattern.permute.xlu0 0
      %2912 = vperm.xlu0 %2911, %v2905
      %v2913 = vpop.permute.xlu0 %2912
      %2916 = vset.pattern.permute.xlu0 0
      %2917 = vperm.xlu0 %2916, %v2906
      %v2918 = vpop.permute.xlu0 %2917
      %2921 = vset.pattern.permute.xlu0 0
      %2922 = vperm.xlu0 %2921, %v2907
      %v2923 = vpop.permute.xlu0 %2922
      %2926 = vset.pattern.permute.xlu0 0
      %2927 = vperm.xlu0 %2926, %v2908
      %v2928 = vpop.permute.xlu0 %2927
      %2931 = vset.pattern.permute.xlu0 0
      %2932 = vperm.xlu0 %2931, %v2909
      %v2933 = vpop.permute.xlu0 %2932
      %v2936 = vsel %vm378, %v2900, 0
      %v2939 = vsel %vm378, %v2901, 0
      %v2942 = vsel %vm378, %v2902, 0
      %v2945 = vsel %vm378, %v2903, 0
      %v2948 = vsel %vm378, %v2904, 0
      %2950 = vmatprep.subr.mxu0 0.0
      %2951 = vmatpush1.msra.mxu0 0.0
      %2952 = vmatprep.subr.mxu0 0.0
      %2953 = vmatpush1.msra.mxu0 0.0
      %2954 = vmatprep.subr.mxu0 0.0
      %2955 = vmatpush1.msra.mxu0 0.0
      %2956 = vmatprep.subr.mxu0 0.0
      %2957 = vmatpush1.msra.mxu0 0.0
      %2958 = vmatprep.subr.mxu0 0.0
      %2959 = vmatpush1.msra.mxu0 0.0
      %2960 = vmatprep.subr.mxu0 0.0
      %2961 = vmatpush1.msra.mxu0 0.0
      %2962 = vmatprep.subr.mxu0 0.0
      %2963 = vmatpush1.msra.mxu0 0.0
      %2964 = vmatprep.subr.mxu0 0.0
      %2965 = vmatpush1.msra.mxu0 0.0
      %2966 = vmatprep.subr.mxu0 0.0
      %2967 = vmatpush1.msra.mxu0 0.0
      %2968 = vmatprep.subr.mxu0 0.0
      %2969 = vmatpush1.msra.mxu0 0.0
      %2970 = vmatprep.subr.mxu0 0.0
      %2971 = vmatpush1.msra.mxu0 0.0
      %2972 = vmatprep.subr.mxu0 %v2899
      %2973 = vmatpush1.msra.mxu0 %v2898
      %2974 = vmatprep.subr.mxu0 %v2897
      %2975 = vmatpush1.msra.mxu0 %v2896
      %2976 = vmatprep.subr.mxu0 %v2895
      %2977 = vmatpush1.msra.mxu0 %v2894
      %2978 = vmatprep.subr.mxu0 %v2893
      %2979 = vmatpush1.msra.mxu0 %v2892
      %2980 = vmatprep.subr.mxu0 %v2891
      %2981 = vmatpush1.msra.mxu0 %v2890
      %2982 = vmatprep.subr.mxu0 0.0
      %2983 = vmatpush2.msra.mxu0 0.0
      %2984 = vmatprep.subr.mxu0 0.0
      %2985 = vmatpush2.msra.mxu0 0.0
      %2986 = vmatprep.subr.mxu0 0.0
      %2987 = vmatpush2.msra.mxu0 0.0
      %2988 = vmatprep.subr.mxu0 0.0
      %2989 = vmatpush2.msra.mxu0 0.0
      %2990 = vmatprep.subr.mxu0 0.0
      %2991 = vmatpush2.msra.mxu0 0.0
      %2992 = vmatprep.subr.mxu0 0.0
      %2993 = vmatpush2.msra.mxu0 0.0
      %2994 = vmatprep.subr.mxu0 0.0
      %2995 = vmatpush2.msra.mxu0 0.0
      %2996 = vmatprep.subr.mxu0 0.0
      %2997 = vmatpush2.msra.mxu0 0.0
      %2998 = vmatprep.subr.mxu0 0.0
      %2999 = vmatpush2.msra.mxu0 0.0
      %3000 = vmatprep.subr.mxu0 0.0
      %3001 = vmatpush2.msra.mxu0 0.0
      %3002 = vmatprep.subr.mxu0 0.0
      %3003 = vmatpush2.msra.mxu0 0.0
      %3004 = vmatprep.subr.mxu0 0.0
      %3005 = vmatpush2.msra.mxu0 0.0
      %3006 = vmatprep.subr.mxu0 0.0
      %3007 = vmatpush2.msra.mxu0 0.0
      %3008 = vmatprep.subr.mxu0 0.0
      %3009 = vmatpush2.msra.mxu0 0.0
      %3010 = vmatprep.subr.mxu0 0.0
      %3011 = vmatpush2.msra.mxu0 0.0
      %3012 = vmatprep.subr.mxu0 0.0
      %3013 = vmatpush2.msra.mxu0 0.0
      %3014 = vmatprep.mubr.f32.mxu0 0.0
      %3015 = vmatmul.mubr.f32.gmra.mxu0 %v2936
      %v3016 = vpop.f32.mrf.mxu0
      %v3017 = vadd.f32 %v2913, %v3016
      %v3018 = vpop.f32.mrf.mxu0
      %v3019 = vadd.f32 %v2913, %v3018
      %3020 = vmatprep.mubr.f32.mxu0 0.0
      %3021 = vmatmul.mubr.f32.gmra.mxu0 %v2939
      %v3022 = vpop.f32.mrf.mxu0
      %v3023 = vadd.f32 %v2918, %v3022
      %v3024 = vpop.f32.mrf.mxu0
      %v3025 = vadd.f32 %v2918, %v3024
      %3026 = vmatprep.mubr.f32.mxu0 0.0
      %3027 = vmatmul.mubr.f32.gmra.mxu0 %v2942
      %v3028 = vpop.f32.mrf.mxu0
      %v3029 = vadd.f32 %v2923, %v3028
      %v3030 = vpop.f32.mrf.mxu0
      %v3031 = vadd.f32 %v2923, %v3030
      %3032 = vmatprep.mubr.f32.mxu0 0.0
      %3033 = vmatmul.mubr.f32.gmra.mxu0 %v2945
      %v3034 = vpop.f32.mrf.mxu0
      %v3035 = vadd.f32 %v2928, %v3034
      %v3036 = vpop.f32.mrf.mxu0
      %v3037 = vadd.f32 %v2928, %v3036
      %3038 = vmatprep.mubr.f32.mxu0 0.0
      %3039 = vmatmul.mubr.f32.gmra.mxu0 %v2948
      %v3040 = vpop.f32.mrf.mxu0
      %v3041 = vadd.f32 %v2933, %v3040
      %v3042 = vpop.f32.mrf.mxu0
      %v3043 = vadd.f32 %v2933, %v3042
      %3044 = vdwg.mxu0
      %v3045 = vtanh.pop %v3017
      %v3046 = vtanh.pop %v3019
      %v3047 = vtanh.pop %v3023
      %v3048 = vtanh.pop %v3025
      %v3049 = vtanh.pop %v3029
      %v3050 = vtanh.pop %v3031
      %v3051 = vtanh.pop %v3035
      %v3052 = vtanh.pop %v3037
      %v3053 = vtanh.pop %v3041
      %v3054 = vtanh.pop %v3043
      %v3055 = vld [vmem:[%s970] sm:$0xff]
      %v3056 = vld [vmem:[%s970 + $0x8] sm:$0xff]
      %v3057 = vld [vmem:[%s970 + $0x10] sm:$0xff]
      %v3058 = vld [vmem:[%s970 + $0x18] sm:$0xff]
      %v3059 = vld [vmem:[%s970 + $0x20] sm:$0xff]
      %v3060 = vld [vmem:[%s976] sm:$0xff]
      %v3061 = vld [vmem:[%s976 + $0x8] sm:$0xff]
      %v3062 = vld [vmem:[%s976 + $0x10] sm:$0xff]
      %v3063 = vld [vmem:[%s976 + $0x18] sm:$0xff]
      %v3064 = vld [vmem:[%s976 + $0x20] sm:$0xff]
      %3066 = vset.pattern.permute.xlu0 0
      %3067 = vperm.xlu0 %3066, %v3060
      %v3068 = vpop.permute.xlu0 %3067
      %3071 = vset.pattern.permute.xlu0 0
      %3072 = vperm.xlu0 %3071, %v3061
      %v3073 = vpop.permute.xlu0 %3072
      %3076 = vset.pattern.permute.xlu0 0
      %3077 = vperm.xlu0 %3076, %v3062
      %v3078 = vpop.permute.xlu0 %3077
      %3081 = vset.pattern.permute.xlu0 0
      %3082 = vperm.xlu0 %3081, %v3063
      %v3083 = vpop.permute.xlu0 %3082
      %3086 = vset.pattern.permute.xlu0 0
      %3087 = vperm.xlu0 %3086, %v3064
      %v3088 = vpop.permute.xlu0 %3087
      %v3091 = vsel %vm378, %v3055, 0
      %v3094 = vsel %vm378, %v3056, 0
      %v3097 = vsel %vm378, %v3057, 0
      %v3100 = vsel %vm378, %v3058, 0
      %v3103 = vsel %vm378, %v3059, 0
      %3105 = vmatprep.subr.mxu0 0.0
      %3106 = vmatpush1.msra.mxu0 0.0
      %3107 = vmatprep.subr.mxu0 0.0
      %3108 = vmatpush1.msra.mxu0 0.0
      %3109 = vmatprep.subr.mxu0 0.0
      %3110 = vmatpush1.msra.mxu0 0.0
      %3111 = vmatprep.subr.mxu0 0.0
      %3112 = vmatpush1.msra.mxu0 0.0
      %3113 = vmatprep.subr.mxu0 0.0
      %3114 = vmatpush1.msra.mxu0 0.0
      %3115 = vmatprep.subr.mxu0 0.0
      %3116 = vmatpush1.msra.mxu0 0.0
      %3117 = vmatprep.subr.mxu0 0.0
      %3118 = vmatpush1.msra.mxu0 0.0
      %3119 = vmatprep.subr.mxu0 0.0
      %3120 = vmatpush1.msra.mxu0 0.0
      %3121 = vmatprep.subr.mxu0 0.0
      %3122 = vmatpush1.msra.mxu0 0.0
      %3123 = vmatprep.subr.mxu0 0.0
      %3124 = vmatpush1.msra.mxu0 0.0
      %3125 = vmatprep.subr.mxu0 0.0
      %3126 = vmatpush1.msra.mxu0 0.0
      %3127 = vmatprep.subr.mxu0 %v3054
      %3128 = vmatpush1.msra.mxu0 %v3053
      %3129 = vmatprep.subr.mxu0 %v3052
      %3130 = vmatpush1.msra.mxu0 %v3051
      %3131 = vmatprep.subr.mxu0 %v3050
      %3132 = vmatpush1.msra.mxu0 %v3049
      %3133 = vmatprep.subr.mxu0 %v3048
      %3134 = vmatpush1.msra.mxu0 %v3047
      %3135 = vmatprep.subr.mxu0 %v3046
      %3136 = vmatpush1.msra.mxu0 %v3045
      %3137 = vmatprep.subr.mxu0 0.0
      %3138 = vmatpush2.msra.mxu0 0.0
      %3139 = vmatprep.subr.mxu0 0.0
      %3140 = vmatpush2.msra.mxu0 0.0
      %3141 = vmatprep.subr.mxu0 0.0
      %3142 = vmatpush2.msra.mxu0 0.0
      %3143 = vmatprep.subr.mxu0 0.0
      %3144 = vmatpush2.msra.mxu0 0.0
      %3145 = vmatprep.subr.mxu0 0.0
      %3146 = vmatpush2.msra.mxu0 0.0
      %3147 = vmatprep.subr.mxu0 0.0
      %3148 = vmatpush2.msra.mxu0 0.0
      %3149 = vmatprep.subr.mxu0 0.0
      %3150 = vmatpush2.msra.mxu0 0.0
      %3151 = vmatprep.subr.mxu0 0.0
      %3152 = vmatpush2.msra.mxu0 0.0
      %3153 = vmatprep.subr.mxu0 0.0
      %3154 = vmatpush2.msra.mxu0 0.0
      %3155 = vmatprep.subr.mxu0 0.0
      %3156 = vmatpush2.msra.mxu0 0.0
      %3157 = vmatprep.subr.mxu0 0.0
      %3158 = vmatpush2.msra.mxu0 0.0
      %3159 = vmatprep.subr.mxu0 0.0
      %3160 = vmatpush2.msra.mxu0 0.0
      %3161 = vmatprep.subr.mxu0 0.0
      %3162 = vmatpush2.msra.mxu0 0.0
      %3163 = vmatprep.subr.mxu0 0.0
      %3164 = vmatpush2.msra.mxu0 0.0
      %3165 = vmatprep.subr.mxu0 0.0
      %3166 = vmatpush2.msra.mxu0 0.0
      %3167 = vmatprep.subr.mxu0 0.0
      %3168 = vmatpush2.msra.mxu0 0.0
      %3169 = vmatprep.mubr.f32.mxu0 0.0
      %3170 = vmatmul.mubr.f32.gmra.mxu0 %v3091
      %v3171 = vpop.f32.mrf.mxu0
      %v3172 = vadd.f32 %v3068, %v3171
      %v3173 = vpop.f32.mrf.mxu0
      %v3174 = vadd.f32 %v3068, %v3173
      %3175 = vmatprep.mubr.f32.mxu0 0.0
      %3176 = vmatmul.mubr.f32.gmra.mxu0 %v3094
      %v3177 = vpop.f32.mrf.mxu0
      %v3178 = vadd.f32 %v3073, %v3177
      %v3179 = vpop.f32.mrf.mxu0
      %v3180 = vadd.f32 %v3073, %v3179
      %3181 = vmatprep.mubr.f32.mxu0 0.0
      %3182 = vmatmul.mubr.f32.gmra.mxu0 %v3097
      %v3183 = vpop.f32.mrf.mxu0
      %v3184 = vadd.f32 %v3078, %v3183
      %v3185 = vpop.f32.mrf.mxu0
      %v3186 = vadd.f32 %v3078, %v3185
      %3187 = vmatprep.mubr.f32.mxu0 0.0
      %3188 = vmatmul.mubr.f32.gmra.mxu0 %v3100
      %v3189 = vpop.f32.mrf.mxu0
      %v3190 = vadd.f32 %v3083, %v3189
      %v3191 = vpop.f32.mrf.mxu0
      %v3192 = vadd.f32 %v3083, %v3191
      %3193 = vmatprep.mubr.f32.mxu0 0.0
      %3194 = vmatmul.mubr.f32.gmra.mxu0 %v3103
      %v3195 = vpop.f32.mrf.mxu0
      %v3196 = vadd.f32 %v3088, %v3195
      %v3197 = vpop.f32.mrf.mxu0
      %v3198 = vadd.f32 %v3088, %v3197
      %3199 = vdwg.mxu0
      %v3200 = vtanh.pop %v3172
      %v3201 = vtanh.pop %v3174
      %v3202 = vtanh.pop %v3178
      %v3203 = vtanh.pop %v3180
      %v3204 = vtanh.pop %v3184
      %v3205 = vtanh.pop %v3186
      %v3206 = vtanh.pop %v3190
      %v3207 = vtanh.pop %v3192
      %v3208 = vtanh.pop %v3196
      %v3209 = vtanh.pop %v3198
      %v3210 = vld [vmem:[%s1127] sm:$0xff]
      %v3211 = vld [vmem:[%s1129] sm:$0xff]
      %3213 = vset.pattern.permute.xlu0 0
      %3214 = vperm.xlu0 %3213, %v3211
      %v3215 = vpop.permute.xlu0 %3214
      %v3218 = vsel %vm378, %v3210, 0
      %3220 = vmatprep.subr.mxu0 0.0
      %3221 = vmatpush1.msra.mxu0 0.0
      %3222 = vmatprep.subr.mxu0 0.0
      %3223 = vmatpush1.msra.mxu0 0.0
      %3224 = vmatprep.subr.mxu0 0.0
      %3225 = vmatpush1.msra.mxu0 0.0
      %3226 = vmatprep.subr.mxu0 0.0
      %3227 = vmatpush1.msra.mxu0 0.0
      %3228 = vmatprep.subr.mxu0 0.0
      %3229 = vmatpush1.msra.mxu0 0.0
      %3230 = vmatprep.subr.mxu0 0.0
      %3231 = vmatpush1.msra.mxu0 0.0
      %3232 = vmatprep.subr.mxu0 0.0
      %3233 = vmatpush1.msra.mxu0 0.0
      %3234 = vmatprep.subr.mxu0 0.0
      %3235 = vmatpush1.msra.mxu0 0.0
      %3236 = vmatprep.subr.mxu0 0.0
      %3237 = vmatpush1.msra.mxu0 0.0
      %3238 = vmatprep.subr.mxu0 0.0
      %3239 = vmatpush1.msra.mxu0 0.0
      %3240 = vmatprep.subr.mxu0 0.0
      %3241 = vmatpush1.msra.mxu0 0.0
      %3242 = vmatprep.subr.mxu0 %v3209
      %3243 = vmatpush1.msra.mxu0 %v3208
      %3244 = vmatprep.subr.mxu0 %v3207
      %3245 = vmatpush1.msra.mxu0 %v3206
      %3246 = vmatprep.subr.mxu0 %v3205
      %3247 = vmatpush1.msra.mxu0 %v3204
      %3248 = vmatprep.subr.mxu0 %v3203
      %3249 = vmatpush1.msra.mxu0 %v3202
      %3250 = vmatprep.subr.mxu0 %v3201
      %3251 = vmatpush1.msra.mxu0 %v3200
      %3252 = vmatprep.subr.mxu0 0.0
      %3253 = vmatpush2.msra.mxu0 0.0
      %3254 = vmatprep.subr.mxu0 0.0
      %3255 = vmatpush2.msra.mxu0 0.0
      %3256 = vmatprep.subr.mxu0 0.0
      %3257 = vmatpush2.msra.mxu0 0.0
      %3258 = vmatprep.subr.mxu0 0.0
      %3259 = vmatpush2.msra.mxu0 0.0
      %3260 = vmatprep.subr.mxu0 0.0
      %3261 = vmatpush2.msra.mxu0 0.0
      %3262 = vmatprep.subr.mxu0 0.0
      %3263 = vmatpush2.msra.mxu0 0.0
      %3264 = vmatprep.subr.mxu0 0.0
      %3265 = vmatpush2.msra.mxu0 0.0
      %3266 = vmatprep.subr.mxu0 0.0
      %3267 = vmatpush2.msra.mxu0 0.0
      %3268 = vmatprep.subr.mxu0 0.0
      %3269 = vmatpush2.msra.mxu0 0.0
      %3270 = vmatprep.subr.mxu0 0.0
      %3271 = vmatpush2.msra.mxu0 0.0
      %3272 = vmatprep.subr.mxu0 0.0
      %3273 = vmatpush2.msra.mxu0 0.0
      %3274 = vmatprep.subr.mxu0 0.0
      %3275 = vmatpush2.msra.mxu0 0.0
      %3276 = vmatprep.subr.mxu0 0.0
      %3277 = vmatpush2.msra.mxu0 0.0
      %3278 = vmatprep.subr.mxu0 0.0
      %3279 = vmatpush2.msra.mxu0 0.0
      %3280 = vmatprep.subr.mxu0 0.0
      %3281 = vmatpush2.msra.mxu0 0.0
      %3282 = vmatprep.subr.mxu0 0.0
      %3283 = vmatpush2.msra.mxu0 0.0
      %3284 = vmatprep.mubr.f32.mxu0 0.0
      %3285 = vmatmul.mubr.f32.gmra.mxu0 %v3218
      %v3286 = vpop.f32.mrf.mxu0
      %v3287 = vadd.f32 %v3215, %v3286
      %v3288 = vpop.f32.mrf.mxu0
      %v3289 = vadd.f32 %v3215, %v3288
      %3290 = vdwg.mxu0
      %v3293 = vcombine.low %v3287, %v3289
      %v3295 = vunpack.c.l.s4 1966171168
      %v3296 = vunpack.c.0.s8 %v3295
      %v3297 = vlaneseq
      %v3298 = vshrl.u32 %v3297, 7
      %v3299 = vsub.s32 %v3296, %v3298
      %v3300 = vrot.slane %v3293, %v3299
      %v3302 = vunpack.c.l.s4 1966171168
      %v3303 = vunpack.c.0.s8 %v3302
      %v3304 = vlaneseq
      %v3305 = vshrl.u32 %v3304, 7
      %v3306 = vsub.s32 %v3303, %v3305
      %v3307 = vrot.slane %v3300, %v3306
      %s3309 = scalar_lea.vmem %s175, 4
      %3310 = vst.msk [vmem:[%s3309] sm:$0x3] %vm1231, %v3307
      %s3311 = scalar_lea.vmem %s169, 24
      %v3312 = vld [vmem:[%s3311] sm:$0x77]
      %v3313 = vld [vmem:[%s1] sm:$0xff]
      %v3314 = vld [vmem:[%s1 + $0x8] sm:$0xff]
      %v3315 = vld [vmem:[%s1 + $0x10] sm:$0xff]
      %v3316 = vld [vmem:[%s1 + $0x18] sm:$0xff]
      %v3317 = vld [vmem:[%s1 + $0x20] sm:$0xff]
      %v3318 = vld [vmem:[%s2] sm:$0xff]
      %v3319 = vld [vmem:[%s2 + $0x8] sm:$0xff]
      %v3320 = vld [vmem:[%s2 + $0x10] sm:$0xff]
      %v3321 = vld [vmem:[%s2 + $0x18] sm:$0xff]
      %v3322 = vld [vmem:[%s2 + $0x20] sm:$0xff]
      %3324 = vset.pattern.permute.xlu0 0
      %3325 = vperm.xlu0 %3324, %v3318
      %v3326 = vpop.permute.xlu0 %3325
      %3329 = vset.pattern.permute.xlu0 0
      %3330 = vperm.xlu0 %3329, %v3319
      %v3331 = vpop.permute.xlu0 %3330
      %3334 = vset.pattern.permute.xlu0 0
      %3335 = vperm.xlu0 %3334, %v3320
      %v3336 = vpop.permute.xlu0 %3335
      %3339 = vset.pattern.permute.xlu0 0
      %3340 = vperm.xlu0 %3339, %v3321
      %v3341 = vpop.permute.xlu0 %3340
      %3344 = vset.pattern.permute.xlu0 0
      %3345 = vperm.xlu0 %3344, %v3322
      %v3346 = vpop.permute.xlu0 %3345
      %v3349 = vcombine.high %v3312, %v3312
      %v3351 = vsel %vm215, %v3313, 0
      %v3354 = vsel %vm215, %v3314, 0
      %v3357 = vsel %vm215, %v3315, 0
      %v3360 = vsel %vm215, %v3316, 0
      %v3363 = vsel %vm215, %v3317, 0
      %v3365 = vsel %vm231, %v3312, 0
      %v3367 = vsel %vm231, %v3349, 0
      %3369 = vmatprep.subr.mxu0 0.0
      %3370 = vmatpush1.msra.mxu0 0.0
      %3371 = vmatprep.subr.mxu0 0.0
      %3372 = vmatpush1.msra.mxu0 0.0
      %3373 = vmatprep.subr.mxu0 0.0
      %3374 = vmatpush1.msra.mxu0 0.0
      %3375 = vmatprep.subr.mxu0 0.0
      %3376 = vmatpush1.msra.mxu0 0.0
      %3377 = vmatprep.subr.mxu0 0.0
      %3378 = vmatpush1.msra.mxu0 0.0
      %3379 = vmatprep.subr.mxu0 0.0
      %3380 = vmatpush1.msra.mxu0 0.0
      %3381 = vmatprep.subr.mxu0 0.0
      %3382 = vmatpush1.msra.mxu0 0.0
      %3383 = vmatprep.subr.mxu0 0.0
      %3384 = vmatpush1.msra.mxu0 0.0
      %3385 = vmatprep.subr.mxu0 0.0
      %3386 = vmatpush1.msra.mxu0 0.0
      %3387 = vmatprep.subr.mxu0 0.0
      %3388 = vmatpush1.msra.mxu0 0.0
      %3389 = vmatprep.subr.mxu0 0.0
      %3390 = vmatpush1.msra.mxu0 0.0
      %3391 = vmatprep.subr.mxu0 0.0
      %3392 = vmatpush1.msra.mxu0 0.0
      %3393 = vmatprep.subr.mxu0 0.0
      %3394 = vmatpush1.msra.mxu0 0.0
      %3395 = vmatprep.subr.mxu0 0.0
      %3396 = vmatpush1.msra.mxu0 0.0
      %3397 = vmatprep.subr.mxu0 0.0
      %3398 = vmatpush1.msra.mxu0 0.0
      %3399 = vmatprep.subr.mxu0 %v3367
      %3400 = vmatpush1.msra.mxu0 %v3365
      %3401 = vmatprep.subr.mxu0 0.0
      %3402 = vmatpush2.msra.mxu0 0.0
      %3403 = vmatprep.subr.mxu0 0.0
      %3404 = vmatpush2.msra.mxu0 0.0
      %3405 = vmatprep.subr.mxu0 0.0
      %3406 = vmatpush2.msra.mxu0 0.0
      %3407 = vmatprep.subr.mxu0 0.0
      %3408 = vmatpush2.msra.mxu0 0.0
      %3409 = vmatprep.subr.mxu0 0.0
      %3410 = vmatpush2.msra.mxu0 0.0
      %3411 = vmatprep.subr.mxu0 0.0
      %3412 = vmatpush2.msra.mxu0 0.0
      %3413 = vmatprep.subr.mxu0 0.0
      %3414 = vmatpush2.msra.mxu0 0.0
      %3415 = vmatprep.subr.mxu0 0.0
      %3416 = vmatpush2.msra.mxu0 0.0
      %3417 = vmatprep.subr.mxu0 0.0
      %3418 = vmatpush2.msra.mxu0 0.0
      %3419 = vmatprep.subr.mxu0 0.0
      %3420 = vmatpush2.msra.mxu0 0.0
      %3421 = vmatprep.subr.mxu0 0.0
      %3422 = vmatpush2.msra.mxu0 0.0
      %3423 = vmatprep.subr.mxu0 0.0
      %3424 = vmatpush2.msra.mxu0 0.0
      %3425 = vmatprep.subr.mxu0 0.0
      %3426 = vmatpush2.msra.mxu0 0.0
      %3427 = vmatprep.subr.mxu0 0.0
      %3428 = vmatpush2.msra.mxu0 0.0
      %3429 = vmatprep.subr.mxu0 0.0
      %3430 = vmatpush2.msra.mxu0 0.0
      %3431 = vmatprep.subr.mxu0 0.0
      %3432 = vmatpush2.msra.mxu0 0.0
      %3433 = vmatprep.mubr.f32.mxu0 0.0
      %3434 = vmatmul.mubr.f32.gmra.mxu0 %v3351
      %v3435 = vpop.f32.mrf.mxu0
      %v3436 = vadd.f32 %v3326, %v3435
      %v3437 = vpop.f32.mrf.mxu0
      %v3438 = vadd.f32 %v3326, %v3437
      %3439 = vmatprep.mubr.f32.mxu0 0.0
      %3440 = vmatmul.mubr.f32.gmra.mxu0 %v3354
      %v3441 = vpop.f32.mrf.mxu0
      %v3442 = vadd.f32 %v3331, %v3441
      %v3443 = vpop.f32.mrf.mxu0
      %v3444 = vadd.f32 %v3331, %v3443
      %3445 = vmatprep.mubr.f32.mxu0 0.0
      %3446 = vmatmul.mubr.f32.gmra.mxu0 %v3357
      %v3447 = vpop.f32.mrf.mxu0
      %v3448 = vadd.f32 %v3336, %v3447
      %v3449 = vpop.f32.mrf.mxu0
      %v3450 = vadd.f32 %v3336, %v3449
      %3451 = vmatprep.mubr.f32.mxu0 0.0
      %3452 = vmatmul.mubr.f32.gmra.mxu0 %v3360
      %v3453 = vpop.f32.mrf.mxu0
      %v3454 = vadd.f32 %v3341, %v3453
      %v3455 = vpop.f32.mrf.mxu0
      %v3456 = vadd.f32 %v3341, %v3455
      %3457 = vmatprep.mubr.f32.mxu0 0.0
      %3458 = vmatmul.mubr.f32.gmra.mxu0 %v3363
      %v3459 = vpop.f32.mrf.mxu0
      %v3460 = vadd.f32 %v3346, %v3459
      %v3461 = vpop.f32.mrf.mxu0
      %v3462 = vadd.f32 %v3346, %v3461
      %3463 = vdwg.mxu0
      %v3464 = vtanh.pop %v3436
      %v3465 = vtanh.pop %v3438
      %v3466 = vtanh.pop %v3442
      %v3467 = vtanh.pop %v3444
      %v3468 = vtanh.pop %v3448
      %v3469 = vtanh.pop %v3450
      %v3470 = vtanh.pop %v3454
      %v3471 = vtanh.pop %v3456
      %v3472 = vtanh.pop %v3460
      %v3473 = vtanh.pop %v3462
      %v3474 = vld [vmem:[%s341] sm:$0xff]
      %v3475 = vld [vmem:[%s341 + $0x8] sm:$0xff]
      %v3476 = vld [vmem:[%s341 + $0x10] sm:$0xff]
      %v3477 = vld [vmem:[%s341 + $0x18] sm:$0xff]
      %v3478 = vld [vmem:[%s341 + $0x20] sm:$0xff]
      %v3479 = vld [vmem:[%s347] sm:$0xff]
      %v3480 = vld [vmem:[%s347 + $0x8] sm:$0xff]
      %v3481 = vld [vmem:[%s347 + $0x10] sm:$0xff]
      %v3482 = vld [vmem:[%s347 + $0x18] sm:$0xff]
      %v3483 = vld [vmem:[%s347 + $0x20] sm:$0xff]
      %3485 = vset.pattern.permute.xlu0 0
      %3486 = vperm.xlu0 %3485, %v3479
      %v3487 = vpop.permute.xlu0 %3486
      %3490 = vset.pattern.permute.xlu0 0
      %3491 = vperm.xlu0 %3490, %v3480
      %v3492 = vpop.permute.xlu0 %3491
      %3495 = vset.pattern.permute.xlu0 0
      %3496 = vperm.xlu0 %3495, %v3481
      %v3497 = vpop.permute.xlu0 %3496
      %3500 = vset.pattern.permute.xlu0 0
      %3501 = vperm.xlu0 %3500, %v3482
      %v3502 = vpop.permute.xlu0 %3501
      %3505 = vset.pattern.permute.xlu0 0
      %3506 = vperm.xlu0 %3505, %v3483
      %v3507 = vpop.permute.xlu0 %3506
      %v3510 = vsel %vm378, %v3474, 0
      %v3513 = vsel %vm378, %v3475, 0
      %v3516 = vsel %vm378, %v3476, 0
      %v3519 = vsel %vm378, %v3477, 0
      %v3522 = vsel %vm378, %v3478, 0
      %3524 = vmatprep.subr.mxu0 0.0
      %3525 = vmatpush1.msra.mxu0 0.0
      %3526 = vmatprep.subr.mxu0 0.0
      %3527 = vmatpush1.msra.mxu0 0.0
      %3528 = vmatprep.subr.mxu0 0.0
      %3529 = vmatpush1.msra.mxu0 0.0
      %3530 = vmatprep.subr.mxu0 0.0
      %3531 = vmatpush1.msra.mxu0 0.0
      %3532 = vmatprep.subr.mxu0 0.0
      %3533 = vmatpush1.msra.mxu0 0.0
      %3534 = vmatprep.subr.mxu0 0.0
      %3535 = vmatpush1.msra.mxu0 0.0
      %3536 = vmatprep.subr.mxu0 0.0
      %3537 = vmatpush1.msra.mxu0 0.0
      %3538 = vmatprep.subr.mxu0 0.0
      %3539 = vmatpush1.msra.mxu0 0.0
      %3540 = vmatprep.subr.mxu0 0.0
      %3541 = vmatpush1.msra.mxu0 0.0
      %3542 = vmatprep.subr.mxu0 0.0
      %3543 = vmatpush1.msra.mxu0 0.0
      %3544 = vmatprep.subr.mxu0 0.0
      %3545 = vmatpush1.msra.mxu0 0.0
      %3546 = vmatprep.subr.mxu0 %v3473
      %3547 = vmatpush1.msra.mxu0 %v3472
      %3548 = vmatprep.subr.mxu0 %v3471
      %3549 = vmatpush1.msra.mxu0 %v3470
      %3550 = vmatprep.subr.mxu0 %v3469
      %3551 = vmatpush1.msra.mxu0 %v3468
      %3552 = vmatprep.subr.mxu0 %v3467
      %3553 = vmatpush1.msra.mxu0 %v3466
      %3554 = vmatprep.subr.mxu0 %v3465
      %3555 = vmatpush1.msra.mxu0 %v3464
      %3556 = vmatprep.subr.mxu0 0.0
      %3557 = vmatpush2.msra.mxu0 0.0
      %3558 = vmatprep.subr.mxu0 0.0
      %3559 = vmatpush2.msra.mxu0 0.0
      %3560 = vmatprep.subr.mxu0 0.0
      %3561 = vmatpush2.msra.mxu0 0.0
      %3562 = vmatprep.subr.mxu0 0.0
      %3563 = vmatpush2.msra.mxu0 0.0
      %3564 = vmatprep.subr.mxu0 0.0
      %3565 = vmatpush2.msra.mxu0 0.0
      %3566 = vmatprep.subr.mxu0 0.0
      %3567 = vmatpush2.msra.mxu0 0.0
      %3568 = vmatprep.subr.mxu0 0.0
      %3569 = vmatpush2.msra.mxu0 0.0
      %3570 = vmatprep.subr.mxu0 0.0
      %3571 = vmatpush2.msra.mxu0 0.0
      %3572 = vmatprep.subr.mxu0 0.0
      %3573 = vmatpush2.msra.mxu0 0.0
      %3574 = vmatprep.subr.mxu0 0.0
      %3575 = vmatpush2.msra.mxu0 0.0
      %3576 = vmatprep.subr.mxu0 0.0
      %3577 = vmatpush2.msra.mxu0 0.0
      %3578 = vmatprep.subr.mxu0 0.0
      %3579 = vmatpush2.msra.mxu0 0.0
      %3580 = vmatprep.subr.mxu0 0.0
      %3581 = vmatpush2.msra.mxu0 0.0
      %3582 = vmatprep.subr.mxu0 0.0
      %3583 = vmatpush2.msra.mxu0 0.0
      %3584 = vmatprep.subr.mxu0 0.0
      %3585 = vmatpush2.msra.mxu0 0.0
      %3586 = vmatprep.subr.mxu0 0.0
      %3587 = vmatpush2.msra.mxu0 0.0
      %3588 = vmatprep.mubr.f32.mxu0 0.0
      %3589 = vmatmul.mubr.f32.gmra.mxu0 %v3510
      %v3590 = vpop.f32.mrf.mxu0
      %v3591 = vadd.f32 %v3487, %v3590
      %v3592 = vpop.f32.mrf.mxu0
      %v3593 = vadd.f32 %v3487, %v3592
      %3594 = vmatprep.mubr.f32.mxu0 0.0
      %3595 = vmatmul.mubr.f32.gmra.mxu0 %v3513
      %v3596 = vpop.f32.mrf.mxu0
      %v3597 = vadd.f32 %v3492, %v3596
      %v3598 = vpop.f32.mrf.mxu0
      %v3599 = vadd.f32 %v3492, %v3598
      %3600 = vmatprep.mubr.f32.mxu0 0.0
      %3601 = vmatmul.mubr.f32.gmra.mxu0 %v3516
      %v3602 = vpop.f32.mrf.mxu0
      %v3603 = vadd.f32 %v3497, %v3602
      %v3604 = vpop.f32.mrf.mxu0
      %v3605 = vadd.f32 %v3497, %v3604
      %3606 = vmatprep.mubr.f32.mxu0 0.0
      %3607 = vmatmul.mubr.f32.gmra.mxu0 %v3519
      %v3608 = vpop.f32.mrf.mxu0
      %v3609 = vadd.f32 %v3502, %v3608
      %v3610 = vpop.f32.mrf.mxu0
      %v3611 = vadd.f32 %v3502, %v3610
      %3612 = vmatprep.mubr.f32.mxu0 0.0
      %3613 = vmatmul.mubr.f32.gmra.mxu0 %v3522
      %v3614 = vpop.f32.mrf.mxu0
      %v3615 = vadd.f32 %v3507, %v3614
      %v3616 = vpop.f32.mrf.mxu0
      %v3617 = vadd.f32 %v3507, %v3616
      %3618 = vdwg.mxu0
      %v3619 = vtanh.pop %v3591
      %v3620 = vtanh.pop %v3593
      %v3621 = vtanh.pop %v3597
      %v3622 = vtanh.pop %v3599
      %v3623 = vtanh.pop %v3603
      %v3624 = vtanh.pop %v3605
      %v3625 = vtanh.pop %v3609
      %v3626 = vtanh.pop %v3611
      %v3627 = vtanh.pop %v3615
      %v3628 = vtanh.pop %v3617
      %v3629 = vld [vmem:[%s499] sm:$0xff]
      %v3630 = vld [vmem:[%s499 + $0x8] sm:$0xff]
      %v3631 = vld [vmem:[%s499 + $0x10] sm:$0xff]
      %v3632 = vld [vmem:[%s499 + $0x18] sm:$0xff]
      %v3633 = vld [vmem:[%s499 + $0x20] sm:$0xff]
      %v3634 = vld [vmem:[%s505] sm:$0xff]
      %v3635 = vld [vmem:[%s505 + $0x8] sm:$0xff]
      %v3636 = vld [vmem:[%s505 + $0x10] sm:$0xff]
      %v3637 = vld [vmem:[%s505 + $0x18] sm:$0xff]
      %v3638 = vld [vmem:[%s505 + $0x20] sm:$0xff]
      %3640 = vset.pattern.permute.xlu0 0
      %3641 = vperm.xlu0 %3640, %v3634
      %v3642 = vpop.permute.xlu0 %3641
      %3645 = vset.pattern.permute.xlu0 0
      %3646 = vperm.xlu0 %3645, %v3635
      %v3647 = vpop.permute.xlu0 %3646
      %3650 = vset.pattern.permute.xlu0 0
      %3651 = vperm.xlu0 %3650, %v3636
      %v3652 = vpop.permute.xlu0 %3651
      %3655 = vset.pattern.permute.xlu0 0
      %3656 = vperm.xlu0 %3655, %v3637
      %v3657 = vpop.permute.xlu0 %3656
      %3660 = vset.pattern.permute.xlu0 0
      %3661 = vperm.xlu0 %3660, %v3638
      %v3662 = vpop.permute.xlu0 %3661
      %v3665 = vsel %vm378, %v3629, 0
      %v3668 = vsel %vm378, %v3630, 0
      %v3671 = vsel %vm378, %v3631, 0
      %v3674 = vsel %vm378, %v3632, 0
      %v3677 = vsel %vm378, %v3633, 0
      %3679 = vmatprep.subr.mxu0 0.0
      %3680 = vmatpush1.msra.mxu0 0.0
      %3681 = vmatprep.subr.mxu0 0.0
      %3682 = vmatpush1.msra.mxu0 0.0
      %3683 = vmatprep.subr.mxu0 0.0
      %3684 = vmatpush1.msra.mxu0 0.0
      %3685 = vmatprep.subr.mxu0 0.0
      %3686 = vmatpush1.msra.mxu0 0.0
      %3687 = vmatprep.subr.mxu0 0.0
      %3688 = vmatpush1.msra.mxu0 0.0
      %3689 = vmatprep.subr.mxu0 0.0
      %3690 = vmatpush1.msra.mxu0 0.0
      %3691 = vmatprep.subr.mxu0 0.0
      %3692 = vmatpush1.msra.mxu0 0.0
      %3693 = vmatprep.subr.mxu0 0.0
      %3694 = vmatpush1.msra.mxu0 0.0
      %3695 = vmatprep.subr.mxu0 0.0
      %3696 = vmatpush1.msra.mxu0 0.0
      %3697 = vmatprep.subr.mxu0 0.0
      %3698 = vmatpush1.msra.mxu0 0.0
      %3699 = vmatprep.subr.mxu0 0.0
      %3700 = vmatpush1.msra.mxu0 0.0
      %3701 = vmatprep.subr.mxu0 %v3628
      %3702 = vmatpush1.msra.mxu0 %v3627
      %3703 = vmatprep.subr.mxu0 %v3626
      %3704 = vmatpush1.msra.mxu0 %v3625
      %3705 = vmatprep.subr.mxu0 %v3624
      %3706 = vmatpush1.msra.mxu0 %v3623
      %3707 = vmatprep.subr.mxu0 %v3622
      %3708 = vmatpush1.msra.mxu0 %v3621
      %3709 = vmatprep.subr.mxu0 %v3620
      %3710 = vmatpush1.msra.mxu0 %v3619
      %3711 = vmatprep.subr.mxu0 0.0
      %3712 = vmatpush2.msra.mxu0 0.0
      %3713 = vmatprep.subr.mxu0 0.0
      %3714 = vmatpush2.msra.mxu0 0.0
      %3715 = vmatprep.subr.mxu0 0.0
      %3716 = vmatpush2.msra.mxu0 0.0
      %3717 = vmatprep.subr.mxu0 0.0
      %3718 = vmatpush2.msra.mxu0 0.0
      %3719 = vmatprep.subr.mxu0 0.0
      %3720 = vmatpush2.msra.mxu0 0.0
      %3721 = vmatprep.subr.mxu0 0.0
      %3722 = vmatpush2.msra.mxu0 0.0
      %3723 = vmatprep.subr.mxu0 0.0
      %3724 = vmatpush2.msra.mxu0 0.0
      %3725 = vmatprep.subr.mxu0 0.0
      %3726 = vmatpush2.msra.mxu0 0.0
      %3727 = vmatprep.subr.mxu0 0.0
      %3728 = vmatpush2.msra.mxu0 0.0
      %3729 = vmatprep.subr.mxu0 0.0
      %3730 = vmatpush2.msra.mxu0 0.0
      %3731 = vmatprep.subr.mxu0 0.0
      %3732 = vmatpush2.msra.mxu0 0.0
      %3733 = vmatprep.subr.mxu0 0.0
      %3734 = vmatpush2.msra.mxu0 0.0
      %3735 = vmatprep.subr.mxu0 0.0
      %3736 = vmatpush2.msra.mxu0 0.0
      %3737 = vmatprep.subr.mxu0 0.0
      %3738 = vmatpush2.msra.mxu0 0.0
      %3739 = vmatprep.subr.mxu0 0.0
      %3740 = vmatpush2.msra.mxu0 0.0
      %3741 = vmatprep.subr.mxu0 0.0
      %3742 = vmatpush2.msra.mxu0 0.0
      %3743 = vmatprep.mubr.f32.mxu0 0.0
      %3744 = vmatmul.mubr.f32.gmra.mxu0 %v3665
      %v3745 = vpop.f32.mrf.mxu0
      %v3746 = vadd.f32 %v3642, %v3745
      %v3747 = vpop.f32.mrf.mxu0
      %v3748 = vadd.f32 %v3642, %v3747
      %3749 = vmatprep.mubr.f32.mxu0 0.0
      %3750 = vmatmul.mubr.f32.gmra.mxu0 %v3668
      %v3751 = vpop.f32.mrf.mxu0
      %v3752 = vadd.f32 %v3647, %v3751
      %v3753 = vpop.f32.mrf.mxu0
      %v3754 = vadd.f32 %v3647, %v3753
      %3755 = vmatprep.mubr.f32.mxu0 0.0
      %3756 = vmatmul.mubr.f32.gmra.mxu0 %v3671
      %v3757 = vpop.f32.mrf.mxu0
      %v3758 = vadd.f32 %v3652, %v3757
      %v3759 = vpop.f32.mrf.mxu0
      %v3760 = vadd.f32 %v3652, %v3759
      %3761 = vmatprep.mubr.f32.mxu0 0.0
      %3762 = vmatmul.mubr.f32.gmra.mxu0 %v3674
      %v3763 = vpop.f32.mrf.mxu0
      %v3764 = vadd.f32 %v3657, %v3763
      %v3765 = vpop.f32.mrf.mxu0
      %v3766 = vadd.f32 %v3657, %v3765
      %3767 = vmatprep.mubr.f32.mxu0 0.0
      %3768 = vmatmul.mubr.f32.gmra.mxu0 %v3677
      %v3769 = vpop.f32.mrf.mxu0
      %v3770 = vadd.f32 %v3662, %v3769
      %v3771 = vpop.f32.mrf.mxu0
      %v3772 = vadd.f32 %v3662, %v3771
      %3773 = vdwg.mxu0
      %v3774 = vtanh.pop %v3746
      %v3775 = vtanh.pop %v3748
      %v3776 = vtanh.pop %v3752
      %v3777 = vtanh.pop %v3754
      %v3778 = vtanh.pop %v3758
      %v3779 = vtanh.pop %v3760
      %v3780 = vtanh.pop %v3764
      %v3781 = vtanh.pop %v3766
      %v3782 = vtanh.pop %v3770
      %v3783 = vtanh.pop %v3772
      %v3784 = vld [vmem:[%s656] sm:$0xff]
      %v3785 = vld [vmem:[%s656 + $0x8] sm:$0xff]
      %v3786 = vld [vmem:[%s656 + $0x10] sm:$0xff]
      %v3787 = vld [vmem:[%s656 + $0x18] sm:$0xff]
      %v3788 = vld [vmem:[%s656 + $0x20] sm:$0xff]
      %v3789 = vld [vmem:[%s662] sm:$0xff]
      %v3790 = vld [vmem:[%s662 + $0x8] sm:$0xff]
      %v3791 = vld [vmem:[%s662 + $0x10] sm:$0xff]
      %v3792 = vld [vmem:[%s662 + $0x18] sm:$0xff]
      %v3793 = vld [vmem:[%s662 + $0x20] sm:$0xff]
      %3795 = vset.pattern.permute.xlu0 0
      %3796 = vperm.xlu0 %3795, %v3789
      %v3797 = vpop.permute.xlu0 %3796
      %3800 = vset.pattern.permute.xlu0 0
      %3801 = vperm.xlu0 %3800, %v3790
      %v3802 = vpop.permute.xlu0 %3801
      %3805 = vset.pattern.permute.xlu0 0
      %3806 = vperm.xlu0 %3805, %v3791
      %v3807 = vpop.permute.xlu0 %3806
      %3810 = vset.pattern.permute.xlu0 0
      %3811 = vperm.xlu0 %3810, %v3792
      %v3812 = vpop.permute.xlu0 %3811
      %3815 = vset.pattern.permute.xlu0 0
      %3816 = vperm.xlu0 %3815, %v3793
      %v3817 = vpop.permute.xlu0 %3816
      %v3820 = vsel %vm378, %v3784, 0
      %v3823 = vsel %vm378, %v3785, 0
      %v3826 = vsel %vm378, %v3786, 0
      %v3829 = vsel %vm378, %v3787, 0
      %v3832 = vsel %vm378, %v3788, 0
      %3834 = vmatprep.subr.mxu0 0.0
      %3835 = vmatpush1.msra.mxu0 0.0
      %3836 = vmatprep.subr.mxu0 0.0
      %3837 = vmatpush1.msra.mxu0 0.0
      %3838 = vmatprep.subr.mxu0 0.0
      %3839 = vmatpush1.msra.mxu0 0.0
      %3840 = vmatprep.subr.mxu0 0.0
      %3841 = vmatpush1.msra.mxu0 0.0
      %3842 = vmatprep.subr.mxu0 0.0
      %3843 = vmatpush1.msra.mxu0 0.0
      %3844 = vmatprep.subr.mxu0 0.0
      %3845 = vmatpush1.msra.mxu0 0.0
      %3846 = vmatprep.subr.mxu0 0.0
      %3847 = vmatpush1.msra.mxu0 0.0
      %3848 = vmatprep.subr.mxu0 0.0
      %3849 = vmatpush1.msra.mxu0 0.0
      %3850 = vmatprep.subr.mxu0 0.0
      %3851 = vmatpush1.msra.mxu0 0.0
      %3852 = vmatprep.subr.mxu0 0.0
      %3853 = vmatpush1.msra.mxu0 0.0
      %3854 = vmatprep.subr.mxu0 0.0
      %3855 = vmatpush1.msra.mxu0 0.0
      %3856 = vmatprep.subr.mxu0 %v3783
      %3857 = vmatpush1.msra.mxu0 %v3782
      %3858 = vmatprep.subr.mxu0 %v3781
      %3859 = vmatpush1.msra.mxu0 %v3780
      %3860 = vmatprep.subr.mxu0 %v3779
      %3861 = vmatpush1.msra.mxu0 %v3778
      %3862 = vmatprep.subr.mxu0 %v3777
      %3863 = vmatpush1.msra.mxu0 %v3776
      %3864 = vmatprep.subr.mxu0 %v3775
      %3865 = vmatpush1.msra.mxu0 %v3774
      %3866 = vmatprep.subr.mxu0 0.0
      %3867 = vmatpush2.msra.mxu0 0.0
      %3868 = vmatprep.subr.mxu0 0.0
      %3869 = vmatpush2.msra.mxu0 0.0
      %3870 = vmatprep.subr.mxu0 0.0
      %3871 = vmatpush2.msra.mxu0 0.0
      %3872 = vmatprep.subr.mxu0 0.0
      %3873 = vmatpush2.msra.mxu0 0.0
      %3874 = vmatprep.subr.mxu0 0.0
      %3875 = vmatpush2.msra.mxu0 0.0
      %3876 = vmatprep.subr.mxu0 0.0
      %3877 = vmatpush2.msra.mxu0 0.0
      %3878 = vmatprep.subr.mxu0 0.0
      %3879 = vmatpush2.msra.mxu0 0.0
      %3880 = vmatprep.subr.mxu0 0.0
      %3881 = vmatpush2.msra.mxu0 0.0
      %3882 = vmatprep.subr.mxu0 0.0
      %3883 = vmatpush2.msra.mxu0 0.0
      %3884 = vmatprep.subr.mxu0 0.0
      %3885 = vmatpush2.msra.mxu0 0.0
      %3886 = vmatprep.subr.mxu0 0.0
      %3887 = vmatpush2.msra.mxu0 0.0
      %3888 = vmatprep.subr.mxu0 0.0
      %3889 = vmatpush2.msra.mxu0 0.0
      %3890 = vmatprep.subr.mxu0 0.0
      %3891 = vmatpush2.msra.mxu0 0.0
      %3892 = vmatprep.subr.mxu0 0.0
      %3893 = vmatpush2.msra.mxu0 0.0
      %3894 = vmatprep.subr.mxu0 0.0
      %3895 = vmatpush2.msra.mxu0 0.0
      %3896 = vmatprep.subr.mxu0 0.0
      %3897 = vmatpush2.msra.mxu0 0.0
      %3898 = vmatprep.mubr.f32.mxu0 0.0
      %3899 = vmatmul.mubr.f32.gmra.mxu0 %v3820
      %v3900 = vpop.f32.mrf.mxu0
      %v3901 = vadd.f32 %v3797, %v3900
      %v3902 = vpop.f32.mrf.mxu0
      %v3903 = vadd.f32 %v3797, %v3902
      %3904 = vmatprep.mubr.f32.mxu0 0.0
      %3905 = vmatmul.mubr.f32.gmra.mxu0 %v3823
      %v3906 = vpop.f32.mrf.mxu0
      %v3907 = vadd.f32 %v3802, %v3906
      %v3908 = vpop.f32.mrf.mxu0
      %v3909 = vadd.f32 %v3802, %v3908
      %3910 = vmatprep.mubr.f32.mxu0 0.0
      %3911 = vmatmul.mubr.f32.gmra.mxu0 %v3826
      %v3912 = vpop.f32.mrf.mxu0
      %v3913 = vadd.f32 %v3807, %v3912
      %v3914 = vpop.f32.mrf.mxu0
      %v3915 = vadd.f32 %v3807, %v3914
      %3916 = vmatprep.mubr.f32.mxu0 0.0
      %3917 = vmatmul.mubr.f32.gmra.mxu0 %v3829
      %v3918 = vpop.f32.mrf.mxu0
      %v3919 = vadd.f32 %v3812, %v3918
      %v3920 = vpop.f32.mrf.mxu0
      %v3921 = vadd.f32 %v3812, %v3920
      %3922 = vmatprep.mubr.f32.mxu0 0.0
      %3923 = vmatmul.mubr.f32.gmra.mxu0 %v3832
      %v3924 = vpop.f32.mrf.mxu0
      %v3925 = vadd.f32 %v3817, %v3924
      %v3926 = vpop.f32.mrf.mxu0
      %v3927 = vadd.f32 %v3817, %v3926
      %3928 = vdwg.mxu0
      %v3929 = vtanh.pop %v3901
      %v3930 = vtanh.pop %v3903
      %v3931 = vtanh.pop %v3907
      %v3932 = vtanh.pop %v3909
      %v3933 = vtanh.pop %v3913
      %v3934 = vtanh.pop %v3915
      %v3935 = vtanh.pop %v3919
      %v3936 = vtanh.pop %v3921
      %v3937 = vtanh.pop %v3925
      %v3938 = vtanh.pop %v3927
      %v3939 = vld [vmem:[%s813] sm:$0xff]
      %v3940 = vld [vmem:[%s813 + $0x8] sm:$0xff]
      %v3941 = vld [vmem:[%s813 + $0x10] sm:$0xff]
      %v3942 = vld [vmem:[%s813 + $0x18] sm:$0xff]
      %v3943 = vld [vmem:[%s813 + $0x20] sm:$0xff]
      %v3944 = vld [vmem:[%s819] sm:$0xff]
      %v3945 = vld [vmem:[%s819 + $0x8] sm:$0xff]
      %v3946 = vld [vmem:[%s819 + $0x10] sm:$0xff]
      %v3947 = vld [vmem:[%s819 + $0x18] sm:$0xff]
      %v3948 = vld [vmem:[%s819 + $0x20] sm:$0xff]
      %3950 = vset.pattern.permute.xlu0 0
      %3951 = vperm.xlu0 %3950, %v3944
      %v3952 = vpop.permute.xlu0 %3951
      %3955 = vset.pattern.permute.xlu0 0
      %3956 = vperm.xlu0 %3955, %v3945
      %v3957 = vpop.permute.xlu0 %3956
      %3960 = vset.pattern.permute.xlu0 0
      %3961 = vperm.xlu0 %3960, %v3946
      %v3962 = vpop.permute.xlu0 %3961
      %3965 = vset.pattern.permute.xlu0 0
      %3966 = vperm.xlu0 %3965, %v3947
      %v3967 = vpop.permute.xlu0 %3966
      %3970 = vset.pattern.permute.xlu0 0
      %3971 = vperm.xlu0 %3970, %v3948
      %v3972 = vpop.permute.xlu0 %3971
      %v3975 = vsel %vm378, %v3939, 0
      %v3978 = vsel %vm378, %v3940, 0
      %v3981 = vsel %vm378, %v3941, 0
      %v3984 = vsel %vm378, %v3942, 0
      %v3987 = vsel %vm378, %v3943, 0
      %3989 = vmatprep.subr.mxu0 0.0
      %3990 = vmatpush1.msra.mxu0 0.0
      %3991 = vmatprep.subr.mxu0 0.0
      %3992 = vmatpush1.msra.mxu0 0.0
      %3993 = vmatprep.subr.mxu0 0.0
      %3994 = vmatpush1.msra.mxu0 0.0
      %3995 = vmatprep.subr.mxu0 0.0
      %3996 = vmatpush1.msra.mxu0 0.0
      %3997 = vmatprep.subr.mxu0 0.0
      %3998 = vmatpush1.msra.mxu0 0.0
      %3999 = vmatprep.subr.mxu0 0.0
      %4000 = vmatpush1.msra.mxu0 0.0
      %4001 = vmatprep.subr.mxu0 0.0
      %4002 = vmatpush1.msra.mxu0 0.0
      %4003 = vmatprep.subr.mxu0 0.0
      %4004 = vmatpush1.msra.mxu0 0.0
      %4005 = vmatprep.subr.mxu0 0.0
      %4006 = vmatpush1.msra.mxu0 0.0
      %4007 = vmatprep.subr.mxu0 0.0
      %4008 = vmatpush1.msra.mxu0 0.0
      %4009 = vmatprep.subr.mxu0 0.0
      %4010 = vmatpush1.msra.mxu0 0.0
      %4011 = vmatprep.subr.mxu0 %v3938
      %4012 = vmatpush1.msra.mxu0 %v3937
      %4013 = vmatprep.subr.mxu0 %v3936
      %4014 = vmatpush1.msra.mxu0 %v3935
      %4015 = vmatprep.subr.mxu0 %v3934
      %4016 = vmatpush1.msra.mxu0 %v3933
      %4017 = vmatprep.subr.mxu0 %v3932
      %4018 = vmatpush1.msra.mxu0 %v3931
      %4019 = vmatprep.subr.mxu0 %v3930
      %4020 = vmatpush1.msra.mxu0 %v3929
      %4021 = vmatprep.subr.mxu0 0.0
      %4022 = vmatpush2.msra.mxu0 0.0
      %4023 = vmatprep.subr.mxu0 0.0
      %4024 = vmatpush2.msra.mxu0 0.0
      %4025 = vmatprep.subr.mxu0 0.0
      %4026 = vmatpush2.msra.mxu0 0.0
      %4027 = vmatprep.subr.mxu0 0.0
      %4028 = vmatpush2.msra.mxu0 0.0
      %4029 = vmatprep.subr.mxu0 0.0
      %4030 = vmatpush2.msra.mxu0 0.0
      %4031 = vmatprep.subr.mxu0 0.0
      %4032 = vmatpush2.msra.mxu0 0.0
      %4033 = vmatprep.subr.mxu0 0.0
      %4034 = vmatpush2.msra.mxu0 0.0
      %4035 = vmatprep.subr.mxu0 0.0
      %4036 = vmatpush2.msra.mxu0 0.0
      %4037 = vmatprep.subr.mxu0 0.0
      %4038 = vmatpush2.msra.mxu0 0.0
      %4039 = vmatprep.subr.mxu0 0.0
      %4040 = vmatpush2.msra.mxu0 0.0
      %4041 = vmatprep.subr.mxu0 0.0
      %4042 = vmatpush2.msra.mxu0 0.0
      %4043 = vmatprep.subr.mxu0 0.0
      %4044 = vmatpush2.msra.mxu0 0.0
      %4045 = vmatprep.subr.mxu0 0.0
      %4046 = vmatpush2.msra.mxu0 0.0
      %4047 = vmatprep.subr.mxu0 0.0
      %4048 = vmatpush2.msra.mxu0 0.0
      %4049 = vmatprep.subr.mxu0 0.0
      %4050 = vmatpush2.msra.mxu0 0.0
      %4051 = vmatprep.subr.mxu0 0.0
      %4052 = vmatpush2.msra.mxu0 0.0
      %4053 = vmatprep.mubr.f32.mxu0 0.0
      %4054 = vmatmul.mubr.f32.gmra.mxu0 %v3975
      %v4055 = vpop.f32.mrf.mxu0
      %v4056 = vadd.f32 %v3952, %v4055
      %v4057 = vpop.f32.mrf.mxu0
      %v4058 = vadd.f32 %v3952, %v4057
      %4059 = vmatprep.mubr.f32.mxu0 0.0
      %4060 = vmatmul.mubr.f32.gmra.mxu0 %v3978
      %v4061 = vpop.f32.mrf.mxu0
      %v4062 = vadd.f32 %v3957, %v4061
      %v4063 = vpop.f32.mrf.mxu0
      %v4064 = vadd.f32 %v3957, %v4063
      %4065 = vmatprep.mubr.f32.mxu0 0.0
      %4066 = vmatmul.mubr.f32.gmra.mxu0 %v3981
      %v4067 = vpop.f32.mrf.mxu0
      %v4068 = vadd.f32 %v3962, %v4067
      %v4069 = vpop.f32.mrf.mxu0
      %v4070 = vadd.f32 %v3962, %v4069
      %4071 = vmatprep.mubr.f32.mxu0 0.0
      %4072 = vmatmul.mubr.f32.gmra.mxu0 %v3984
      %v4073 = vpop.f32.mrf.mxu0
      %v4074 = vadd.f32 %v3967, %v4073
      %v4075 = vpop.f32.mrf.mxu0
      %v4076 = vadd.f32 %v3967, %v4075
      %4077 = vmatprep.mubr.f32.mxu0 0.0
      %4078 = vmatmul.mubr.f32.gmra.mxu0 %v3987
      %v4079 = vpop.f32.mrf.mxu0
      %v4080 = vadd.f32 %v3972, %v4079
      %v4081 = vpop.f32.mrf.mxu0
      %v4082 = vadd.f32 %v3972, %v4081
      %4083 = vdwg.mxu0
      %v4084 = vtanh.pop %v4056
      %v4085 = vtanh.pop %v4058
      %v4086 = vtanh.pop %v4062
      %v4087 = vtanh.pop %v4064
      %v4088 = vtanh.pop %v4068
      %v4089 = vtanh.pop %v4070
      %v4090 = vtanh.pop %v4074
      %v4091 = vtanh.pop %v4076
      %v4092 = vtanh.pop %v4080
      %v4093 = vtanh.pop %v4082
      %v4094 = vld [vmem:[%s970] sm:$0xff]
      %v4095 = vld [vmem:[%s970 + $0x8] sm:$0xff]
      %v4096 = vld [vmem:[%s970 + $0x10] sm:$0xff]
      %v4097 = vld [vmem:[%s970 + $0x18] sm:$0xff]
      %v4098 = vld [vmem:[%s970 + $0x20] sm:$0xff]
      %v4099 = vld [vmem:[%s976] sm:$0xff]
      %v4100 = vld [vmem:[%s976 + $0x8] sm:$0xff]
      %v4101 = vld [vmem:[%s976 + $0x10] sm:$0xff]
      %v4102 = vld [vmem:[%s976 + $0x18] sm:$0xff]
      %v4103 = vld [vmem:[%s976 + $0x20] sm:$0xff]
      %4105 = vset.pattern.permute.xlu0 0
      %4106 = vperm.xlu0 %4105, %v4099
      %v4107 = vpop.permute.xlu0 %4106
      %4110 = vset.pattern.permute.xlu0 0
      %4111 = vperm.xlu0 %4110, %v4100
      %v4112 = vpop.permute.xlu0 %4111
      %4115 = vset.pattern.permute.xlu0 0
      %4116 = vperm.xlu0 %4115, %v4101
      %v4117 = vpop.permute.xlu0 %4116
      %4120 = vset.pattern.permute.xlu0 0
      %4121 = vperm.xlu0 %4120, %v4102
      %v4122 = vpop.permute.xlu0 %4121
      %4125 = vset.pattern.permute.xlu0 0
      %4126 = vperm.xlu0 %4125, %v4103
      %v4127 = vpop.permute.xlu0 %4126
      %v4130 = vsel %vm378, %v4094, 0
      %v4133 = vsel %vm378, %v4095, 0
      %v4136 = vsel %vm378, %v4096, 0
      %v4139 = vsel %vm378, %v4097, 0
      %v4142 = vsel %vm378, %v4098, 0
      %4144 = vmatprep.subr.mxu0 0.0
      %4145 = vmatpush1.msra.mxu0 0.0
      %4146 = vmatprep.subr.mxu0 0.0
      %4147 = vmatpush1.msra.mxu0 0.0
      %4148 = vmatprep.subr.mxu0 0.0
      %4149 = vmatpush1.msra.mxu0 0.0
      %4150 = vmatprep.subr.mxu0 0.0
      %4151 = vmatpush1.msra.mxu0 0.0
      %4152 = vmatprep.subr.mxu0 0.0
      %4153 = vmatpush1.msra.mxu0 0.0
      %4154 = vmatprep.subr.mxu0 0.0
      %4155 = vmatpush1.msra.mxu0 0.0
      %4156 = vmatprep.subr.mxu0 0.0
      %4157 = vmatpush1.msra.mxu0 0.0
      %4158 = vmatprep.subr.mxu0 0.0
      %4159 = vmatpush1.msra.mxu0 0.0
      %4160 = vmatprep.subr.mxu0 0.0
      %4161 = vmatpush1.msra.mxu0 0.0
      %4162 = vmatprep.subr.mxu0 0.0
      %4163 = vmatpush1.msra.mxu0 0.0
      %4164 = vmatprep.subr.mxu0 0.0
      %4165 = vmatpush1.msra.mxu0 0.0
      %4166 = vmatprep.subr.mxu0 %v4093
      %4167 = vmatpush1.msra.mxu0 %v4092
      %4168 = vmatprep.subr.mxu0 %v4091
      %4169 = vmatpush1.msra.mxu0 %v4090
      %4170 = vmatprep.subr.mxu0 %v4089
      %4171 = vmatpush1.msra.mxu0 %v4088
      %4172 = vmatprep.subr.mxu0 %v4087
      %4173 = vmatpush1.msra.mxu0 %v4086
      %4174 = vmatprep.subr.mxu0 %v4085
      %4175 = vmatpush1.msra.mxu0 %v4084
      %4176 = vmatprep.subr.mxu0 0.0
      %4177 = vmatpush2.msra.mxu0 0.0
      %4178 = vmatprep.subr.mxu0 0.0
      %4179 = vmatpush2.msra.mxu0 0.0
      %4180 = vmatprep.subr.mxu0 0.0
      %4181 = vmatpush2.msra.mxu0 0.0
      %4182 = vmatprep.subr.mxu0 0.0
      %4183 = vmatpush2.msra.mxu0 0.0
      %4184 = vmatprep.subr.mxu0 0.0
      %4185 = vmatpush2.msra.mxu0 0.0
      %4186 = vmatprep.subr.mxu0 0.0
      %4187 = vmatpush2.msra.mxu0 0.0
      %4188 = vmatprep.subr.mxu0 0.0
      %4189 = vmatpush2.msra.mxu0 0.0
      %4190 = vmatprep.subr.mxu0 0.0
      %4191 = vmatpush2.msra.mxu0 0.0
      %4192 = vmatprep.subr.mxu0 0.0
      %4193 = vmatpush2.msra.mxu0 0.0
      %4194 = vmatprep.subr.mxu0 0.0
      %4195 = vmatpush2.msra.mxu0 0.0
      %4196 = vmatprep.subr.mxu0 0.0
      %4197 = vmatpush2.msra.mxu0 0.0
      %4198 = vmatprep.subr.mxu0 0.0
      %4199 = vmatpush2.msra.mxu0 0.0
      %4200 = vmatprep.subr.mxu0 0.0
      %4201 = vmatpush2.msra.mxu0 0.0
      %4202 = vmatprep.subr.mxu0 0.0
      %4203 = vmatpush2.msra.mxu0 0.0
      %4204 = vmatprep.subr.mxu0 0.0
      %4205 = vmatpush2.msra.mxu0 0.0
      %4206 = vmatprep.subr.mxu0 0.0
      %4207 = vmatpush2.msra.mxu0 0.0
      %4208 = vmatprep.mubr.f32.mxu0 0.0
      %4209 = vmatmul.mubr.f32.gmra.mxu0 %v4130
      %v4210 = vpop.f32.mrf.mxu0
      %v4211 = vadd.f32 %v4107, %v4210
      %v4212 = vpop.f32.mrf.mxu0
      %v4213 = vadd.f32 %v4107, %v4212
      %4214 = vmatprep.mubr.f32.mxu0 0.0
      %4215 = vmatmul.mubr.f32.gmra.mxu0 %v4133
      %v4216 = vpop.f32.mrf.mxu0
      %v4217 = vadd.f32 %v4112, %v4216
      %v4218 = vpop.f32.mrf.mxu0
      %v4219 = vadd.f32 %v4112, %v4218
      %4220 = vmatprep.mubr.f32.mxu0 0.0
      %4221 = vmatmul.mubr.f32.gmra.mxu0 %v4136
      %v4222 = vpop.f32.mrf.mxu0
      %v4223 = vadd.f32 %v4117, %v4222
      %v4224 = vpop.f32.mrf.mxu0
      %v4225 = vadd.f32 %v4117, %v4224
      %4226 = vmatprep.mubr.f32.mxu0 0.0
      %4227 = vmatmul.mubr.f32.gmra.mxu0 %v4139
      %v4228 = vpop.f32.mrf.mxu0
      %v4229 = vadd.f32 %v4122, %v4228
      %v4230 = vpop.f32.mrf.mxu0
      %v4231 = vadd.f32 %v4122, %v4230
      %4232 = vmatprep.mubr.f32.mxu0 0.0
      %4233 = vmatmul.mubr.f32.gmra.mxu0 %v4142
      %v4234 = vpop.f32.mrf.mxu0
      %v4235 = vadd.f32 %v4127, %v4234
      %v4236 = vpop.f32.mrf.mxu0
      %v4237 = vadd.f32 %v4127, %v4236
      %4238 = vdwg.mxu0
      %v4239 = vtanh.pop %v4211
      %v4240 = vtanh.pop %v4213
      %v4241 = vtanh.pop %v4217
      %v4242 = vtanh.pop %v4219
      %v4243 = vtanh.pop %v4223
      %v4244 = vtanh.pop %v4225
      %v4245 = vtanh.pop %v4229
      %v4246 = vtanh.pop %v4231
      %v4247 = vtanh.pop %v4235
      %v4248 = vtanh.pop %v4237
      %v4249 = vld [vmem:[%s1127] sm:$0xff]
      %v4250 = vld [vmem:[%s1129] sm:$0xff]
      %4252 = vset.pattern.permute.xlu0 0
      %4253 = vperm.xlu0 %4252, %v4250
      %v4254 = vpop.permute.xlu0 %4253
      %v4257 = vsel %vm378, %v4249, 0
      %4259 = vmatprep.subr.mxu0 0.0
      %4260 = vmatpush1.msra.mxu0 0.0
      %4261 = vmatprep.subr.mxu0 0.0
      %4262 = vmatpush1.msra.mxu0 0.0
      %4263 = vmatprep.subr.mxu0 0.0
      %4264 = vmatpush1.msra.mxu0 0.0
      %4265 = vmatprep.subr.mxu0 0.0
      %4266 = vmatpush1.msra.mxu0 0.0
      %4267 = vmatprep.subr.mxu0 0.0
      %4268 = vmatpush1.msra.mxu0 0.0
      %4269 = vmatprep.subr.mxu0 0.0
      %4270 = vmatpush1.msra.mxu0 0.0
      %4271 = vmatprep.subr.mxu0 0.0
      %4272 = vmatpush1.msra.mxu0 0.0
      %4273 = vmatprep.subr.mxu0 0.0
      %4274 = vmatpush1.msra.mxu0 0.0
      %4275 = vmatprep.subr.mxu0 0.0
      %4276 = vmatpush1.msra.mxu0 0.0
      %4277 = vmatprep.subr.mxu0 0.0
      %4278 = vmatpush1.msra.mxu0 0.0
      %4279 = vmatprep.subr.mxu0 0.0
      %4280 = vmatpush1.msra.mxu0 0.0
      %4281 = vmatprep.subr.mxu0 %v4248
      %4282 = vmatpush1.msra.mxu0 %v4247
      %4283 = vmatprep.subr.mxu0 %v4246
      %4284 = vmatpush1.msra.mxu0 %v4245
      %4285 = vmatprep.subr.mxu0 %v4244
      %4286 = vmatpush1.msra.mxu0 %v4243
      %4287 = vmatprep.subr.mxu0 %v4242
      %4288 = vmatpush1.msra.mxu0 %v4241
      %4289 = vmatprep.subr.mxu0 %v4240
      %4290 = vmatpush1.msra.mxu0 %v4239
      %4291 = vmatprep.subr.mxu0 0.0
      %4292 = vmatpush2.msra.mxu0 0.0
      %4293 = vmatprep.subr.mxu0 0.0
      %4294 = vmatpush2.msra.mxu0 0.0
      %4295 = vmatprep.subr.mxu0 0.0
      %4296 = vmatpush2.msra.mxu0 0.0
      %4297 = vmatprep.subr.mxu0 0.0
      %4298 = vmatpush2.msra.mxu0 0.0
      %4299 = vmatprep.subr.mxu0 0.0
      %4300 = vmatpush2.msra.mxu0 0.0
      %4301 = vmatprep.subr.mxu0 0.0
      %4302 = vmatpush2.msra.mxu0 0.0
      %4303 = vmatprep.subr.mxu0 0.0
      %4304 = vmatpush2.msra.mxu0 0.0
      %4305 = vmatprep.subr.mxu0 0.0
      %4306 = vmatpush2.msra.mxu0 0.0
      %4307 = vmatprep.subr.mxu0 0.0
      %4308 = vmatpush2.msra.mxu0 0.0
      %4309 = vmatprep.subr.mxu0 0.0
      %4310 = vmatpush2.msra.mxu0 0.0
      %4311 = vmatprep.subr.mxu0 0.0
      %4312 = vmatpush2.msra.mxu0 0.0
      %4313 = vmatprep.subr.mxu0 0.0
      %4314 = vmatpush2.msra.mxu0 0.0
      %4315 = vmatprep.subr.mxu0 0.0
      %4316 = vmatpush2.msra.mxu0 0.0
      %4317 = vmatprep.subr.mxu0 0.0
      %4318 = vmatpush2.msra.mxu0 0.0
      %4319 = vmatprep.subr.mxu0 0.0
      %4320 = vmatpush2.msra.mxu0 0.0
      %4321 = vmatprep.subr.mxu0 0.0
      %4322 = vmatpush2.msra.mxu0 0.0
      %4323 = vmatprep.mubr.f32.mxu0 0.0
      %4324 = vmatmul.mubr.f32.gmra.mxu0 %v4257
      %v4325 = vpop.f32.mrf.mxu0
      %v4326 = vadd.f32 %v4254, %v4325
      %v4327 = vpop.f32.mrf.mxu0
      %v4328 = vadd.f32 %v4254, %v4327
      %4329 = vdwg.mxu0
      %v4332 = vcombine.low %v4326, %v4328
      %v4334 = vunpack.c.l.s4 1966171168
      %v4335 = vunpack.c.0.s8 %v4334
      %v4336 = vlaneseq
      %v4337 = vshrl.u32 %v4336, 7
      %v4338 = vsub.s32 %v4335, %v4337
      %v4339 = vrot.slane %v4332, %v4338
      %v4341 = vunpack.c.l.s4 1966171168
      %v4342 = vunpack.c.0.s8 %v4341
      %v4343 = vlaneseq
      %v4344 = vshrl.u32 %v4343, 7
      %v4345 = vsub.s32 %v4342, %v4344
      %v4346 = vrot.slane %v4339, %v4345
      %s4348 = scalar_lea.vmem %s175, 6
      %4349 = vst.msk [vmem:[%s4348] sm:$0x3] %vm1231, %v4346
      %s4350 = smul.u32 4, %s14
      %p4351 = scmp.lt.s32.totalorder %s4350, 7
      %s4352 = scalar_select %p4351, %s4350, 7
      %s4353 = smul.addr %s4352, 2
      %s4354 = scalar_lea.vmem %s3, %s4353
      // Predicated region
      $region33: #{mlp_forward.1} parent=31 // pred_check
        %p4355 = pneg %p100
      $region34: #{mlp_forward.1} parent=31 // pred_check_branch
        %4357 = sbr.rel (%p4355) target = $region36
      $region35: #{mlp_forward.1} parent=31 // pred_region
        %s4358 = smul.u32 4, %s14
      $region36: #{mlp_forward.1} parent=31 // pred_fallthru
        _
    $region32: #{mlp_forward.1} parent=5 // pred_fallthru
      _
    %p4359 = scmp.le.s32.totalorder 2, %s9
    // Predicated region
    $region37: #{mlp_forward.1} parent=5 // pred_check
      %p4360 = pneg %p4359
    $region38: #{mlp_forward.1} parent=5 // pred_check_branch
      %4362 = sbr.rel (%p4360) target = $region40
    $region39: #{mlp_forward.1} parent=5 // pred_region
      %s4363 = ssub.s32 %s9, 2
      // Predicated region
      $region41: #{mlp_forward.1} parent=39 // pred_check
        %p4364 = pneg %p106
      $region42: #{mlp_forward.1} parent=39 // pred_check_branch
        %4366 = sbr.rel (%p4364) target = $region44
      $region43: #{mlp_forward.1} parent=39 // pred_region
        %s4367 = smul.u32 4, %s15
        %p4368 = scmp.lt.s32.totalorder %s4367, 7
        %s4369 = scalar_select %p4368, %s4367, 7
        %s4370 = smul.addr %s4369, 2
        %s4371 = scalar_lea.vmem %s3, %s4370
      $region44: #{mlp_forward.1} parent=39 // pred_fallthru
        _
    $region40: #{mlp_forward.1} parent=5 // pred_fallthru
      _
  $region6: #{mlp_forward.1} parent=0 // loop_footer
    %s13 = sadd.s32 1, %s9
  $region7: #{mlp_forward.1} parent=0 // loop_footer_branch
    %8 = sbr.rel target = $region3
  $region8: #{mlp_forward.1} parent=0 // loop_exit
    _

</llo_original>
